<compile_context>
chip_gen: v5e
topology: v5e:2x2
jax: 0.10.0
libtpu: 0.0.40
codegen_flags: <defaults>
</compile_context>

<pallas_src>
import functools

import jax
import jax.numpy as jnp
from jax.experimental import pallas as pl
from jax.experimental.pallas import tpu as pltpu


def _mimick_cnn2_kernel(x_ref,
                        w1_ref, b1_ref,
                        w2_ref, b2_ref,
                        w3_ref, b3_ref,
                        wm1_ref, bm1_ref,
                        wt_ref, bt_ref,
                        wm2_ref, bm2_ref,
                        o_ref,
                        p1_ref, p2_ref):
    # x_ref: (L, TB, E) time-major batch block.  All activations are (TB, C)
    # 2-D slabs -> every matmul is a plain 2-D MXU matmul with M = TB.
    L = x_ref.shape[0]
    T1 = L - 1            # conv1 output length
    n1 = T1 // 2          # pool1 output length (floor mode)
    T2 = n1 - 1           # conv2 output length
    n2 = T2 // 2          # pool2 output length
    T3 = n2 - 1           # conv3 output length

    cdt = w1_ref.dtype    # MXU operand dtype (bf16 in production, f32 for parity)

    def mm(a, w):
        # bf16 (or f32) operands, f32 accumulation on the MXU.
        return jnp.dot(a.astype(cdt), w, preferred_element_type=jnp.float32)

    b1 = b1_ref[...]
    b2 = b2_ref[...]
    b3 = b3_ref[...]

    # --- conv1 (Conv2d(1, F, (2, E)) + ReLU) fused with max_pool1d(2, 2) -------
    # Per-tap accumulated matmuls; pooled pairs go straight to VMEM scratch so
    # the h1 values are transient (bounded vreg pressure).
    def conv1_out(t):
        return jnp.maximum(mm(x_ref[t], w1_ref[0]) + mm(x_ref[t + 1], w1_ref[1]) + b1, 0.0)

    for n in range(n1):
        p1_ref[n] = jnp.maximum(conv1_out(2 * n), conv1_out(2 * n + 1)).astype(p1_ref.dtype)

    # --- conv2 (Conv1d(F, F, 2) + ReLU) fused with max_pool1d(2, 2) ------------
    def conv2_out(t):
        return jnp.maximum(mm(p1_ref[t], w2_ref[0]) + mm(p1_ref[t + 1], w2_ref[1]) + b2, 0.0)

    for n in range(n2):
        p2_ref[n] = jnp.maximum(conv2_out(2 * n), conv2_out(2 * n + 1)).astype(p2_ref.dtype)

    # --- conv3 (Conv1d(F, emb_dim, 2) + ReLU) + global max pool over time ------
    def conv3_out(t):
        return jnp.maximum(mm(p2_ref[t], w3_ref[0]) + mm(p2_ref[t + 1], w3_ref[1]) + b3, 0.0)

    g = conv3_out(0)
    for t in range(1, T3):
        g = jnp.maximum(g, conv3_out(t))                                # (TB, D) f32

    # --- mlp1 = Linear + Hardtanh(-3, 3) ---------------------------------------
    out_cnn = jnp.clip(mm(g, wm1_ref[...]) + bm1_ref[...], -3.0, 3.0)   # (TB, D)

    # --- t (Linear + ReLU) and mlp2 (Linear + Hardtanh); gate in f32 -----------
    t_gate = jnp.maximum(mm(out_cnn, wt_ref[...]) + bt_ref[...], 0.0)
    m2 = jnp.clip(mm(out_cnn, wm2_ref[...]) + bm2_ref[...], -3.0, 3.0)

    o_ref[...] = t_gate * m2 + (1.0 - t_gate) * out_cnn                 # (TB, D) dense store


def prep_params(p, dtype=jnp.bfloat16):
    """One-time prep: cast MXU operands (conv / linear weights) to `dtype`.

    Biases and the embedding table stay f32 (elementwise math is done in f32;
    the gathered activations are cast to `dtype` in the wrapper).
    """
    cast = lambda w: w.astype(dtype)
    return {
        "embedding": p["embedding"],
        "W1": cast(p["W1"]), "b1": p["b1"],     # (2, E, F), tap-major
        "W2": cast(p["W2"]), "b2": p["b2"],     # (2, F, F)
        "W3": cast(p["W3"]), "b3": p["b3"],     # (2, F, D)
        "Wm1": cast(p["Wm1"]), "bm1": p["bm1"],
        "Wt": cast(p["Wt"]), "bt": p["bt"],
        "Wm2": cast(p["Wm2"]), "bm2": p["bm2"],
    }


def mimick_cnn2_forward(inputs, fp, *, tb=None):
    """inputs: (B, 1, L) int32 char indices; fp: prepped params (prep_params)."""
    B, _, L = inputs.shape
    E = fp["embedding"].shape[1]
    F = fp["b1"].shape[1]
    D = fp["bm1"].shape[1]
    if L < 11:
        raise ValueError("mimick_cnn2 requires char_max_len >= 11; "
                         f"got L={L} (conv3 output would be empty).")
    cdt = fp["W1"].dtype

    # Batch block size: fills the MXU M dim and amortizes per-grid-step overhead.
    # (128 saturates M on v5e; bump to 256 on v6e/v7x for huge batches -- VMEM
    # per block here is tiny, re-derive only at production E/F/D.)
    if tb is None:
        tb = min(B, 128)
    if tb < B:
        tb = max(8, (tb // 8) * 8)      # sublane-aligned batch blocks
    else:
        tb = B                          # single full-batch block
    nblk = pl.cdiv(B, tb)
    Bp = nblk * tb

    T1 = L - 1
    n1 = T1 // 2
    T2 = n1 - 1
    n2 = T2 // 2
    T3 = n2 - 1

    # Embedding gather (XLA glue).  Time-major layout so the kernel reads
    # per-time-step (TB, E) slabs via cheap leading-dim indexing; cast to the
    # MXU dtype (bf16) to halve the input DMA bytes.
    idx = inputs[:, 0, :]
    if Bp != B:
        idx = jnp.pad(idx, ((0, Bp - B), (0, 0)))
    x = jnp.transpose(fp["embedding"][idx], (1, 0, 2)).astype(cdt)      # (L, Bp, E)
    # TODO(synk): gather in-kernel from a replicated VMEM (V, E) table instead.

    weights = (fp["W1"], fp["b1"], fp["W2"], fp["b2"], fp["W3"], fp["b3"],
               fp["Wm1"], fp["bm1"], fp["Wt"], fp["bt"], fp["Wm2"], fp["bm2"])

    def rep(a):
        # Weight/bias replicated across the batch grid (block 0 every step ->
        # the pipeline skips re-DMA since the block index never changes).
        nd = a.ndim
        return pl.BlockSpec(a.shape, lambda i, nd=nd: (0,) * nd)

    in_specs = ([pl.BlockSpec((L, tb, E), lambda i: (0, i, 0))]
                + [rep(a) for a in weights])

    flops = 2 * Bp * (T1 * 2 * E * F + T2 * 2 * F * F + T3 * 2 * F * D + 3 * D * D)
    bytes_accessed = (int(x.size) * x.dtype.itemsize
                      + sum(int(a.size) * a.dtype.itemsize for a in weights)
                      + Bp * D * 4)

    out = pl.pallas_call(
        _mimick_cnn2_kernel,
        out_shape=jax.ShapeDtypeStruct((Bp, D), jnp.float32),
        grid=(nblk,),
        in_specs=in_specs,
        out_specs=pl.BlockSpec((tb, D), lambda i: (i, 0)),
        scratch_shapes=[pltpu.VMEM((n1, tb, F), cdt),      # pooled conv1 output
                        pltpu.VMEM((n2, tb, F), cdt)],     # pooled conv2 output
        compiler_params=pltpu.CompilerParams(
            dimension_semantics=("parallel",),
            vmem_limit_bytes=32 * 1024 * 1024),
        cost_estimate=pl.CostEstimate(flops=flops, transcendentals=0,
                                      bytes_accessed=bytes_accessed),
    )(x, *weights)
    return out[:B]                                                       # (B, D)


def reference_forward(inputs, params):
    """Pure-JAX/XLA f32 reference with PyTorch NCHW/NCL conv semantics."""
    x = params["embedding"][inputs[:, 0, :]].astype(jnp.float32)         # (B, L, E)
    x4 = x[:, None, :, :]                                                # (B,1,L,E)

    w1_t = jnp.transpose(params["W1"], (2, 0, 1))[:, None, :, :]         # (F,1,2,E)
    h1 = jax.lax.conv_general_dilated(
        x4, w1_t, window_strides=(1, 1), padding="VALID",
        dimension_numbers=("NCHW", "OIHW", "NCHW"))
    h1 = jax.nn.relu(h1 + params["b1"].reshape(1, -1, 1, 1))[..., 0]     # (B,F,L-1)

    def maxpool1d(a, k):
        return jax.lax.reduce_window(a, -jnp.inf, jax.lax.max,
                                     (1, 1, k), (1, 1, k), "VALID")

    def conv1d_relu(a, w_kio, b):
        w = jnp.transpose(w_kio, (2, 1, 0))                              # (Cout,Cin,2)
        y = jax.lax.conv_general_dilated(
            a, w, window_strides=(1,), padding="VALID",
            dimension_numbers=("NCH", "OIH", "NCH"))
        return jax.nn.relu(y + b.reshape(1, -1, 1))

    p1 = maxpool1d(h1, 2)
    h2 = conv1d_relu(p1, params["W2"], params["b2"])
    p2 = maxpool1d(h2, 2)
    h3 = conv1d_relu(p2, params["W3"], params["b3"])
    g = jnp.max(h3, axis=2)                                              # (B, D)

    out_cnn = jnp.clip(g @ params["Wm1"] + params["bm1"], -3.0, 3.0)
    t_gate = jax.nn.relu(out_cnn @ params["Wt"] + params["bt"])
    m2 = jnp.clip(out_cnn @ params["Wm2"] + params["bm2"], -3.0, 3.0)
    return t_gate * m2 + (1.0 - t_gate) * out_cnn


if __name__ == "__main__":
    # Small shapes consistent with the module (B=16 so the grid has 2 batch
    # blocks of TB=8 and both TensorCores get work):
    B, L = 16, 15                # batch, char_max_len
    V, E, F, D = 50, 32, 16, 32  # vocab, char_emb_dim, num_feature, emb_dim

    key = jax.random.PRNGKey(0)
    keys = jax.random.split(key, 16)

    def init(k, shape, scale=0.1):
        return scale * jax.random.normal(k, shape, dtype=jnp.float32)

    # Parameters in per-tap layout (mirrors the PyTorch module; Linear weights
    # stored pre-transposed as (in, out)).
    params = {
        "embedding": init(keys[0], (V, E), 1.0),
        "W1": init(keys[1], (2, E, F)),  "b1": init(keys[2], (1, F)),
        "W2": init(keys[3], (2, F, F)),  "b2": init(keys[4], (1, F)),
        "W3": init(keys[5], (2, F, D)),  "b3": init(keys[6], (1, D)),
        "Wm1": init(keys[7], (D, D)),    "bm1": init(keys[8], (1, D)),
        "Wm2": init(keys[9], (D, D)),    "bm2": init(keys[10], (1, D)),
        "Wt": init(keys[11], (D, D)),    "bt": init(keys[12], (1, D)),
    }
    inputs = jax.random.randint(keys[13], (B, 1, L), 0, V, dtype=jnp.int32)

    ref = jax.block_until_ready(reference_forward(inputs, params))

    fwd = jax.jit(functools.partial(mimick_cnn2_forward, tb=8))

    # Strict parity check with f32 MXU operands.
    out_f32 = jax.block_until_ready(fwd(inputs, prep_params(params, jnp.float32)))
    assert out_f32.shape == (B, D), out_f32.shape
    assert jnp.allclose(out_f32, ref, atol=1e-3, rtol=1e-3), (
        float(jnp.max(jnp.abs(out_f32 - ref))))

    # Production path: bf16 MXU operands, f32 accumulation + f32 elementwise.
    out_bf16 = jax.block_until_ready(fwd(inputs, prep_params(params, jnp.bfloat16)))
    assert out_bf16.shape == (B, D), out_bf16.shape
    assert jnp.allclose(out_bf16, ref, atol=2e-2, rtol=2e-2), (
        float(jnp.max(jnp.abs(out_bf16 - ref))))

    print("KERNEL_OK")
</pallas_src>

<mosaic_0001>
module attributes {stable_mosaic.version = 11 : i64} {
  func.func @_mimick_cnn2_kernel(%arg0: i32, %arg1: memref<15x8x32xf32, #tpu.memory_space<vmem>>, %arg2: memref<2x32x16xf32, #tpu.memory_space<vmem>>, %arg3: memref<1x16xf32, #tpu.memory_space<vmem>>, %arg4: memref<2x16x16xf32, #tpu.memory_space<vmem>>, %arg5: memref<1x16xf32, #tpu.memory_space<vmem>>, %arg6: memref<2x16x32xf32, #tpu.memory_space<vmem>>, %arg7: memref<1x32xf32, #tpu.memory_space<vmem>>, %arg8: memref<32x32xf32, #tpu.memory_space<vmem>>, %arg9: memref<1x32xf32, #tpu.memory_space<vmem>>, %arg10: memref<32x32xf32, #tpu.memory_space<vmem>>, %arg11: memref<1x32xf32, #tpu.memory_space<vmem>>, %arg12: memref<32x32xf32, #tpu.memory_space<vmem>>, %arg13: memref<1x32xf32, #tpu.memory_space<vmem>>, %arg14: memref<8x32xf32, #tpu.memory_space<vmem>>, %arg15: memref<7x8x16xf32, #tpu.memory_space<vmem>>, %arg16: memref<3x8x16xf32, #tpu.memory_space<vmem>>) attributes {dimension_semantics = [#tpu.dimension_semantics<parallel>], iteration_bounds = array<i64: 2>, scalar_prefetch = 0 : i64, scratch_operands = 2 : i64, tpu.core_type = #tpu.core_type<tc>, window_params = [{transform_indices = @transform_0, window_bounds = array<i64: 15, 8, 32>}, {pipeline_mode = #tpu.pipeline_mode<synchronous>, transform_indices = @transform_1, window_bounds = array<i64: 2, 32, 16>}, {pipeline_mode = #tpu.pipeline_mode<synchronous>, transform_indices = @transform_2, window_bounds = array<i64: 1, 16>}, {pipeline_mode = #tpu.pipeline_mode<synchronous>, transform_indices = @transform_3, window_bounds = array<i64: 2, 16, 16>}, {pipeline_mode = #tpu.pipeline_mode<synchronous>, transform_indices = @transform_4, window_bounds = array<i64: 1, 16>}, {pipeline_mode = #tpu.pipeline_mode<synchronous>, transform_indices = @transform_5, window_bounds = array<i64: 2, 16, 32>}, {pipeline_mode = #tpu.pipeline_mode<synchronous>, transform_indices = @transform_6, window_bounds = array<i64: 1, 32>}, {pipeline_mode = #tpu.pipeline_mode<synchronous>, transform_indices = @transform_7, window_bounds = array<i64: 32, 32>}, {pipeline_mode = #tpu.pipeline_mode<synchronous>, transform_indices = @transform_8, window_bounds = array<i64: 1, 32>}, {pipeline_mode = #tpu.pipeline_mode<synchronous>, transform_indices = @transform_9, window_bounds = array<i64: 32, 32>}, {pipeline_mode = #tpu.pipeline_mode<synchronous>, transform_indices = @transform_10, window_bounds = array<i64: 1, 32>}, {pipeline_mode = #tpu.pipeline_mode<synchronous>, transform_indices = @transform_11, window_bounds = array<i64: 32, 32>}, {pipeline_mode = #tpu.pipeline_mode<synchronous>, transform_indices = @transform_12, window_bounds = array<i64: 1, 32>}, {transform_indices = @transform_13, window_bounds = array<i64: 8, 32>}]} {
    %c0 = arith.constant 0 : index
    %c0_0 = arith.constant 0 : index
    %0 = vector.load %arg3[%c0, %c0_0] : memref<1x16xf32, #tpu.memory_space<vmem>>, vector<1x16xf32>
    %c0_1 = arith.constant 0 : index
    %c0_2 = arith.constant 0 : index
    %1 = vector.load %arg5[%c0_1, %c0_2] : memref<1x16xf32, #tpu.memory_space<vmem>>, vector<1x16xf32>
    %c0_3 = arith.constant 0 : index
    %c0_4 = arith.constant 0 : index
    %2 = vector.load %arg7[%c0_3, %c0_4] : memref<1x32xf32, #tpu.memory_space<vmem>>, vector<1x32xf32>
    %c0_5 = arith.constant 0 : index
    %c0_6 = arith.constant 0 : index
    %c0_7 = arith.constant 0 : index
    %3 = vector.load %arg1[%c0_5, %c0_6, %c0_7] : memref<15x8x32xf32, #tpu.memory_space<vmem>>, vector<1x8x32xf32>
    %4 = vector.shape_cast %3 : vector<1x8x32xf32> to vector<8x32xf32>
    %c0_8 = arith.constant 0 : index
    %c0_9 = arith.constant 0 : index
    %c0_10 = arith.constant 0 : index
    %5 = vector.load %arg2[%c0_8, %c0_9, %c0_10] : memref<2x32x16xf32, #tpu.memory_space<vmem>>, vector<1x32x16xf32>
    %6 = vector.shape_cast %5 : vector<1x32x16xf32> to vector<32x16xf32>
    %cst = arith.constant dense<0.000000e+00> : vector<8x16xf32>
    %7 = tpu.matmul %4, %6, %cst {dimension_numbers = #tpu.dot_dimension_numbers<[1], [0], [0], [1], [0, 0, 1, 1], [], []>} : vector<8x32xf32>, vector<32x16xf32>, vector<8x16xf32> -> vector<8x16xf32>
    %c1 = arith.constant 1 : index
    %c0_11 = arith.constant 0 : index
    %c0_12 = arith.constant 0 : index
    %8 = vector.load %arg1[%c1, %c0_11, %c0_12] : memref<15x8x32xf32, #tpu.memory_space<vmem>>, vector<1x8x32xf32>
    %9 = vector.shape_cast %8 : vector<1x8x32xf32> to vector<8x32xf32>
    %c1_13 = arith.constant 1 : index
    %c0_14 = arith.constant 0 : index
    %c0_15 = arith.constant 0 : index
    %10 = vector.load %arg2[%c1_13, %c0_14, %c0_15] : memref<2x32x16xf32, #tpu.memory_space<vmem>>, vector<1x32x16xf32>
    %11 = vector.shape_cast %10 : vector<1x32x16xf32> to vector<32x16xf32>
    %cst_16 = arith.constant dense<0.000000e+00> : vector<8x16xf32>
    %12 = tpu.matmul %9, %11, %cst_16 {dimension_numbers = #tpu.dot_dimension_numbers<[1], [0], [0], [1], [0, 0, 1, 1], [], []>} : vector<8x32xf32>, vector<32x16xf32>, vector<8x16xf32> -> vector<8x16xf32>
    %13 = arith.addf %7, %12 : vector<8x16xf32>
    %14 = vector.broadcast %0 : vector<1x16xf32> to vector<8x16xf32>
    %15 = arith.addf %13, %14 : vector<8x16xf32>
    %cst_17 = arith.constant 0.000000e+00 : f32
    %16 = vector.broadcast %cst_17 : f32 to vector<8x16xf32>
    %17 = arith.maximumf %15, %16 : vector<8x16xf32>
    %c1_18 = arith.constant 1 : index
    %c0_19 = arith.constant 0 : index
    %c0_20 = arith.constant 0 : index
    %18 = vector.load %arg1[%c1_18, %c0_19, %c0_20] : memref<15x8x32xf32, #tpu.memory_space<vmem>>, vector<1x8x32xf32>
    %19 = vector.shape_cast %18 : vector<1x8x32xf32> to vector<8x32xf32>
    %c0_21 = arith.constant 0 : index
    %c0_22 = arith.constant 0 : index
    %c0_23 = arith.constant 0 : index
    %20 = vector.load %arg2[%c0_21, %c0_22, %c0_23] : memref<2x32x16xf32, #tpu.memory_space<vmem>>, vector<1x32x16xf32>
    %21 = vector.shape_cast %20 : vector<1x32x16xf32> to vector<32x16xf32>
    %cst_24 = arith.constant dense<0.000000e+00> : vector<8x16xf32>
    %22 = tpu.matmul %19, %21, %cst_24 {dimension_numbers = #tpu.dot_dimension_numbers<[1], [0], [0], [1], [0, 0, 1, 1], [], []>} : vector<8x32xf32>, vector<32x16xf32>, vector<8x16xf32> -> vector<8x16xf32>
    %c2 = arith.constant 2 : index
    %c0_25 = arith.constant 0 : index
    %c0_26 = arith.constant 0 : index
    %23 = vector.load %arg1[%c2, %c0_25, %c0_26] : memref<15x8x32xf32, #tpu.memory_space<vmem>>, vector<1x8x32xf32>
    %24 = vector.shape_cast %23 : vector<1x8x32xf32> to vector<8x32xf32>
    %c1_27 = arith.constant 1 : index
    %c0_28 = arith.constant 0 : index
    %c0_29 = arith.constant 0 : index
    %25 = vector.load %arg2[%c1_27, %c0_28, %c0_29] : memref<2x32x16xf32, #tpu.memory_space<vmem>>, vector<1x32x16xf32>
    %26 = vector.shape_cast %25 : vector<1x32x16xf32> to vector<32x16xf32>
    %cst_30 = arith.constant dense<0.000000e+00> : vector<8x16xf32>
    %27 = tpu.matmul %24, %26, %cst_30 {dimension_numbers = #tpu.dot_dimension_numbers<[1], [0], [0], [1], [0, 0, 1, 1], [], []>} : vector<8x32xf32>, vector<32x16xf32>, vector<8x16xf32> -> vector<8x16xf32>
    %28 = arith.addf %22, %27 : vector<8x16xf32>
    %29 = vector.broadcast %0 : vector<1x16xf32> to vector<8x16xf32>
    %30 = arith.addf %28, %29 : vector<8x16xf32>
    %cst_31 = arith.constant 0.000000e+00 : f32
    %31 = vector.broadcast %cst_31 : f32 to vector<8x16xf32>
    %32 = arith.maximumf %30, %31 : vector<8x16xf32>
    %33 = arith.maximumf %17, %32 : vector<8x16xf32>
    %c0_32 = arith.constant 0 : index
    %c0_33 = arith.constant 0 : index
    %c0_34 = arith.constant 0 : index
    %34 = vector.load %arg15[%c0_32, %c0_33, %c0_34] : memref<7x8x16xf32, #tpu.memory_space<vmem>>, vector<1x8x16xf32>
    %35 = vector.shape_cast %34 : vector<1x8x16xf32> to vector<8x16xf32>
    %36 = vector.shape_cast %33 : vector<8x16xf32> to vector<1x8x16xf32>
    tpu.vector_store %arg15[%c0_32, %c0_33, %c0_34], %36 {strides = array<i32>} : memref<7x8x16xf32, #tpu.memory_space<vmem>>, vector<1x8x16xf32>,
    %c2_35 = arith.constant 2 : index
    %c0_36 = arith.constant 0 : index
    %c0_37 = arith.constant 0 : index
    %37 = vector.load %arg1[%c2_35, %c0_36, %c0_37] : memref<15x8x32xf32, #tpu.memory_space<vmem>>, vector<1x8x32xf32>
    %38 = vector.shape_cast %37 : vector<1x8x32xf32> to vector<8x32xf32>
    %c0_38 = arith.constant 0 : index
    %c0_39 = arith.constant 0 : index
    %c0_40 = arith.constant 0 : index
    %39 = vector.load %arg2[%c0_38, %c0_39, %c0_40] : memref<2x32x16xf32, #tpu.memory_space<vmem>>, vector<1x32x16xf32>
    %40 = vector.shape_cast %39 : vector<1x32x16xf32> to vector<32x16xf32>
    %cst_41 = arith.constant dense<0.000000e+00> : vector<8x16xf32>
    %41 = tpu.matmul %38, %40, %cst_41 {dimension_numbers = #tpu.dot_dimension_numbers<[1], [0], [0], [1], [0, 0, 1, 1], [], []>} : vector<8x32xf32>, vector<32x16xf32>, vector<8x16xf32> -> vector<8x16xf32>
    %c3 = arith.constant 3 : index
    %c0_42 = arith.constant 0 : index
    %c0_43 = arith.constant 0 : index
    %42 = vector.load %arg1[%c3, %c0_42, %c0_43] : memref<15x8x32xf32, #tpu.memory_space<vmem>>, vector<1x8x32xf32>
    %43 = vector.shape_cast %42 : vector<1x8x32xf32> to vector<8x32xf32>
    %c1_44 = arith.constant 1 : index
    %c0_45 = arith.constant 0 : index
    %c0_46 = arith.constant 0 : index
    %44 = vector.load %arg2[%c1_44, %c0_45, %c0_46] : memref<2x32x16xf32, #tpu.memory_space<vmem>>, vector<1x32x16xf32>
    %45 = vector.shape_cast %44 : vector<1x32x16xf32> to vector<32x16xf32>
    %cst_47 = arith.constant dense<0.000000e+00> : vector<8x16xf32>
    %46 = tpu.matmul %43, %45, %cst_47 {dimension_numbers = #tpu.dot_dimension_numbers<[1], [0], [0], [1], [0, 0, 1, 1], [], []>} : vector<8x32xf32>, vector<32x16xf32>, vector<8x16xf32> -> vector<8x16xf32>
    %47 = arith.addf %41, %46 : vector<8x16xf32>
    %48 = vector.broadcast %0 : vector<1x16xf32> to vector<8x16xf32>
    %49 = arith.addf %47, %48 : vector<8x16xf32>
    %cst_48 = arith.constant 0.000000e+00 : f32
    %50 = vector.broadcast %cst_48 : f32 to vector<8x16xf32>
    %51 = arith.maximumf %49, %50 : vector<8x16xf32>
    %c3_49 = arith.constant 3 : index
    %c0_50 = arith.constant 0 : index
    %c0_51 = arith.constant 0 : index
    %52 = vector.load %arg1[%c3_49, %c0_50, %c0_51] : memref<15x8x32xf32, #tpu.memory_space<vmem>>, vector<1x8x32xf32>
    %53 = vector.shape_cast %52 : vector<1x8x32xf32> to vector<8x32xf32>
    %c0_52 = arith.constant 0 : index
    %c0_53 = arith.constant 0 : index
    %c0_54 = arith.constant 0 : index
    %54 = vector.load %arg2[%c0_52, %c0_53, %c0_54] : memref<2x32x16xf32, #tpu.memory_space<vmem>>, vector<1x32x16xf32>
    %55 = vector.shape_cast %54 : vector<1x32x16xf32> to vector<32x16xf32>
    %cst_55 = arith.constant dense<0.000000e+00> : vector<8x16xf32>
    %56 = tpu.matmul %53, %55, %cst_55 {dimension_numbers = #tpu.dot_dimension_numbers<[1], [0], [0], [1], [0, 0, 1, 1], [], []>} : vector<8x32xf32>, vector<32x16xf32>, vector<8x16xf32> -> vector<8x16xf32>
    %c4 = arith.constant 4 : index
    %c0_56 = arith.constant 0 : index
    %c0_57 = arith.constant 0 : index
    %57 = vector.load %arg1[%c4, %c0_56, %c0_57] : memref<15x8x32xf32, #tpu.memory_space<vmem>>, vector<1x8x32xf32>
    %58 = vector.shape_cast %57 : vector<1x8x32xf32> to vector<8x32xf32>
    %c1_58 = arith.constant 1 : index
    %c0_59 = arith.constant 0 : index
    %c0_60 = arith.constant 0 : index
    %59 = vector.load %arg2[%c1_58, %c0_59, %c0_60] : memref<2x32x16xf32, #tpu.memory_space<vmem>>, vector<1x32x16xf32>
    %60 = vector.shape_cast %59 : vector<1x32x16xf32> to vector<32x16xf32>
    %cst_61 = arith.constant dense<0.000000e+00> : vector<8x16xf32>
    %61 = tpu.matmul %58, %60, %cst_61 {dimension_numbers = #tpu.dot_dimension_numbers<[1], [0], [0], [1], [0, 0, 1, 1], [], []>} : vector<8x32xf32>, vector<32x16xf32>, vector<8x16xf32> -> vector<8x16xf32>
    %62 = arith.addf %56, %61 : vector<8x16xf32>
    %63 = vector.broadcast %0 : vector<1x16xf32> to vector<8x16xf32>
    %64 = arith.addf %62, %63 : vector<8x16xf32>
    %cst_62 = arith.constant 0.000000e+00 : f32
    %65 = vector.broadcast %cst_62 : f32 to vector<8x16xf32>
    %66 = arith.maximumf %64, %65 : vector<8x16xf32>
    %67 = arith.maximumf %51, %66 : vector<8x16xf32>
    %c1_63 = arith.constant 1 : index
    %c0_64 = arith.constant 0 : index
    %c0_65 = arith.constant 0 : index
    %68 = vector.load %arg15[%c1_63, %c0_64, %c0_65] : memref<7x8x16xf32, #tpu.memory_space<vmem>>, vector<1x8x16xf32>
    %69 = vector.shape_cast %68 : vector<1x8x16xf32> to vector<8x16xf32>
    %70 = vector.shape_cast %67 : vector<8x16xf32> to vector<1x8x16xf32>
    tpu.vector_store %arg15[%c1_63, %c0_64, %c0_65], %70 {strides = array<i32>} : memref<7x8x16xf32, #tpu.memory_space<vmem>>, vector<1x8x16xf32>,
    %c4_66 = arith.constant 4 : index
    %c0_67 = arith.constant 0 : index
    %c0_68 = arith.constant 0 : index
    %71 = vector.load %arg1[%c4_66, %c0_67, %c0_68] : memref<15x8x32xf32, #tpu.memory_space<vmem>>, vector<1x8x32xf32>
    %72 = vector.shape_cast %71 : vector<1x8x32xf32> to vector<8x32xf32>
    %c0_69 = arith.constant 0 : index
    %c0_70 = arith.constant 0 : index
    %c0_71 = arith.constant 0 : index
    %73 = vector.load %arg2[%c0_69, %c0_70, %c0_71] : memref<2x32x16xf32, #tpu.memory_space<vmem>>, vector<1x32x16xf32>
    %74 = vector.shape_cast %73 : vector<1x32x16xf32> to vector<32x16xf32>
    %cst_72 = arith.constant dense<0.000000e+00> : vector<8x16xf32>
    %75 = tpu.matmul %72, %74, %cst_72 {dimension_numbers = #tpu.dot_dimension_numbers<[1], [0], [0], [1], [0, 0, 1, 1], [], []>} : vector<8x32xf32>, vector<32x16xf32>, vector<8x16xf32> -> vector<8x16xf32>
    %c5 = arith.constant 5 : index
    %c0_73 = arith.constant 0 : index
    %c0_74 = arith.constant 0 : index
    %76 = vector.load %arg1[%c5, %c0_73, %c0_74] : memref<15x8x32xf32, #tpu.memory_space<vmem>>, vector<1x8x32xf32>
    %77 = vector.shape_cast %76 : vector<1x8x32xf32> to vector<8x32xf32>
    %c1_75 = arith.constant 1 : index
    %c0_76 = arith.constant 0 : index
    %c0_77 = arith.constant 0 : index
    %78 = vector.load %arg2[%c1_75, %c0_76, %c0_77] : memref<2x32x16xf32, #tpu.memory_space<vmem>>, vector<1x32x16xf32>
    %79 = vector.shape_cast %78 : vector<1x32x16xf32> to vector<32x16xf32>
    %cst_78 = arith.constant dense<0.000000e+00> : vector<8x16xf32>
    %80 = tpu.matmul %77, %79, %cst_78 {dimension_numbers = #tpu.dot_dimension_numbers<[1], [0], [0], [1], [0, 0, 1, 1], [], []>} : vector<8x32xf32>, vector<32x16xf32>, vector<8x16xf32> -> vector<8x16xf32>
    %81 = arith.addf %75, %80 : vector<8x16xf32>
    %82 = vector.broadcast %0 : vector<1x16xf32> to vector<8x16xf32>
    %83 = arith.addf %81, %82 : vector<8x16xf32>
    %cst_79 = arith.constant 0.000000e+00 : f32
    %84 = vector.broadcast %cst_79 : f32 to vector<8x16xf32>
    %85 = arith.maximumf %83, %84 : vector<8x16xf32>
    %c5_80 = arith.constant 5 : index
    %c0_81 = arith.constant 0 : index
    %c0_82 = arith.constant 0 : index
    %86 = vector.load %arg1[%c5_80, %c0_81, %c0_82] : memref<15x8x32xf32, #tpu.memory_space<vmem>>, vector<1x8x32xf32>
    %87 = vector.shape_cast %86 : vector<1x8x32xf32> to vector<8x32xf32>
    %c0_83 = arith.constant 0 : index
    %c0_84 = arith.constant 0 : index
    %c0_85 = arith.constant 0 : index
    %88 = vector.load %arg2[%c0_83, %c0_84, %c0_85] : memref<2x32x16xf32, #tpu.memory_space<vmem>>, vector<1x32x16xf32>
    %89 = vector.shape_cast %88 : vector<1x32x16xf32> to vector<32x16xf32>
    %cst_86 = arith.constant dense<0.000000e+00> : vector<8x16xf32>
    %90 = tpu.matmul %87, %89, %cst_86 {dimension_numbers = #tpu.dot_dimension_numbers<[1], [0], [0], [1], [0, 0, 1, 1], [], []>} : vector<8x32xf32>, vector<32x16xf32>, vector<8x16xf32> -> vector<8x16xf32>
    %c6 = arith.constant 6 : index
    %c0_87 = arith.constant 0 : index
    %c0_88 = arith.constant 0 : index
    %91 = vector.load %arg1[%c6, %c0_87, %c0_88] : memref<15x8x32xf32, #tpu.memory_space<vmem>>, vector<1x8x32xf32>
    %92 = vector.shape_cast %91 : vector<1x8x32xf32> to vector<8x32xf32>
    %c1_89 = arith.constant 1 : index
    %c0_90 = arith.constant 0 : index
    %c0_91 = arith.constant 0 : index
    %93 = vector.load %arg2[%c1_89, %c0_90, %c0_91] : memref<2x32x16xf32, #tpu.memory_space<vmem>>, vector<1x32x16xf32>
    %94 = vector.shape_cast %93 : vector<1x32x16xf32> to vector<32x16xf32>
    %cst_92 = arith.constant dense<0.000000e+00> : vector<8x16xf32>
    %95 = tpu.matmul %92, %94, %cst_92 {dimension_numbers = #tpu.dot_dimension_numbers<[1], [0], [0], [1], [0, 0, 1, 1], [], []>} : vector<8x32xf32>, vector<32x16xf32>, vector<8x16xf32> -> vector<8x16xf32>
    %96 = arith.addf %90, %95 : vector<8x16xf32>
    %97 = vector.broadcast %0 : vector<1x16xf32> to vector<8x16xf32>
    %98 = arith.addf %96, %97 : vector<8x16xf32>
    %cst_93 = arith.constant 0.000000e+00 : f32
    %99 = vector.broadcast %cst_93 : f32 to vector<8x16xf32>
    %100 = arith.maximumf %98, %99 : vector<8x16xf32>
    %101 = arith.maximumf %85, %100 : vector<8x16xf32>
    %c2_94 = arith.constant 2 : index
    %c0_95 = arith.constant 0 : index
    %c0_96 = arith.constant 0 : index
    %102 = vector.load %arg15[%c2_94, %c0_95, %c0_96] : memref<7x8x16xf32, #tpu.memory_space<vmem>>, vector<1x8x16xf32>
    %103 = vector.shape_cast %102 : vector<1x8x16xf32> to vector<8x16xf32>
    %104 = vector.shape_cast %101 : vector<8x16xf32> to vector<1x8x16xf32>
    tpu.vector_store %arg15[%c2_94, %c0_95, %c0_96], %104 {strides = array<i32>} : memref<7x8x16xf32, #tpu.memory_space<vmem>>, vector<1x8x16xf32>,
    %c6_97 = arith.constant 6 : index
    %c0_98 = arith.constant 0 : index
    %c0_99 = arith.constant 0 : index
    %105 = vector.load %arg1[%c6_97, %c0_98, %c0_99] : memref<15x8x32xf32, #tpu.memory_space<vmem>>, vector<1x8x32xf32>
    %106 = vector.shape_cast %105 : vector<1x8x32xf32> to vector<8x32xf32>
    %c0_100 = arith.constant 0 : index
    %c0_101 = arith.constant 0 : index
    %c0_102 = arith.constant 0 : index
    %107 = vector.load %arg2[%c0_100, %c0_101, %c0_102] : memref<2x32x16xf32, #tpu.memory_space<vmem>>, vector<1x32x16xf32>
    %108 = vector.shape_cast %107 : vector<1x32x16xf32> to vector<32x16xf32>
    %cst_103 = arith.constant dense<0.000000e+00> : vector<8x16xf32>
    %109 = tpu.matmul %106, %108, %cst_103 {dimension_numbers = #tpu.dot_dimension_numbers<[1], [0], [0], [1], [0, 0, 1, 1], [], []>} : vector<8x32xf32>, vector<32x16xf32>, vector<8x16xf32> -> vector<8x16xf32>
    %c7 = arith.constant 7 : index
    %c0_104 = arith.constant 0 : index
    %c0_105 = arith.constant 0 : index
    %110 = vector.load %arg1[%c7, %c0_104, %c0_105] : memref<15x8x32xf32, #tpu.memory_space<vmem>>, vector<1x8x32xf32>
    %111 = vector.shape_cast %110 : vector<1x8x32xf32> to vector<8x32xf32>
    %c1_106 = arith.constant 1 : index
    %c0_107 = arith.constant 0 : index
    %c0_108 = arith.constant 0 : index
    %112 = vector.load %arg2[%c1_106, %c0_107, %c0_108] : memref<2x32x16xf32, #tpu.memory_space<vmem>>, vector<1x32x16xf32>
    %113 = vector.shape_cast %112 : vector<1x32x16xf32> to vector<32x16xf32>
    %cst_109 = arith.constant dense<0.000000e+00> : vector<8x16xf32>
    %114 = tpu.matmul %111, %113, %cst_109 {dimension_numbers = #tpu.dot_dimension_numbers<[1], [0], [0], [1], [0, 0, 1, 1], [], []>} : vector<8x32xf32>, vector<32x16xf32>, vector<8x16xf32> -> vector<8x16xf32>
    %115 = arith.addf %109, %114 : vector<8x16xf32>
    %116 = vector.broadcast %0 : vector<1x16xf32> to vector<8x16xf32>
    %117 = arith.addf %115, %116 : vector<8x16xf32>
    %cst_110 = arith.constant 0.000000e+00 : f32
    %118 = vector.broadcast %cst_110 : f32 to vector<8x16xf32>
    %119 = arith.maximumf %117, %118 : vector<8x16xf32>
    %c7_111 = arith.constant 7 : index
    %c0_112 = arith.constant 0 : index
    %c0_113 = arith.constant 0 : index
    %120 = vector.load %arg1[%c7_111, %c0_112, %c0_113] : memref<15x8x32xf32, #tpu.memory_space<vmem>>, vector<1x8x32xf32>
    %121 = vector.shape_cast %120 : vector<1x8x32xf32> to vector<8x32xf32>
    %c0_114 = arith.constant 0 : index
    %c0_115 = arith.constant 0 : index
    %c0_116 = arith.constant 0 : index
    %122 = vector.load %arg2[%c0_114, %c0_115, %c0_116] : memref<2x32x16xf32, #tpu.memory_space<vmem>>, vector<1x32x16xf32>
    %123 = vector.shape_cast %122 : vector<1x32x16xf32> to vector<32x16xf32>
    %cst_117 = arith.constant dense<0.000000e+00> : vector<8x16xf32>
    %124 = tpu.matmul %121, %123, %cst_117 {dimension_numbers = #tpu.dot_dimension_numbers<[1], [0], [0], [1], [0, 0, 1, 1], [], []>} : vector<8x32xf32>, vector<32x16xf32>, vector<8x16xf32> -> vector<8x16xf32>
    %c8 = arith.constant 8 : index
    %c0_118 = arith.constant 0 : index
    %c0_119 = arith.constant 0 : index
    %125 = vector.load %arg1[%c8, %c0_118, %c0_119] : memref<15x8x32xf32, #tpu.memory_space<vmem>>, vector<1x8x32xf32>
    %126 = vector.shape_cast %125 : vector<1x8x32xf32> to vector<8x32xf32>
    %c1_120 = arith.constant 1 : index
    %c0_121 = arith.constant 0 : index
    %c0_122 = arith.constant 0 : index
    %127 = vector.load %arg2[%c1_120, %c0_121, %c0_122] : memref<2x32x16xf32, #tpu.memory_space<vmem>>, vector<1x32x16xf32>
    %128 = vector.shape_cast %127 : vector<1x32x16xf32> to vector<32x16xf32>
    %cst_123 = arith.constant dense<0.000000e+00> : vector<8x16xf32>
    %129 = tpu.matmul %126, %128, %cst_123 {dimension_numbers = #tpu.dot_dimension_numbers<[1], [0], [0], [1], [0, 0, 1, 1], [], []>} : vector<8x32xf32>, vector<32x16xf32>, vector<8x16xf32> -> vector<8x16xf32>
    %130 = arith.addf %124, %129 : vector<8x16xf32>
    %131 = vector.broadcast %0 : vector<1x16xf32> to vector<8x16xf32>
    %132 = arith.addf %130, %131 : vector<8x16xf32>
    %cst_124 = arith.constant 0.000000e+00 : f32
    %133 = vector.broadcast %cst_124 : f32 to vector<8x16xf32>
    %134 = arith.maximumf %132, %133 : vector<8x16xf32>
    %135 = arith.maximumf %119, %134 : vector<8x16xf32>
    %c3_125 = arith.constant 3 : index
    %c0_126 = arith.constant 0 : index
    %c0_127 = arith.constant 0 : index
    %136 = vector.load %arg15[%c3_125, %c0_126, %c0_127] : memref<7x8x16xf32, #tpu.memory_space<vmem>>, vector<1x8x16xf32>
    %137 = vector.shape_cast %136 : vector<1x8x16xf32> to vector<8x16xf32>
    %138 = vector.shape_cast %135 : vector<8x16xf32> to vector<1x8x16xf32>
    tpu.vector_store %arg15[%c3_125, %c0_126, %c0_127], %138 {strides = array<i32>} : memref<7x8x16xf32, #tpu.memory_space<vmem>>, vector<1x8x16xf32>,
    %c8_128 = arith.constant 8 : index
    %c0_129 = arith.constant 0 : index
    %c0_130 = arith.constant 0 : index
    %139 = vector.load %arg1[%c8_128, %c0_129, %c0_130] : memref<15x8x32xf32, #tpu.memory_space<vmem>>, vector<1x8x32xf32>
    %140 = vector.shape_cast %139 : vector<1x8x32xf32> to vector<8x32xf32>
    %c0_131 = arith.constant 0 : index
    %c0_132 = arith.constant 0 : index
    %c0_133 = arith.constant 0 : index
    %141 = vector.load %arg2[%c0_131, %c0_132, %c0_133] : memref<2x32x16xf32, #tpu.memory_space<vmem>>, vector<1x32x16xf32>
    %142 = vector.shape_cast %141 : vector<1x32x16xf32> to vector<32x16xf32>
    %cst_134 = arith.constant dense<0.000000e+00> : vector<8x16xf32>
    %143 = tpu.matmul %140, %142, %cst_134 {dimension_numbers = #tpu.dot_dimension_numbers<[1], [0], [0], [1], [0, 0, 1, 1], [], []>} : vector<8x32xf32>, vector<32x16xf32>, vector<8x16xf32> -> vector<8x16xf32>
    %c9 = arith.constant 9 : index
    %c0_135 = arith.constant 0 : index
    %c0_136 = arith.constant 0 : index
    %144 = vector.load %arg1[%c9, %c0_135, %c0_136] : memref<15x8x32xf32, #tpu.memory_space<vmem>>, vector<1x8x32xf32>
    %145 = vector.shape_cast %144 : vector<1x8x32xf32> to vector<8x32xf32>
    %c1_137 = arith.constant 1 : index
    %c0_138 = arith.constant 0 : index
    %c0_139 = arith.constant 0 : index
    %146 = vector.load %arg2[%c1_137, %c0_138, %c0_139] : memref<2x32x16xf32, #tpu.memory_space<vmem>>, vector<1x32x16xf32>
    %147 = vector.shape_cast %146 : vector<1x32x16xf32> to vector<32x16xf32>
    %cst_140 = arith.constant dense<0.000000e+00> : vector<8x16xf32>
    %148 = tpu.matmul %145, %147, %cst_140 {dimension_numbers = #tpu.dot_dimension_numbers<[1], [0], [0], [1], [0, 0, 1, 1], [], []>} : vector<8x32xf32>, vector<32x16xf32>, vector<8x16xf32> -> vector<8x16xf32>
    %149 = arith.addf %143, %148 : vector<8x16xf32>
    %150 = vector.broadcast %0 : vector<1x16xf32> to vector<8x16xf32>
    %151 = arith.addf %149, %150 : vector<8x16xf32>
    %cst_141 = arith.constant 0.000000e+00 : f32
    %152 = vector.broadcast %cst_141 : f32 to vector<8x16xf32>
    %153 = arith.maximumf %151, %152 : vector<8x16xf32>
    %c9_142 = arith.constant 9 : index
    %c0_143 = arith.constant 0 : index
    %c0_144 = arith.constant 0 : index
    %154 = vector.load %arg1[%c9_142, %c0_143, %c0_144] : memref<15x8x32xf32, #tpu.memory_space<vmem>>, vector<1x8x32xf32>
    %155 = vector.shape_cast %154 : vector<1x8x32xf32> to vector<8x32xf32>
    %c0_145 = arith.constant 0 : index
    %c0_146 = arith.constant 0 : index
    %c0_147 = arith.constant 0 : index
    %156 = vector.load %arg2[%c0_145, %c0_146, %c0_147] : memref<2x32x16xf32, #tpu.memory_space<vmem>>, vector<1x32x16xf32>
    %157 = vector.shape_cast %156 : vector<1x32x16xf32> to vector<32x16xf32>
    %cst_148 = arith.constant dense<0.000000e+00> : vector<8x16xf32>
    %158 = tpu.matmul %155, %157, %cst_148 {dimension_numbers = #tpu.dot_dimension_numbers<[1], [0], [0], [1], [0, 0, 1, 1], [], []>} : vector<8x32xf32>, vector<32x16xf32>, vector<8x16xf32> -> vector<8x16xf32>
    %c10 = arith.constant 10 : index
    %c0_149 = arith.constant 0 : index
    %c0_150 = arith.constant 0 : index
    %159 = vector.load %arg1[%c10, %c0_149, %c0_150] : memref<15x8x32xf32, #tpu.memory_space<vmem>>, vector<1x8x32xf32>
    %160 = vector.shape_cast %159 : vector<1x8x32xf32> to vector<8x32xf32>
    %c1_151 = arith.constant 1 : index
    %c0_152 = arith.constant 0 : index
    %c0_153 = arith.constant 0 : index
    %161 = vector.load %arg2[%c1_151, %c0_152, %c0_153] : memref<2x32x16xf32, #tpu.memory_space<vmem>>, vector<1x32x16xf32>
    %162 = vector.shape_cast %161 : vector<1x32x16xf32> to vector<32x16xf32>
    %cst_154 = arith.constant dense<0.000000e+00> : vector<8x16xf32>
    %163 = tpu.matmul %160, %162, %cst_154 {dimension_numbers = #tpu.dot_dimension_numbers<[1], [0], [0], [1], [0, 0, 1, 1], [], []>} : vector<8x32xf32>, vector<32x16xf32>, vector<8x16xf32> -> vector<8x16xf32>
    %164 = arith.addf %158, %163 : vector<8x16xf32>
    %165 = vector.broadcast %0 : vector<1x16xf32> to vector<8x16xf32>
    %166 = arith.addf %164, %165 : vector<8x16xf32>
    %cst_155 = arith.constant 0.000000e+00 : f32
    %167 = vector.broadcast %cst_155 : f32 to vector<8x16xf32>
    %168 = arith.maximumf %166, %167 : vector<8x16xf32>
    %169 = arith.maximumf %153, %168 : vector<8x16xf32>
    %c4_156 = arith.constant 4 : index
    %c0_157 = arith.constant 0 : index
    %c0_158 = arith.constant 0 : index
    %170 = vector.load %arg15[%c4_156, %c0_157, %c0_158] : memref<7x8x16xf32, #tpu.memory_space<vmem>>, vector<1x8x16xf32>
    %171 = vector.shape_cast %170 : vector<1x8x16xf32> to vector<8x16xf32>
    %172 = vector.shape_cast %169 : vector<8x16xf32> to vector<1x8x16xf32>
    tpu.vector_store %arg15[%c4_156, %c0_157, %c0_158], %172 {strides = array<i32>} : memref<7x8x16xf32, #tpu.memory_space<vmem>>, vector<1x8x16xf32>,
    %c10_159 = arith.constant 10 : index
    %c0_160 = arith.constant 0 : index
    %c0_161 = arith.constant 0 : index
    %173 = vector.load %arg1[%c10_159, %c0_160, %c0_161] : memref<15x8x32xf32, #tpu.memory_space<vmem>>, vector<1x8x32xf32>
    %174 = vector.shape_cast %173 : vector<1x8x32xf32> to vector<8x32xf32>
    %c0_162 = arith.constant 0 : index
    %c0_163 = arith.constant 0 : index
    %c0_164 = arith.constant 0 : index
    %175 = vector.load %arg2[%c0_162, %c0_163, %c0_164] : memref<2x32x16xf32, #tpu.memory_space<vmem>>, vector<1x32x16xf32>
    %176 = vector.shape_cast %175 : vector<1x32x16xf32> to vector<32x16xf32>
    %cst_165 = arith.constant dense<0.000000e+00> : vector<8x16xf32>
    %177 = tpu.matmul %174, %176, %cst_165 {dimension_numbers = #tpu.dot_dimension_numbers<[1], [0], [0], [1], [0, 0, 1, 1], [], []>} : vector<8x32xf32>, vector<32x16xf32>, vector<8x16xf32> -> vector<8x16xf32>
    %c11 = arith.constant 11 : index
    %c0_166 = arith.constant 0 : index
    %c0_167 = arith.constant 0 : index
    %178 = vector.load %arg1[%c11, %c0_166, %c0_167] : memref<15x8x32xf32, #tpu.memory_space<vmem>>, vector<1x8x32xf32>
    %179 = vector.shape_cast %178 : vector<1x8x32xf32> to vector<8x32xf32>
    %c1_168 = arith.constant 1 : index
    %c0_169 = arith.constant 0 : index
    %c0_170 = arith.constant 0 : index
    %180 = vector.load %arg2[%c1_168, %c0_169, %c0_170] : memref<2x32x16xf32, #tpu.memory_space<vmem>>, vector<1x32x16xf32>
    %181 = vector.shape_cast %180 : vector<1x32x16xf32> to vector<32x16xf32>
    %cst_171 = arith.constant dense<0.000000e+00> : vector<8x16xf32>
    %182 = tpu.matmul %179, %181, %cst_171 {dimension_numbers = #tpu.dot_dimension_numbers<[1], [0], [0], [1], [0, 0, 1, 1], [], []>} : vector<8x32xf32>, vector<32x16xf32>, vector<8x16xf32> -> vector<8x16xf32>
    %183 = arith.addf %177, %182 : vector<8x16xf32>
    %184 = vector.broadcast %0 : vector<1x16xf32> to vector<8x16xf32>
    %185 = arith.addf %183, %184 : vector<8x16xf32>
    %cst_172 = arith.constant 0.000000e+00 : f32
    %186 = vector.broadcast %cst_172 : f32 to vector<8x16xf32>
    %187 = arith.maximumf %185, %186 : vector<8x16xf32>
    %c11_173 = arith.constant 11 : index
    %c0_174 = arith.constant 0 : index
    %c0_175 = arith.constant 0 : index
    %188 = vector.load %arg1[%c11_173, %c0_174, %c0_175] : memref<15x8x32xf32, #tpu.memory_space<vmem>>, vector<1x8x32xf32>
    %189 = vector.shape_cast %188 : vector<1x8x32xf32> to vector<8x32xf32>
    %c0_176 = arith.constant 0 : index
    %c0_177 = arith.constant 0 : index
    %c0_178 = arith.constant 0 : index
    %190 = vector.load %arg2[%c0_176, %c0_177, %c0_178] : memref<2x32x16xf32, #tpu.memory_space<vmem>>, vector<1x32x16xf32>
    %191 = vector.shape_cast %190 : vector<1x32x16xf32> to vector<32x16xf32>
    %cst_179 = arith.constant dense<0.000000e+00> : vector<8x16xf32>
    %192 = tpu.matmul %189, %191, %cst_179 {dimension_numbers = #tpu.dot_dimension_numbers<[1], [0], [0], [1], [0, 0, 1, 1], [], []>} : vector<8x32xf32>, vector<32x16xf32>, vector<8x16xf32> -> vector<8x16xf32>
    %c12 = arith.constant 12 : index
    %c0_180 = arith.constant 0 : index
    %c0_181 = arith.constant 0 : index
    %193 = vector.load %arg1[%c12, %c0_180, %c0_181] : memref<15x8x32xf32, #tpu.memory_space<vmem>>, vector<1x8x32xf32>
    %194 = vector.shape_cast %193 : vector<1x8x32xf32> to vector<8x32xf32>
    %c1_182 = arith.constant 1 : index
    %c0_183 = arith.constant 0 : index
    %c0_184 = arith.constant 0 : index
    %195 = vector.load %arg2[%c1_182, %c0_183, %c0_184] : memref<2x32x16xf32, #tpu.memory_space<vmem>>, vector<1x32x16xf32>
    %196 = vector.shape_cast %195 : vector<1x32x16xf32> to vector<32x16xf32>
    %cst_185 = arith.constant dense<0.000000e+00> : vector<8x16xf32>
    %197 = tpu.matmul %194, %196, %cst_185 {dimension_numbers = #tpu.dot_dimension_numbers<[1], [0], [0], [1], [0, 0, 1, 1], [], []>} : vector<8x32xf32>, vector<32x16xf32>, vector<8x16xf32> -> vector<8x16xf32>
    %198 = arith.addf %192, %197 : vector<8x16xf32>
    %199 = vector.broadcast %0 : vector<1x16xf32> to vector<8x16xf32>
    %200 = arith.addf %198, %199 : vector<8x16xf32>
    %cst_186 = arith.constant 0.000000e+00 : f32
    %201 = vector.broadcast %cst_186 : f32 to vector<8x16xf32>
    %202 = arith.maximumf %200, %201 : vector<8x16xf32>
    %203 = arith.maximumf %187, %202 : vector<8x16xf32>
    %c5_187 = arith.constant 5 : index
    %c0_188 = arith.constant 0 : index
    %c0_189 = arith.constant 0 : index
    %204 = vector.load %arg15[%c5_187, %c0_188, %c0_189] : memref<7x8x16xf32, #tpu.memory_space<vmem>>, vector<1x8x16xf32>
    %205 = vector.shape_cast %204 : vector<1x8x16xf32> to vector<8x16xf32>
    %206 = vector.shape_cast %203 : vector<8x16xf32> to vector<1x8x16xf32>
    tpu.vector_store %arg15[%c5_187, %c0_188, %c0_189], %206 {strides = array<i32>} : memref<7x8x16xf32, #tpu.memory_space<vmem>>, vector<1x8x16xf32>,
    %c12_190 = arith.constant 12 : index
    %c0_191 = arith.constant 0 : index
    %c0_192 = arith.constant 0 : index
    %207 = vector.load %arg1[%c12_190, %c0_191, %c0_192] : memref<15x8x32xf32, #tpu.memory_space<vmem>>, vector<1x8x32xf32>
    %208 = vector.shape_cast %207 : vector<1x8x32xf32> to vector<8x32xf32>
    %c0_193 = arith.constant 0 : index
    %c0_194 = arith.constant 0 : index
    %c0_195 = arith.constant 0 : index
    %209 = vector.load %arg2[%c0_193, %c0_194, %c0_195] : memref<2x32x16xf32, #tpu.memory_space<vmem>>, vector<1x32x16xf32>
    %210 = vector.shape_cast %209 : vector<1x32x16xf32> to vector<32x16xf32>
    %cst_196 = arith.constant dense<0.000000e+00> : vector<8x16xf32>
    %211 = tpu.matmul %208, %210, %cst_196 {dimension_numbers = #tpu.dot_dimension_numbers<[1], [0], [0], [1], [0, 0, 1, 1], [], []>} : vector<8x32xf32>, vector<32x16xf32>, vector<8x16xf32> -> vector<8x16xf32>
    %c13 = arith.constant 13 : index
    %c0_197 = arith.constant 0 : index
    %c0_198 = arith.constant 0 : index
    %212 = vector.load %arg1[%c13, %c0_197, %c0_198] : memref<15x8x32xf32, #tpu.memory_space<vmem>>, vector<1x8x32xf32>
    %213 = vector.shape_cast %212 : vector<1x8x32xf32> to vector<8x32xf32>
    %c1_199 = arith.constant 1 : index
    %c0_200 = arith.constant 0 : index
    %c0_201 = arith.constant 0 : index
    %214 = vector.load %arg2[%c1_199, %c0_200, %c0_201] : memref<2x32x16xf32, #tpu.memory_space<vmem>>, vector<1x32x16xf32>
    %215 = vector.shape_cast %214 : vector<1x32x16xf32> to vector<32x16xf32>
    %cst_202 = arith.constant dense<0.000000e+00> : vector<8x16xf32>
    %216 = tpu.matmul %213, %215, %cst_202 {dimension_numbers = #tpu.dot_dimension_numbers<[1], [0], [0], [1], [0, 0, 1, 1], [], []>} : vector<8x32xf32>, vector<32x16xf32>, vector<8x16xf32> -> vector<8x16xf32>
    %217 = arith.addf %211, %216 : vector<8x16xf32>
    %218 = vector.broadcast %0 : vector<1x16xf32> to vector<8x16xf32>
    %219 = arith.addf %217, %218 : vector<8x16xf32>
    %cst_203 = arith.constant 0.000000e+00 : f32
    %220 = vector.broadcast %cst_203 : f32 to vector<8x16xf32>
    %221 = arith.maximumf %219, %220 : vector<8x16xf32>
    %c13_204 = arith.constant 13 : index
    %c0_205 = arith.constant 0 : index
    %c0_206 = arith.constant 0 : index
    %222 = vector.load %arg1[%c13_204, %c0_205, %c0_206] : memref<15x8x32xf32, #tpu.memory_space<vmem>>, vector<1x8x32xf32>
    %223 = vector.shape_cast %222 : vector<1x8x32xf32> to vector<8x32xf32>
    %c0_207 = arith.constant 0 : index
    %c0_208 = arith.constant 0 : index
    %c0_209 = arith.constant 0 : index
    %224 = vector.load %arg2[%c0_207, %c0_208, %c0_209] : memref<2x32x16xf32, #tpu.memory_space<vmem>>, vector<1x32x16xf32>
    %225 = vector.shape_cast %224 : vector<1x32x16xf32> to vector<32x16xf32>
    %cst_210 = arith.constant dense<0.000000e+00> : vector<8x16xf32>
    %226 = tpu.matmul %223, %225, %cst_210 {dimension_numbers = #tpu.dot_dimension_numbers<[1], [0], [0], [1], [0, 0, 1, 1], [], []>} : vector<8x32xf32>, vector<32x16xf32>, vector<8x16xf32> -> vector<8x16xf32>
    %c14 = arith.constant 14 : index
    %c0_211 = arith.constant 0 : index
    %c0_212 = arith.constant 0 : index
    %227 = vector.load %arg1[%c14, %c0_211, %c0_212] : memref<15x8x32xf32, #tpu.memory_space<vmem>>, vector<1x8x32xf32>
    %228 = vector.shape_cast %227 : vector<1x8x32xf32> to vector<8x32xf32>
    %c1_213 = arith.constant 1 : index
    %c0_214 = arith.constant 0 : index
    %c0_215 = arith.constant 0 : index
    %229 = vector.load %arg2[%c1_213, %c0_214, %c0_215] : memref<2x32x16xf32, #tpu.memory_space<vmem>>, vector<1x32x16xf32>
    %230 = vector.shape_cast %229 : vector<1x32x16xf32> to vector<32x16xf32>
    %cst_216 = arith.constant dense<0.000000e+00> : vector<8x16xf32>
    %231 = tpu.matmul %228, %230, %cst_216 {dimension_numbers = #tpu.dot_dimension_numbers<[1], [0], [0], [1], [0, 0, 1, 1], [], []>} : vector<8x32xf32>, vector<32x16xf32>, vector<8x16xf32> -> vector<8x16xf32>
    %232 = arith.addf %226, %231 : vector<8x16xf32>
    %233 = vector.broadcast %0 : vector<1x16xf32> to vector<8x16xf32>
    %234 = arith.addf %232, %233 : vector<8x16xf32>
    %cst_217 = arith.constant 0.000000e+00 : f32
    %235 = vector.broadcast %cst_217 : f32 to vector<8x16xf32>
    %236 = arith.maximumf %234, %235 : vector<8x16xf32>
    %237 = arith.maximumf %221, %236 : vector<8x16xf32>
    %c6_218 = arith.constant 6 : index
    %c0_219 = arith.constant 0 : index
    %c0_220 = arith.constant 0 : index
    %238 = vector.load %arg15[%c6_218, %c0_219, %c0_220] : memref<7x8x16xf32, #tpu.memory_space<vmem>>, vector<1x8x16xf32>
    %239 = vector.shape_cast %238 : vector<1x8x16xf32> to vector<8x16xf32>
    %240 = vector.shape_cast %237 : vector<8x16xf32> to vector<1x8x16xf32>
    tpu.vector_store %arg15[%c6_218, %c0_219, %c0_220], %240 {strides = array<i32>} : memref<7x8x16xf32, #tpu.memory_space<vmem>>, vector<1x8x16xf32>,
    %c0_221 = arith.constant 0 : index
    %c0_222 = arith.constant 0 : index
    %c0_223 = arith.constant 0 : index
    %241 = vector.load %arg15[%c0_221, %c0_222, %c0_223] : memref<7x8x16xf32, #tpu.memory_space<vmem>>, vector<1x8x16xf32>
    %242 = vector.shape_cast %241 : vector<1x8x16xf32> to vector<8x16xf32>
    %c0_224 = arith.constant 0 : index
    %c0_225 = arith.constant 0 : index
    %c0_226 = arith.constant 0 : index
    %243 = vector.load %arg4[%c0_224, %c0_225, %c0_226] : memref<2x16x16xf32, #tpu.memory_space<vmem>>, vector<1x16x16xf32>
    %244 = vector.shape_cast %243 : vector<1x16x16xf32> to vector<16x16xf32>
    %cst_227 = arith.constant dense<0.000000e+00> : vector<8x16xf32>
    %245 = tpu.matmul %242, %244, %cst_227 {dimension_numbers = #tpu.dot_dimension_numbers<[1], [0], [0], [1], [0, 0, 1, 1], [], []>} : vector<8x16xf32>, vector<16x16xf32>, vector<8x16xf32> -> vector<8x16xf32>
    %c1_228 = arith.constant 1 : index
    %c0_229 = arith.constant 0 : index
    %c0_230 = arith.constant 0 : index
    %246 = vector.load %arg15[%c1_228, %c0_229, %c0_230] : memref<7x8x16xf32, #tpu.memory_space<vmem>>, vector<1x8x16xf32>
    %247 = vector.shape_cast %246 : vector<1x8x16xf32> to vector<8x16xf32>
    %c1_231 = arith.constant 1 : index
    %c0_232 = arith.constant 0 : index
    %c0_233 = arith.constant 0 : index
    %248 = vector.load %arg4[%c1_231, %c0_232, %c0_233] : memref<2x16x16xf32, #tpu.memory_space<vmem>>, vector<1x16x16xf32>
    %249 = vector.shape_cast %248 : vector<1x16x16xf32> to vector<16x16xf32>
    %cst_234 = arith.constant dense<0.000000e+00> : vector<8x16xf32>
    %250 = tpu.matmul %247, %249, %cst_234 {dimension_numbers = #tpu.dot_dimension_numbers<[1], [0], [0], [1], [0, 0, 1, 1], [], []>} : vector<8x16xf32>, vector<16x16xf32>, vector<8x16xf32> -> vector<8x16xf32>
    %251 = arith.addf %245, %250 : vector<8x16xf32>
    %252 = vector.broadcast %1 : vector<1x16xf32> to vector<8x16xf32>
    %253 = arith.addf %251, %252 : vector<8x16xf32>
    %cst_235 = arith.constant 0.000000e+00 : f32
    %254 = vector.broadcast %cst_235 : f32 to vector<8x16xf32>
    %255 = arith.maximumf %253, %254 : vector<8x16xf32>
    %c1_236 = arith.constant 1 : index
    %c0_237 = arith.constant 0 : index
    %c0_238 = arith.constant 0 : index
    %256 = vector.load %arg15[%c1_236, %c0_237, %c0_238] : memref<7x8x16xf32, #tpu.memory_space<vmem>>, vector<1x8x16xf32>
    %257 = vector.shape_cast %256 : vector<1x8x16xf32> to vector<8x16xf32>
    %c0_239 = arith.constant 0 : index
    %c0_240 = arith.constant 0 : index
    %c0_241 = arith.constant 0 : index
    %258 = vector.load %arg4[%c0_239, %c0_240, %c0_241] : memref<2x16x16xf32, #tpu.memory_space<vmem>>, vector<1x16x16xf32>
    %259 = vector.shape_cast %258 : vector<1x16x16xf32> to vector<16x16xf32>
    %cst_242 = arith.constant dense<0.000000e+00> : vector<8x16xf32>
    %260 = tpu.matmul %257, %259, %cst_242 {dimension_numbers = #tpu.dot_dimension_numbers<[1], [0], [0], [1], [0, 0, 1, 1], [], []>} : vector<8x16xf32>, vector<16x16xf32>, vector<8x16xf32> -> vector<8x16xf32>
    %c2_243 = arith.constant 2 : index
    %c0_244 = arith.constant 0 : index
    %c0_245 = arith.constant 0 : index
    %261 = vector.load %arg15[%c2_243, %c0_244, %c0_245] : memref<7x8x16xf32, #tpu.memory_space<vmem>>, vector<1x8x16xf32>
    %262 = vector.shape_cast %261 : vector<1x8x16xf32> to vector<8x16xf32>
    %c1_246 = arith.constant 1 : index
    %c0_247 = arith.constant 0 : index
    %c0_248 = arith.constant 0 : index
    %263 = vector.load %arg4[%c1_246, %c0_247, %c0_248] : memref<2x16x16xf32, #tpu.memory_space<vmem>>, vector<1x16x16xf32>
    %264 = vector.shape_cast %263 : vector<1x16x16xf32> to vector<16x16xf32>
    %cst_249 = arith.constant dense<0.000000e+00> : vector<8x16xf32>
    %265 = tpu.matmul %262, %264, %cst_249 {dimension_numbers = #tpu.dot_dimension_numbers<[1], [0], [0], [1], [0, 0, 1, 1], [], []>} : vector<8x16xf32>, vector<16x16xf32>, vector<8x16xf32> -> vector<8x16xf32>
    %266 = arith.addf %260, %265 : vector<8x16xf32>
    %267 = vector.broadcast %1 : vector<1x16xf32> to vector<8x16xf32>
    %268 = arith.addf %266, %267 : vector<8x16xf32>
    %cst_250 = arith.constant 0.000000e+00 : f32
    %269 = vector.broadcast %cst_250 : f32 to vector<8x16xf32>
    %270 = arith.maximumf %268, %269 : vector<8x16xf32>
    %271 = arith.maximumf %255, %270 : vector<8x16xf32>
    %c0_251 = arith.constant 0 : index
    %c0_252 = arith.constant 0 : index
    %c0_253 = arith.constant 0 : index
    %272 = vector.load %arg16[%c0_251, %c0_252, %c0_253] : memref<3x8x16xf32, #tpu.memory_space<vmem>>, vector<1x8x16xf32>
    %273 = vector.shape_cast %272 : vector<1x8x16xf32> to vector<8x16xf32>
    %274 = vector.shape_cast %271 : vector<8x16xf32> to vector<1x8x16xf32>
    tpu.vector_store %arg16[%c0_251, %c0_252, %c0_253], %274 {strides = array<i32>} : memref<3x8x16xf32, #tpu.memory_space<vmem>>, vector<1x8x16xf32>,
    %c2_254 = arith.constant 2 : index
    %c0_255 = arith.constant 0 : index
    %c0_256 = arith.constant 0 : index
    %275 = vector.load %arg15[%c2_254, %c0_255, %c0_256] : memref<7x8x16xf32, #tpu.memory_space<vmem>>, vector<1x8x16xf32>
    %276 = vector.shape_cast %275 : vector<1x8x16xf32> to vector<8x16xf32>
    %c0_257 = arith.constant 0 : index
    %c0_258 = arith.constant 0 : index
    %c0_259 = arith.constant 0 : index
    %277 = vector.load %arg4[%c0_257, %c0_258, %c0_259] : memref<2x16x16xf32, #tpu.memory_space<vmem>>, vector<1x16x16xf32>
    %278 = vector.shape_cast %277 : vector<1x16x16xf32> to vector<16x16xf32>
    %cst_260 = arith.constant dense<0.000000e+00> : vector<8x16xf32>
    %279 = tpu.matmul %276, %278, %cst_260 {dimension_numbers = #tpu.dot_dimension_numbers<[1], [0], [0], [1], [0, 0, 1, 1], [], []>} : vector<8x16xf32>, vector<16x16xf32>, vector<8x16xf32> -> vector<8x16xf32>
    %c3_261 = arith.constant 3 : index
    %c0_262 = arith.constant 0 : index
    %c0_263 = arith.constant 0 : index
    %280 = vector.load %arg15[%c3_261, %c0_262, %c0_263] : memref<7x8x16xf32, #tpu.memory_space<vmem>>, vector<1x8x16xf32>
    %281 = vector.shape_cast %280 : vector<1x8x16xf32> to vector<8x16xf32>
    %c1_264 = arith.constant 1 : index
    %c0_265 = arith.constant 0 : index
    %c0_266 = arith.constant 0 : index
    %282 = vector.load %arg4[%c1_264, %c0_265, %c0_266] : memref<2x16x16xf32, #tpu.memory_space<vmem>>, vector<1x16x16xf32>
    %283 = vector.shape_cast %282 : vector<1x16x16xf32> to vector<16x16xf32>
    %cst_267 = arith.constant dense<0.000000e+00> : vector<8x16xf32>
    %284 = tpu.matmul %281, %283, %cst_267 {dimension_numbers = #tpu.dot_dimension_numbers<[1], [0], [0], [1], [0, 0, 1, 1], [], []>} : vector<8x16xf32>, vector<16x16xf32>, vector<8x16xf32> -> vector<8x16xf32>
    %285 = arith.addf %279, %284 : vector<8x16xf32>
    %286 = vector.broadcast %1 : vector<1x16xf32> to vector<8x16xf32>
    %287 = arith.addf %285, %286 : vector<8x16xf32>
    %cst_268 = arith.constant 0.000000e+00 : f32
    %288 = vector.broadcast %cst_268 : f32 to vector<8x16xf32>
    %289 = arith.maximumf %287, %288 : vector<8x16xf32>
    %c3_269 = arith.constant 3 : index
    %c0_270 = arith.constant 0 : index
    %c0_271 = arith.constant 0 : index
    %290 = vector.load %arg15[%c3_269, %c0_270, %c0_271] : memref<7x8x16xf32, #tpu.memory_space<vmem>>, vector<1x8x16xf32>
    %291 = vector.shape_cast %290 : vector<1x8x16xf32> to vector<8x16xf32>
    %c0_272 = arith.constant 0 : index
    %c0_273 = arith.constant 0 : index
    %c0_274 = arith.constant 0 : index
    %292 = vector.load %arg4[%c0_272, %c0_273, %c0_274] : memref<2x16x16xf32, #tpu.memory_space<vmem>>, vector<1x16x16xf32>
    %293 = vector.shape_cast %292 : vector<1x16x16xf32> to vector<16x16xf32>
    %cst_275 = arith.constant dense<0.000000e+00> : vector<8x16xf32>
    %294 = tpu.matmul %291, %293, %cst_275 {dimension_numbers = #tpu.dot_dimension_numbers<[1], [0], [0], [1], [0, 0, 1, 1], [], []>} : vector<8x16xf32>, vector<16x16xf32>, vector<8x16xf32> -> vector<8x16xf32>
    %c4_276 = arith.constant 4 : index
    %c0_277 = arith.constant 0 : index
    %c0_278 = arith.constant 0 : index
    %295 = vector.load %arg15[%c4_276, %c0_277, %c0_278] : memref<7x8x16xf32, #tpu.memory_space<vmem>>, vector<1x8x16xf32>
    %296 = vector.shape_cast %295 : vector<1x8x16xf32> to vector<8x16xf32>
    %c1_279 = arith.constant 1 : index
    %c0_280 = arith.constant 0 : index
    %c0_281 = arith.constant 0 : index
    %297 = vector.load %arg4[%c1_279, %c0_280, %c0_281] : memref<2x16x16xf32, #tpu.memory_space<vmem>>, vector<1x16x16xf32>
    %298 = vector.shape_cast %297 : vector<1x16x16xf32> to vector<16x16xf32>
    %cst_282 = arith.constant dense<0.000000e+00> : vector<8x16xf32>
    %299 = tpu.matmul %296, %298, %cst_282 {dimension_numbers = #tpu.dot_dimension_numbers<[1], [0], [0], [1], [0, 0, 1, 1], [], []>} : vector<8x16xf32>, vector<16x16xf32>, vector<8x16xf32> -> vector<8x16xf32>
    %300 = arith.addf %294, %299 : vector<8x16xf32>
    %301 = vector.broadcast %1 : vector<1x16xf32> to vector<8x16xf32>
    %302 = arith.addf %300, %301 : vector<8x16xf32>
    %cst_283 = arith.constant 0.000000e+00 : f32
    %303 = vector.broadcast %cst_283 : f32 to vector<8x16xf32>
    %304 = arith.maximumf %302, %303 : vector<8x16xf32>
    %305 = arith.maximumf %289, %304 : vector<8x16xf32>
    %c1_284 = arith.constant 1 : index
    %c0_285 = arith.constant 0 : index
    %c0_286 = arith.constant 0 : index
    %306 = vector.load %arg16[%c1_284, %c0_285, %c0_286] : memref<3x8x16xf32, #tpu.memory_space<vmem>>, vector<1x8x16xf32>
    %307 = vector.shape_cast %306 : vector<1x8x16xf32> to vector<8x16xf32>
    %308 = vector.shape_cast %305 : vector<8x16xf32> to vector<1x8x16xf32>
    tpu.vector_store %arg16[%c1_284, %c0_285, %c0_286], %308 {strides = array<i32>} : memref<3x8x16xf32, #tpu.memory_space<vmem>>, vector<1x8x16xf32>,
    %c4_287 = arith.constant 4 : index
    %c0_288 = arith.constant 0 : index
    %c0_289 = arith.constant 0 : index
    %309 = vector.load %arg15[%c4_287, %c0_288, %c0_289] : memref<7x8x16xf32, #tpu.memory_space<vmem>>, vector<1x8x16xf32>
    %310 = vector.shape_cast %309 : vector<1x8x16xf32> to vector<8x16xf32>
    %c0_290 = arith.constant 0 : index
    %c0_291 = arith.constant 0 : index
    %c0_292 = arith.constant 0 : index
    %311 = vector.load %arg4[%c0_290, %c0_291, %c0_292] : memref<2x16x16xf32, #tpu.memory_space<vmem>>, vector<1x16x16xf32>
    %312 = vector.shape_cast %311 : vector<1x16x16xf32> to vector<16x16xf32>
    %cst_293 = arith.constant dense<0.000000e+00> : vector<8x16xf32>
    %313 = tpu.matmul %310, %312, %cst_293 {dimension_numbers = #tpu.dot_dimension_numbers<[1], [0], [0], [1], [0, 0, 1, 1], [], []>} : vector<8x16xf32>, vector<16x16xf32>, vector<8x16xf32> -> vector<8x16xf32>
    %c5_294 = arith.constant 5 : index
    %c0_295 = arith.constant 0 : index
    %c0_296 = arith.constant 0 : index
    %314 = vector.load %arg15[%c5_294, %c0_295, %c0_296] : memref<7x8x16xf32, #tpu.memory_space<vmem>>, vector<1x8x16xf32>
    %315 = vector.shape_cast %314 : vector<1x8x16xf32> to vector<8x16xf32>
    %c1_297 = arith.constant 1 : index
    %c0_298 = arith.constant 0 : index
    %c0_299 = arith.constant 0 : index
    %316 = vector.load %arg4[%c1_297, %c0_298, %c0_299] : memref<2x16x16xf32, #tpu.memory_space<vmem>>, vector<1x16x16xf32>
    %317 = vector.shape_cast %316 : vector<1x16x16xf32> to vector<16x16xf32>
    %cst_300 = arith.constant dense<0.000000e+00> : vector<8x16xf32>
    %318 = tpu.matmul %315, %317, %cst_300 {dimension_numbers = #tpu.dot_dimension_numbers<[1], [0], [0], [1], [0, 0, 1, 1], [], []>} : vector<8x16xf32>, vector<16x16xf32>, vector<8x16xf32> -> vector<8x16xf32>
    %319 = arith.addf %313, %318 : vector<8x16xf32>
    %320 = vector.broadcast %1 : vector<1x16xf32> to vector<8x16xf32>
    %321 = arith.addf %319, %320 : vector<8x16xf32>
    %cst_301 = arith.constant 0.000000e+00 : f32
    %322 = vector.broadcast %cst_301 : f32 to vector<8x16xf32>
    %323 = arith.maximumf %321, %322 : vector<8x16xf32>
    %c5_302 = arith.constant 5 : index
    %c0_303 = arith.constant 0 : index
    %c0_304 = arith.constant 0 : index
    %324 = vector.load %arg15[%c5_302, %c0_303, %c0_304] : memref<7x8x16xf32, #tpu.memory_space<vmem>>, vector<1x8x16xf32>
    %325 = vector.shape_cast %324 : vector<1x8x16xf32> to vector<8x16xf32>
    %c0_305 = arith.constant 0 : index
    %c0_306 = arith.constant 0 : index
    %c0_307 = arith.constant 0 : index
    %326 = vector.load %arg4[%c0_305, %c0_306, %c0_307] : memref<2x16x16xf32, #tpu.memory_space<vmem>>, vector<1x16x16xf32>
    %327 = vector.shape_cast %326 : vector<1x16x16xf32> to vector<16x16xf32>
    %cst_308 = arith.constant dense<0.000000e+00> : vector<8x16xf32>
    %328 = tpu.matmul %325, %327, %cst_308 {dimension_numbers = #tpu.dot_dimension_numbers<[1], [0], [0], [1], [0, 0, 1, 1], [], []>} : vector<8x16xf32>, vector<16x16xf32>, vector<8x16xf32> -> vector<8x16xf32>
    %c6_309 = arith.constant 6 : index
    %c0_310 = arith.constant 0 : index
    %c0_311 = arith.constant 0 : index
    %329 = vector.load %arg15[%c6_309, %c0_310, %c0_311] : memref<7x8x16xf32, #tpu.memory_space<vmem>>, vector<1x8x16xf32>
    %330 = vector.shape_cast %329 : vector<1x8x16xf32> to vector<8x16xf32>
    %c1_312 = arith.constant 1 : index
    %c0_313 = arith.constant 0 : index
    %c0_314 = arith.constant 0 : index
    %331 = vector.load %arg4[%c1_312, %c0_313, %c0_314] : memref<2x16x16xf32, #tpu.memory_space<vmem>>, vector<1x16x16xf32>
    %332 = vector.shape_cast %331 : vector<1x16x16xf32> to vector<16x16xf32>
    %cst_315 = arith.constant dense<0.000000e+00> : vector<8x16xf32>
    %333 = tpu.matmul %330, %332, %cst_315 {dimension_numbers = #tpu.dot_dimension_numbers<[1], [0], [0], [1], [0, 0, 1, 1], [], []>} : vector<8x16xf32>, vector<16x16xf32>, vector<8x16xf32> -> vector<8x16xf32>
    %334 = arith.addf %328, %333 : vector<8x16xf32>
    %335 = vector.broadcast %1 : vector<1x16xf32> to vector<8x16xf32>
    %336 = arith.addf %334, %335 : vector<8x16xf32>
    %cst_316 = arith.constant 0.000000e+00 : f32
    %337 = vector.broadcast %cst_316 : f32 to vector<8x16xf32>
    %338 = arith.maximumf %336, %337 : vector<8x16xf32>
    %339 = arith.maximumf %323, %338 : vector<8x16xf32>
    %c2_317 = arith.constant 2 : index
    %c0_318 = arith.constant 0 : index
    %c0_319 = arith.constant 0 : index
    %340 = vector.load %arg16[%c2_317, %c0_318, %c0_319] : memref<3x8x16xf32, #tpu.memory_space<vmem>>, vector<1x8x16xf32>
    %341 = vector.shape_cast %340 : vector<1x8x16xf32> to vector<8x16xf32>
    %342 = vector.shape_cast %339 : vector<8x16xf32> to vector<1x8x16xf32>
    tpu.vector_store %arg16[%c2_317, %c0_318, %c0_319], %342 {strides = array<i32>} : memref<3x8x16xf32, #tpu.memory_space<vmem>>, vector<1x8x16xf32>,
    %c0_320 = arith.constant 0 : index
    %c0_321 = arith.constant 0 : index
    %c0_322 = arith.constant 0 : index
    %343 = vector.load %arg16[%c0_320, %c0_321, %c0_322] : memref<3x8x16xf32, #tpu.memory_space<vmem>>, vector<1x8x16xf32>
    %344 = vector.shape_cast %343 : vector<1x8x16xf32> to vector<8x16xf32>
    %c0_323 = arith.constant 0 : index
    %c0_324 = arith.constant 0 : index
    %c0_325 = arith.constant 0 : index
    %345 = vector.load %arg6[%c0_323, %c0_324, %c0_325] : memref<2x16x32xf32, #tpu.memory_space<vmem>>, vector<1x16x32xf32>
    %346 = vector.shape_cast %345 : vector<1x16x32xf32> to vector<16x32xf32>
    %cst_326 = arith.constant dense<0.000000e+00> : vector<8x32xf32>
    %347 = tpu.matmul %344, %346, %cst_326 {dimension_numbers = #tpu.dot_dimension_numbers<[1], [0], [0], [1], [0, 0, 1, 1], [], []>} : vector<8x16xf32>, vector<16x32xf32>, vector<8x32xf32> -> vector<8x32xf32>
    %c1_327 = arith.constant 1 : index
    %c0_328 = arith.constant 0 : index
    %c0_329 = arith.constant 0 : index
    %348 = vector.load %arg16[%c1_327, %c0_328, %c0_329] : memref<3x8x16xf32, #tpu.memory_space<vmem>>, vector<1x8x16xf32>
    %349 = vector.shape_cast %348 : vector<1x8x16xf32> to vector<8x16xf32>
    %c1_330 = arith.constant 1 : index
    %c0_331 = arith.constant 0 : index
    %c0_332 = arith.constant 0 : index
    %350 = vector.load %arg6[%c1_330, %c0_331, %c0_332] : memref<2x16x32xf32, #tpu.memory_space<vmem>>, vector<1x16x32xf32>
    %351 = vector.shape_cast %350 : vector<1x16x32xf32> to vector<16x32xf32>
    %cst_333 = arith.constant dense<0.000000e+00> : vector<8x32xf32>
    %352 = tpu.matmul %349, %351, %cst_333 {dimension_numbers = #tpu.dot_dimension_numbers<[1], [0], [0], [1], [0, 0, 1, 1], [], []>} : vector<8x16xf32>, vector<16x32xf32>, vector<8x32xf32> -> vector<8x32xf32>
    %353 = arith.addf %347, %352 : vector<8x32xf32>
    %354 = vector.broadcast %2 : vector<1x32xf32> to vector<8x32xf32>
    %355 = arith.addf %353, %354 : vector<8x32xf32>
    %cst_334 = arith.constant 0.000000e+00 : f32
    %356 = vector.broadcast %cst_334 : f32 to vector<8x32xf32>
    %357 = arith.maximumf %355, %356 : vector<8x32xf32>
    %c1_335 = arith.constant 1 : index
    %c0_336 = arith.constant 0 : index
    %c0_337 = arith.constant 0 : index
    %358 = vector.load %arg16[%c1_335, %c0_336, %c0_337] : memref<3x8x16xf32, #tpu.memory_space<vmem>>, vector<1x8x16xf32>
    %359 = vector.shape_cast %358 : vector<1x8x16xf32> to vector<8x16xf32>
    %c0_338 = arith.constant 0 : index
    %c0_339 = arith.constant 0 : index
    %c0_340 = arith.constant 0 : index
    %360 = vector.load %arg6[%c0_338, %c0_339, %c0_340] : memref<2x16x32xf32, #tpu.memory_space<vmem>>, vector<1x16x32xf32>
    %361 = vector.shape_cast %360 : vector<1x16x32xf32> to vector<16x32xf32>
    %cst_341 = arith.constant dense<0.000000e+00> : vector<8x32xf32>
    %362 = tpu.matmul %359, %361, %cst_341 {dimension_numbers = #tpu.dot_dimension_numbers<[1], [0], [0], [1], [0, 0, 1, 1], [], []>} : vector<8x16xf32>, vector<16x32xf32>, vector<8x32xf32> -> vector<8x32xf32>
    %c2_342 = arith.constant 2 : index
    %c0_343 = arith.constant 0 : index
    %c0_344 = arith.constant 0 : index
    %363 = vector.load %arg16[%c2_342, %c0_343, %c0_344] : memref<3x8x16xf32, #tpu.memory_space<vmem>>, vector<1x8x16xf32>
    %364 = vector.shape_cast %363 : vector<1x8x16xf32> to vector<8x16xf32>
    %c1_345 = arith.constant 1 : index
    %c0_346 = arith.constant 0 : index
    %c0_347 = arith.constant 0 : index
    %365 = vector.load %arg6[%c1_345, %c0_346, %c0_347] : memref<2x16x32xf32, #tpu.memory_space<vmem>>, vector<1x16x32xf32>
    %366 = vector.shape_cast %365 : vector<1x16x32xf32> to vector<16x32xf32>
    %cst_348 = arith.constant dense<0.000000e+00> : vector<8x32xf32>
    %367 = tpu.matmul %364, %366, %cst_348 {dimension_numbers = #tpu.dot_dimension_numbers<[1], [0], [0], [1], [0, 0, 1, 1], [], []>} : vector<8x16xf32>, vector<16x32xf32>, vector<8x32xf32> -> vector<8x32xf32>
    %368 = arith.addf %362, %367 : vector<8x32xf32>
    %369 = vector.broadcast %2 : vector<1x32xf32> to vector<8x32xf32>
    %370 = arith.addf %368, %369 : vector<8x32xf32>
    %cst_349 = arith.constant 0.000000e+00 : f32
    %371 = vector.broadcast %cst_349 : f32 to vector<8x32xf32>
    %372 = arith.maximumf %370, %371 : vector<8x32xf32>
    %373 = arith.maximumf %357, %372 : vector<8x32xf32>
    %c0_350 = arith.constant 0 : index
    %c0_351 = arith.constant 0 : index
    %374 = vector.load %arg8[%c0_350, %c0_351] : memref<32x32xf32, #tpu.memory_space<vmem>>, vector<32x32xf32>
    %cst_352 = arith.constant dense<0.000000e+00> : vector<8x32xf32>
    %375 = tpu.matmul %373, %374, %cst_352 {dimension_numbers = #tpu.dot_dimension_numbers<[1], [0], [0], [1], [0, 0, 1, 1], [], []>} : vector<8x32xf32>, vector<32x32xf32>, vector<8x32xf32> -> vector<8x32xf32>
    %c0_353 = arith.constant 0 : index
    %c0_354 = arith.constant 0 : index
    %376 = vector.load %arg9[%c0_353, %c0_354] : memref<1x32xf32, #tpu.memory_space<vmem>>, vector<1x32xf32>
    %377 = vector.broadcast %376 : vector<1x32xf32> to vector<8x32xf32>
    %378 = arith.addf %375, %377 : vector<8x32xf32>
    %cst_355 = arith.constant -3.000000e+00 : f32
    %cst_356 = arith.constant 3.000000e+00 : f32
    %379 = vector.broadcast %cst_355 : f32 to vector<8x32xf32>
    %380 = arith.maximumf %379, %378 : vector<8x32xf32>
    %381 = vector.broadcast %cst_356 : f32 to vector<8x32xf32>
    %382 = arith.minimumf %381, %380 : vector<8x32xf32>
    %c0_357 = arith.constant 0 : index
    %c0_358 = arith.constant 0 : index
    %383 = vector.load %arg10[%c0_357, %c0_358] : memref<32x32xf32, #tpu.memory_space<vmem>>, vector<32x32xf32>
    %cst_359 = arith.constant dense<0.000000e+00> : vector<8x32xf32>
    %384 = tpu.matmul %382, %383, %cst_359 {dimension_numbers = #tpu.dot_dimension_numbers<[1], [0], [0], [1], [0, 0, 1, 1], [], []>} : vector<8x32xf32>, vector<32x32xf32>, vector<8x32xf32> -> vector<8x32xf32>
    %c0_360 = arith.constant 0 : index
    %c0_361 = arith.constant 0 : index
    %385 = vector.load %arg11[%c0_360, %c0_361] : memref<1x32xf32, #tpu.memory_space<vmem>>, vector<1x32xf32>
    %386 = vector.broadcast %385 : vector<1x32xf32> to vector<8x32xf32>
    %387 = arith.addf %384, %386 : vector<8x32xf32>
    %cst_362 = arith.constant 0.000000e+00 : f32
    %388 = vector.broadcast %cst_362 : f32 to vector<8x32xf32>
    %389 = arith.maximumf %387, %388 : vector<8x32xf32>
    %c0_363 = arith.constant 0 : index
    %c0_364 = arith.constant 0 : index
    %390 = vector.load %arg12[%c0_363, %c0_364] : memref<32x32xf32, #tpu.memory_space<vmem>>, vector<32x32xf32>
    %cst_365 = arith.constant dense<0.000000e+00> : vector<8x32xf32>
    %391 = tpu.matmul %382, %390, %cst_365 {dimension_numbers = #tpu.dot_dimension_numbers<[1], [0], [0], [1], [0, 0, 1, 1], [], []>} : vector<8x32xf32>, vector<32x32xf32>, vector<8x32xf32> -> vector<8x32xf32>
    %c0_366 = arith.constant 0 : index
    %c0_367 = arith.constant 0 : index
    %392 = vector.load %arg13[%c0_366, %c0_367] : memref<1x32xf32, #tpu.memory_space<vmem>>, vector<1x32xf32>
    %393 = vector.broadcast %392 : vector<1x32xf32> to vector<8x32xf32>
    %394 = arith.addf %391, %393 : vector<8x32xf32>
    %cst_368 = arith.constant -3.000000e+00 : f32
    %cst_369 = arith.constant 3.000000e+00 : f32
    %395 = vector.broadcast %cst_368 : f32 to vector<8x32xf32>
    %396 = arith.maximumf %395, %394 : vector<8x32xf32>
    %397 = vector.broadcast %cst_369 : f32 to vector<8x32xf32>
    %398 = arith.minimumf %397, %396 : vector<8x32xf32>
    %399 = arith.mulf %389, %398 : vector<8x32xf32>
    %cst_370 = arith.constant 1.000000e+00 : f32
    %400 = vector.broadcast %cst_370 : f32 to vector<8x32xf32>
    %401 = arith.subf %400, %389 : vector<8x32xf32>
    %402 = arith.mulf %401, %382 : vector<8x32xf32>
    %403 = arith.addf %399, %402 : vector<8x32xf32>
    %c0_371 = arith.constant 0 : index
    %c0_372 = arith.constant 0 : index
    %404 = vector.load %arg14[%c0_371, %c0_372] : memref<8x32xf32, #tpu.memory_space<vmem>>, vector<8x32xf32>
    tpu.vector_store %arg14[%c0_371, %c0_372], %403 {strides = array<i32>} : memref<8x32xf32, #tpu.memory_space<vmem>>, vector<8x32xf32>,
    return
  }
  func.func @transform_0(%arg0: i32) -> (i32, i32, i32) {
    %c0_i32 = arith.constant 0 : i32
    %c0_i32_0 = arith.constant 0 : i32
    %c0_i32_1 = arith.constant 0 : i32
    return %c0_i32, %arg0, %c0_i32_0 : i32, i32, i32
  }
  func.func @transform_1(%arg0: i32) -> (i32, i32, i32) {
    %c0_i32 = arith.constant 0 : i32
    %c0_i32_0 = arith.constant 0 : i32
    %c0_i32_1 = arith.constant 0 : i32
    %c0_i32_2 = arith.constant 0 : i32
    return %c0_i32, %c0_i32_0, %c0_i32_1 : i32, i32, i32
  }
  func.func @transform_2(%arg0: i32) -> (i32, i32) {
    %c0_i32 = arith.constant 0 : i32
    %c0_i32_0 = arith.constant 0 : i32
    %c0_i32_1 = arith.constant 0 : i32
    return %c0_i32, %c0_i32_0 : i32, i32
  }
  func.func @transform_3(%arg0: i32) -> (i32, i32, i32) {
    %c0_i32 = arith.constant 0 : i32
    %c0_i32_0 = arith.constant 0 : i32
    %c0_i32_1 = arith.constant 0 : i32
    %c0_i32_2 = arith.constant 0 : i32
    return %c0_i32, %c0_i32_0, %c0_i32_1 : i32, i32, i32
  }
  func.func @transform_4(%arg0: i32) -> (i32, i32) {
    %c0_i32 = arith.constant 0 : i32
    %c0_i32_0 = arith.constant 0 : i32
    %c0_i32_1 = arith.constant 0 : i32
    return %c0_i32, %c0_i32_0 : i32, i32
  }
  func.func @transform_5(%arg0: i32) -> (i32, i32, i32) {
    %c0_i32 = arith.constant 0 : i32
    %c0_i32_0 = arith.constant 0 : i32
    %c0_i32_1 = arith.constant 0 : i32
    %c0_i32_2 = arith.constant 0 : i32
    return %c0_i32, %c0_i32_0, %c0_i32_1 : i32, i32, i32
  }
  func.func @transform_6(%arg0: i32) -> (i32, i32) {
    %c0_i32 = arith.constant 0 : i32
    %c0_i32_0 = arith.constant 0 : i32
    %c0_i32_1 = arith.constant 0 : i32
    return %c0_i32, %c0_i32_0 : i32, i32
  }
  func.func @transform_7(%arg0: i32) -> (i32, i32) {
    %c0_i32 = arith.constant 0 : i32
    %c0_i32_0 = arith.constant 0 : i32
    %c0_i32_1 = arith.constant 0 : i32
    return %c0_i32, %c0_i32_0 : i32, i32
  }
  func.func @transform_8(%arg0: i32) -> (i32, i32) {
    %c0_i32 = arith.constant 0 : i32
    %c0_i32_0 = arith.constant 0 : i32
    %c0_i32_1 = arith.constant 0 : i32
    return %c0_i32, %c0_i32_0 : i32, i32
  }
  func.func @transform_9(%arg0: i32) -> (i32, i32) {
    %c0_i32 = arith.constant 0 : i32
    %c0_i32_0 = arith.constant 0 : i32
    %c0_i32_1 = arith.constant 0 : i32
    return %c0_i32, %c0_i32_0 : i32, i32
  }
  func.func @transform_10(%arg0: i32) -> (i32, i32) {
    %c0_i32 = arith.constant 0 : i32
    %c0_i32_0 = arith.constant 0 : i32
    %c0_i32_1 = arith.constant 0 : i32
    return %c0_i32, %c0_i32_0 : i32, i32
  }
  func.func @transform_11(%arg0: i32) -> (i32, i32) {
    %c0_i32 = arith.constant 0 : i32
    %c0_i32_0 = arith.constant 0 : i32
    %c0_i32_1 = arith.constant 0 : i32
    return %c0_i32, %c0_i32_0 : i32, i32
  }
  func.func @transform_12(%arg0: i32) -> (i32, i32) {
    %c0_i32 = arith.constant 0 : i32
    %c0_i32_0 = arith.constant 0 : i32
    %c0_i32_1 = arith.constant 0 : i32
    return %c0_i32, %c0_i32_0 : i32, i32
  }
  func.func @transform_13(%arg0: i32) -> (i32, i32) {
    %c0_i32 = arith.constant 0 : i32
    %c0_i32_0 = arith.constant 0 : i32
    return %arg0, %c0_i32 : i32, i32
  }
}

</mosaic_0001>

<llo_original>
// kernel: mimick_cnn2_forward.1
$region0: #{mimick_cnn2_forward.1}
  #allocation0 [shape = 'u32[]', space=smem, size = 0x4, offset = 0x4, fixed_abs, tag = 'smem constant byte address 0x4 - core index']
  #allocation1 [shape = 'u32[72,128]{1,0:T(1,128)}', space=vmem, size = 0x9000, scoped, tag = 'internal scratch']
  #allocation2 [shape = 'f32[7,8,16]{2,1,0:T(8,128)}', space=vmem, size = 0x7000, scoped, tag = 'scratch operand']
  #allocation3 [shape = 'f32[3,8,16]{2,1,0:T(8,128)}', space=vmem, size = 0x3000, scoped, tag = 'scratch operand']
  %s0 = inlined_call_operand.vmem [shape: f32[15,16,32], index: 0, kind: input, shape index: {}]
  %s1 = inlined_call_operand.vmem [shape: f32[2,32,16], index: 1, kind: input, shape index: {}]
  %s2 = inlined_call_operand.vmem [shape: f32[1,16], index: 2, kind: input, shape index: {}]
  %s3 = inlined_call_operand.vmem [shape: f32[2,16,16], index: 3, kind: input, shape index: {}]
  %s4 = inlined_call_operand.vmem [shape: f32[1,16], index: 4, kind: input, shape index: {}]
  %s5 = inlined_call_operand.vmem [shape: f32[2,16,32], index: 5, kind: input, shape index: {}]
  %s6 = inlined_call_operand.vmem [shape: f32[1,32], index: 6, kind: input, shape index: {}]
  %s7 = inlined_call_operand.vmem [shape: f32[32,32], index: 7, kind: input, shape index: {}]
  %s8 = inlined_call_operand.vmem [shape: f32[1,32], index: 8, kind: input, shape index: {}]
  %s9 = inlined_call_operand.vmem [shape: f32[32,32], index: 9, kind: input, shape index: {}]
  %s10 = inlined_call_operand.vmem [shape: f32[1,32], index: 10, kind: input, shape index: {}]
  %s11 = inlined_call_operand.vmem [shape: f32[32,32], index: 11, kind: input, shape index: {}]
  %s12 = inlined_call_operand.vmem [shape: f32[1,32], index: 12, kind: input, shape index: {}]
  %s13 = inlined_call_operand.hbm [shape: f32[16,32], index: 13, kind: output, shape index: {}]
  %s14 = sld [smem:[#allocation0]]
  $region123: #{mimick_cnn2_forward.1} parent=0
    _
  %s16 = ssub.s32 1, %s14
  %s17 = scalar_select 0, %s16, %s14
  $region1: #{mimick_cnn2_forward.1} parent=0
    #allocation4 [shape = 'u8[122880]{0}', space=vmem, size = 0x1e000, scoped, tag = 'input window, operand 0']
    #allocation5 [shape = 'u8[8192]{0}', space=vmem, size = 0x2000, scoped, tag = 'output window, operand 0']
    #allocation6 [shape = 's32[2]{0}', space=sflag, size = 0x8, scoped, tag = 'scoped memory for mimick_cnn2_forward.1']
    %18 = vsyncpa [#allocation6], 0
    %s19 = scalar_lea.sflag [#allocation6], 1
    %20 = vsyncpa %s19, 0
    loop: start=0, step=1, limit=4
    $region2: #{mimick_cnn2_forward.1} parent=1 // loop_pre_header
      _
    $region3: #{mimick_cnn2_forward.1} parent=1 // loop_header
      %s22 = sphi 0, %s26
      %p23 = scmp.ge.s32.totalorder %s22, 4
      %s32 = sphi 0, %s34
      %s35 = sphi 0, %s32
      %s36 = sphi 0, %s35
      %s52 = sphi 0, %s36
      %s56 = sphi 0, %s56
      %s58 = sphi 0, %s56
      %s59 = sphi 0, %s58
      %s73 = sphi 0, %s59
      %s77 = sphi 0, %s77
      %s79 = sphi 0, %s77
      %s80 = sphi 0, %s79
      %s94 = sphi 0, %s80
      %s98 = sphi 0, %s98
      %s100 = sphi 0, %s98
      %s101 = sphi 0, %s100
      %s115 = sphi 0, %s101
      %s119 = sphi 0, %s119
      %s121 = sphi 0, %s119
      %s122 = sphi 0, %s121
      %s136 = sphi 0, %s122
      %s140 = sphi 0, %s140
      %s142 = sphi 0, %s140
      %s143 = sphi 0, %s142
      %s157 = sphi 0, %s143
      %s161 = sphi 0, %s161
      %s163 = sphi 0, %s161
      %s164 = sphi 0, %s163
      %s178 = sphi 0, %s164
      %s182 = sphi 0, %s182
      %s184 = sphi 0, %s182
      %s185 = sphi 0, %s184
      %s199 = sphi 0, %s185
      %s203 = sphi 0, %s203
      %s205 = sphi 0, %s203
      %s206 = sphi 0, %s205
      %s220 = sphi 0, %s206
      %s224 = sphi 0, %s224
      %s226 = sphi 0, %s224
      %s227 = sphi 0, %s226
      %s241 = sphi 0, %s227
      %s245 = sphi 0, %s245
      %s247 = sphi 0, %s245
      %s248 = sphi 0, %s247
      %s262 = sphi 0, %s248
      %s266 = sphi 0, %s266
      %s268 = sphi 0, %s266
      %s269 = sphi 0, %s268
      %s283 = sphi 0, %s269
      %s287 = sphi 0, %s287
      %s289 = sphi 0, %s287
      %s290 = sphi 0, %s289
      %s304 = sphi 0, %s290
      %s310 = sphi 0, %s312
      %s313 = sphi 0, %s310
      %s314 = sphi 0, %s313
      %s330 = sphi 0, %s314
    $region4: #{mimick_cnn2_forward.1} parent=1 // loop_header_branch
      %25 = sbr.rel (%p23) target = $region8
    $region5: #{mimick_cnn2_forward.1} parent=1 // loop_body
      %s27 = ssub.s32 %s22, 1
      %s28 = ssub.s32 %s22, 2
      %s29 = sadd.s32 %s22, 1
      %s30 = ssub.s32 %s22, %s29
      %p31 = scmp.eq.s32.totalorder %s30, 0
      %s33 = sadd.s32 %s32, 1
      %s34 = scalar_select %p31, %s32, %s33
      %p37 = pneg %p31
      %p38 = scmp.eq.s32.totalorder %s22, 1
      %p39 = por %p37, %p38
      %p40 = scmp.ne.s32.totalorder %s32, %s35
      %p41 = scmp.eq.s32.totalorder %s22, 0
      %p42 = por %p40, %p41
      %p43 = scmp.ne.s32.totalorder %s32, %s35
      %p44 = scmp.eq.s32.totalorder %s27, 1
      %p45 = por %p43, %p44
      %p46 = scmp.ne.s32.totalorder %s35, %s36
      %p47 = scmp.eq.s32.totalorder %s27, 0
      %p48 = por %p46, %p47
      %p49 = scmp.ne.s32.totalorder %s35, %s36
      %p50 = scmp.eq.s32.totalorder %s28, 1
      %p51 = por %p49, %p50
      %p53 = scmp.ne.s32.totalorder %s36, %s52
      %p54 = scmp.eq.s32.totalorder %s28, 0
      %p55 = por %p53, %p54
      %s57 = sadd.s32 %s56, 1
      %p60 = scmp.eq.s32.totalorder %s22, 1
      %p61 = scmp.ne.s32.totalorder %s56, %s58
      %p62 = scmp.eq.s32.totalorder %s22, 0
      %p63 = por %p61, %p62
      %p64 = scmp.ne.s32.totalorder %s56, %s58
      %p65 = scmp.eq.s32.totalorder %s27, 1
      %p66 = por %p64, %p65
      %p67 = scmp.ne.s32.totalorder %s58, %s59
      %p68 = scmp.eq.s32.totalorder %s27, 0
      %p69 = por %p67, %p68
      %p70 = scmp.ne.s32.totalorder %s58, %s59
      %p71 = scmp.eq.s32.totalorder %s28, 1
      %p72 = por %p70, %p71
      %p74 = scmp.ne.s32.totalorder %s59, %s73
      %p75 = scmp.eq.s32.totalorder %s28, 0
      %p76 = por %p74, %p75
      %s78 = sadd.s32 %s77, 1
      %p81 = scmp.eq.s32.totalorder %s22, 1
      %p82 = scmp.ne.s32.totalorder %s77, %s79
      %p83 = scmp.eq.s32.totalorder %s22, 0
      %p84 = por %p82, %p83
      %p85 = scmp.ne.s32.totalorder %s77, %s79
      %p86 = scmp.eq.s32.totalorder %s27, 1
      %p87 = por %p85, %p86
      %p88 = scmp.ne.s32.totalorder %s79, %s80
      %p89 = scmp.eq.s32.totalorder %s27, 0
      %p90 = por %p88, %p89
      %p91 = scmp.ne.s32.totalorder %s79, %s80
      %p92 = scmp.eq.s32.totalorder %s28, 1
      %p93 = por %p91, %p92
      %p95 = scmp.ne.s32.totalorder %s80, %s94
      %p96 = scmp.eq.s32.totalorder %s28, 0
      %p97 = por %p95, %p96
      %s99 = sadd.s32 %s98, 1
      %p102 = scmp.eq.s32.totalorder %s22, 1
      %p103 = scmp.ne.s32.totalorder %s98, %s100
      %p104 = scmp.eq.s32.totalorder %s22, 0
      %p105 = por %p103, %p104
      %p106 = scmp.ne.s32.totalorder %s98, %s100
      %p107 = scmp.eq.s32.totalorder %s27, 1
      %p108 = por %p106, %p107
      %p109 = scmp.ne.s32.totalorder %s100, %s101
      %p110 = scmp.eq.s32.totalorder %s27, 0
      %p111 = por %p109, %p110
      %p112 = scmp.ne.s32.totalorder %s100, %s101
      %p113 = scmp.eq.s32.totalorder %s28, 1
      %p114 = por %p112, %p113
      %p116 = scmp.ne.s32.totalorder %s101, %s115
      %p117 = scmp.eq.s32.totalorder %s28, 0
      %p118 = por %p116, %p117
      %s120 = sadd.s32 %s119, 1
      %p123 = scmp.eq.s32.totalorder %s22, 1
      %p124 = scmp.ne.s32.totalorder %s119, %s121
      %p125 = scmp.eq.s32.totalorder %s22, 0
      %p126 = por %p124, %p125
      %p127 = scmp.ne.s32.totalorder %s119, %s121
      %p128 = scmp.eq.s32.totalorder %s27, 1
      %p129 = por %p127, %p128
      %p130 = scmp.ne.s32.totalorder %s121, %s122
      %p131 = scmp.eq.s32.totalorder %s27, 0
      %p132 = por %p130, %p131
      %p133 = scmp.ne.s32.totalorder %s121, %s122
      %p134 = scmp.eq.s32.totalorder %s28, 1
      %p135 = por %p133, %p134
      %p137 = scmp.ne.s32.totalorder %s122, %s136
      %p138 = scmp.eq.s32.totalorder %s28, 0
      %p139 = por %p137, %p138
      %s141 = sadd.s32 %s140, 1
      %p144 = scmp.eq.s32.totalorder %s22, 1
      %p145 = scmp.ne.s32.totalorder %s140, %s142
      %p146 = scmp.eq.s32.totalorder %s22, 0
      %p147 = por %p145, %p146
      %p148 = scmp.ne.s32.totalorder %s140, %s142
      %p149 = scmp.eq.s32.totalorder %s27, 1
      %p150 = por %p148, %p149
      %p151 = scmp.ne.s32.totalorder %s142, %s143
      %p152 = scmp.eq.s32.totalorder %s27, 0
      %p153 = por %p151, %p152
      %p154 = scmp.ne.s32.totalorder %s142, %s143
      %p155 = scmp.eq.s32.totalorder %s28, 1
      %p156 = por %p154, %p155
      %p158 = scmp.ne.s32.totalorder %s143, %s157
      %p159 = scmp.eq.s32.totalorder %s28, 0
      %p160 = por %p158, %p159
      %s162 = sadd.s32 %s161, 1
      %p165 = scmp.eq.s32.totalorder %s22, 1
      %p166 = scmp.ne.s32.totalorder %s161, %s163
      %p167 = scmp.eq.s32.totalorder %s22, 0
      %p168 = por %p166, %p167
      %p169 = scmp.ne.s32.totalorder %s161, %s163
      %p170 = scmp.eq.s32.totalorder %s27, 1
      %p171 = por %p169, %p170
      %p172 = scmp.ne.s32.totalorder %s163, %s164
      %p173 = scmp.eq.s32.totalorder %s27, 0
      %p174 = por %p172, %p173
      %p175 = scmp.ne.s32.totalorder %s163, %s164
      %p176 = scmp.eq.s32.totalorder %s28, 1
      %p177 = por %p175, %p176
      %p179 = scmp.ne.s32.totalorder %s164, %s178
      %p180 = scmp.eq.s32.totalorder %s28, 0
      %p181 = por %p179, %p180
      %s183 = sadd.s32 %s182, 1
      %p186 = scmp.eq.s32.totalorder %s22, 1
      %p187 = scmp.ne.s32.totalorder %s182, %s184
      %p188 = scmp.eq.s32.totalorder %s22, 0
      %p189 = por %p187, %p188
      %p190 = scmp.ne.s32.totalorder %s182, %s184
      %p191 = scmp.eq.s32.totalorder %s27, 1
      %p192 = por %p190, %p191
      %p193 = scmp.ne.s32.totalorder %s184, %s185
      %p194 = scmp.eq.s32.totalorder %s27, 0
      %p195 = por %p193, %p194
      %p196 = scmp.ne.s32.totalorder %s184, %s185
      %p197 = scmp.eq.s32.totalorder %s28, 1
      %p198 = por %p196, %p197
      %p200 = scmp.ne.s32.totalorder %s185, %s199
      %p201 = scmp.eq.s32.totalorder %s28, 0
      %p202 = por %p200, %p201
      %s204 = sadd.s32 %s203, 1
      %p207 = scmp.eq.s32.totalorder %s22, 1
      %p208 = scmp.ne.s32.totalorder %s203, %s205
      %p209 = scmp.eq.s32.totalorder %s22, 0
      %p210 = por %p208, %p209
      %p211 = scmp.ne.s32.totalorder %s203, %s205
      %p212 = scmp.eq.s32.totalorder %s27, 1
      %p213 = por %p211, %p212
      %p214 = scmp.ne.s32.totalorder %s205, %s206
      %p215 = scmp.eq.s32.totalorder %s27, 0
      %p216 = por %p214, %p215
      %p217 = scmp.ne.s32.totalorder %s205, %s206
      %p218 = scmp.eq.s32.totalorder %s28, 1
      %p219 = por %p217, %p218
      %p221 = scmp.ne.s32.totalorder %s206, %s220
      %p222 = scmp.eq.s32.totalorder %s28, 0
      %p223 = por %p221, %p222
      %s225 = sadd.s32 %s224, 1
      %p228 = scmp.eq.s32.totalorder %s22, 1
      %p229 = scmp.ne.s32.totalorder %s224, %s226
      %p230 = scmp.eq.s32.totalorder %s22, 0
      %p231 = por %p229, %p230
      %p232 = scmp.ne.s32.totalorder %s224, %s226
      %p233 = scmp.eq.s32.totalorder %s27, 1
      %p234 = por %p232, %p233
      %p235 = scmp.ne.s32.totalorder %s226, %s227
      %p236 = scmp.eq.s32.totalorder %s27, 0
      %p237 = por %p235, %p236
      %p238 = scmp.ne.s32.totalorder %s226, %s227
      %p239 = scmp.eq.s32.totalorder %s28, 1
      %p240 = por %p238, %p239
      %p242 = scmp.ne.s32.totalorder %s227, %s241
      %p243 = scmp.eq.s32.totalorder %s28, 0
      %p244 = por %p242, %p243
      %s246 = sadd.s32 %s245, 1
      %p249 = scmp.eq.s32.totalorder %s22, 1
      %p250 = scmp.ne.s32.totalorder %s245, %s247
      %p251 = scmp.eq.s32.totalorder %s22, 0
      %p252 = por %p250, %p251
      %p253 = scmp.ne.s32.totalorder %s245, %s247
      %p254 = scmp.eq.s32.totalorder %s27, 1
      %p255 = por %p253, %p254
      %p256 = scmp.ne.s32.totalorder %s247, %s248
      %p257 = scmp.eq.s32.totalorder %s27, 0
      %p258 = por %p256, %p257
      %p259 = scmp.ne.s32.totalorder %s247, %s248
      %p260 = scmp.eq.s32.totalorder %s28, 1
      %p261 = por %p259, %p260
      %p263 = scmp.ne.s32.totalorder %s248, %s262
      %p264 = scmp.eq.s32.totalorder %s28, 0
      %p265 = por %p263, %p264
      %s267 = sadd.s32 %s266, 1
      %p270 = scmp.eq.s32.totalorder %s22, 1
      %p271 = scmp.ne.s32.totalorder %s266, %s268
      %p272 = scmp.eq.s32.totalorder %s22, 0
      %p273 = por %p271, %p272
      %p274 = scmp.ne.s32.totalorder %s266, %s268
      %p275 = scmp.eq.s32.totalorder %s27, 1
      %p276 = por %p274, %p275
      %p277 = scmp.ne.s32.totalorder %s268, %s269
      %p278 = scmp.eq.s32.totalorder %s27, 0
      %p279 = por %p277, %p278
      %p280 = scmp.ne.s32.totalorder %s268, %s269
      %p281 = scmp.eq.s32.totalorder %s28, 1
      %p282 = por %p280, %p281
      %p284 = scmp.ne.s32.totalorder %s269, %s283
      %p285 = scmp.eq.s32.totalorder %s28, 0
      %p286 = por %p284, %p285
      %s288 = sadd.s32 %s287, 1
      %p291 = scmp.eq.s32.totalorder %s22, 1
      %p292 = scmp.ne.s32.totalorder %s287, %s289
      %p293 = scmp.eq.s32.totalorder %s22, 0
      %p294 = por %p292, %p293
      %p295 = scmp.ne.s32.totalorder %s287, %s289
      %p296 = scmp.eq.s32.totalorder %s27, 1
      %p297 = por %p295, %p296
      %p298 = scmp.ne.s32.totalorder %s289, %s290
      %p299 = scmp.eq.s32.totalorder %s27, 0
      %p300 = por %p298, %p299
      %p301 = scmp.ne.s32.totalorder %s289, %s290
      %p302 = scmp.eq.s32.totalorder %s28, 1
      %p303 = por %p301, %p302
      %p305 = scmp.ne.s32.totalorder %s290, %s304
      %p306 = scmp.eq.s32.totalorder %s28, 0
      %p307 = por %p305, %p306
      %s308 = ssub.s32 %s22, %s29
      %p309 = scmp.eq.s32.totalorder %s308, 0
      %s311 = sadd.s32 %s310, 1
      %s312 = scalar_select %p309, %s310, %s311
      %p315 = pneg %p309
      %p316 = scmp.eq.s32.totalorder %s22, 1
      %p317 = por %p315, %p316
      %p318 = scmp.ne.s32.totalorder %s310, %s313
      %p319 = scmp.eq.s32.totalorder %s22, 0
      %p320 = por %p318, %p319
      %p321 = scmp.ne.s32.totalorder %s310, %s313
      %p322 = scmp.eq.s32.totalorder %s27, 1
      %p323 = por %p321, %p322
      %p324 = scmp.ne.s32.totalorder %s313, %s314
      %p325 = scmp.eq.s32.totalorder %s27, 0
      %p326 = por %p324, %p325
      %p327 = scmp.ne.s32.totalorder %s313, %s314
      %p328 = scmp.eq.s32.totalorder %s28, 1
      %p329 = por %p327, %p328
      %p331 = scmp.ne.s32.totalorder %s314, %s330
      %p332 = scmp.eq.s32.totalorder %s28, 0
      %p333 = por %p331, %p332
      %p334 = scmp.le.s32.totalorder 1, %s22
      %p335 = scmp.lt.s32.totalorder %s22, 3
      %p336 = pnand %p334, %p335
      %p337 = pneg %p336
      // Predicated region
      $region9: #{mimick_cnn2_forward.1} parent=5 // pred_check
        _
      $region10: #{mimick_cnn2_forward.1} parent=5 // pred_check_branch
        %339 = sbr.rel (%p336) target = $region12
      $region11: #{mimick_cnn2_forward.1} parent=5 // pred_region
        %s340 = ssub.s32 %s22, 1
        // Predicated region
        $region13: #{mimick_cnn2_forward.1} parent=11 // pred_check
          %p341 = pneg %p69
        $region14: #{mimick_cnn2_forward.1} parent=11 // pred_check_branch
          %343 = sbr.rel (%p341) target = $region16
        $region15: #{mimick_cnn2_forward.1} parent=11 // pred_region
          _
        $region16: #{mimick_cnn2_forward.1} parent=11 // pred_fallthru
          _
        // Predicated region
        $region17: #{mimick_cnn2_forward.1} parent=11 // pred_check
          %p344 = pneg %p90
        $region18: #{mimick_cnn2_forward.1} parent=11 // pred_check_branch
          %346 = sbr.rel (%p344) target = $region20
        $region19: #{mimick_cnn2_forward.1} parent=11 // pred_region
          _
        $region20: #{mimick_cnn2_forward.1} parent=11 // pred_fallthru
          _
        // Predicated region
        $region21: #{mimick_cnn2_forward.1} parent=11 // pred_check
          %p347 = pneg %p111
        $region22: #{mimick_cnn2_forward.1} parent=11 // pred_check_branch
          %349 = sbr.rel (%p347) target = $region24
        $region23: #{mimick_cnn2_forward.1} parent=11 // pred_region
          _
        $region24: #{mimick_cnn2_forward.1} parent=11 // pred_fallthru
          _
        // Predicated region
        $region25: #{mimick_cnn2_forward.1} parent=11 // pred_check
          %p350 = pneg %p132
        $region26: #{mimick_cnn2_forward.1} parent=11 // pred_check_branch
          %352 = sbr.rel (%p350) target = $region28
        $region27: #{mimick_cnn2_forward.1} parent=11 // pred_region
          _
        $region28: #{mimick_cnn2_forward.1} parent=11 // pred_fallthru
          _
        // Predicated region
        $region29: #{mimick_cnn2_forward.1} parent=11 // pred_check
          %p353 = pneg %p153
        $region30: #{mimick_cnn2_forward.1} parent=11 // pred_check_branch
          %355 = sbr.rel (%p353) target = $region32
        $region31: #{mimick_cnn2_forward.1} parent=11 // pred_region
          _
        $region32: #{mimick_cnn2_forward.1} parent=11 // pred_fallthru
          _
        // Predicated region
        $region33: #{mimick_cnn2_forward.1} parent=11 // pred_check
          %p356 = pneg %p174
        $region34: #{mimick_cnn2_forward.1} parent=11 // pred_check_branch
          %358 = sbr.rel (%p356) target = $region36
        $region35: #{mimick_cnn2_forward.1} parent=11 // pred_region
          _
        $region36: #{mimick_cnn2_forward.1} parent=11 // pred_fallthru
          _
        // Predicated region
        $region37: #{mimick_cnn2_forward.1} parent=11 // pred_check
          %p359 = pneg %p195
        $region38: #{mimick_cnn2_forward.1} parent=11 // pred_check_branch
          %361 = sbr.rel (%p359) target = $region40
        $region39: #{mimick_cnn2_forward.1} parent=11 // pred_region
          _
        $region40: #{mimick_cnn2_forward.1} parent=11 // pred_fallthru
          _
        // Predicated region
        $region41: #{mimick_cnn2_forward.1} parent=11 // pred_check
          %p362 = pneg %p216
        $region42: #{mimick_cnn2_forward.1} parent=11 // pred_check_branch
          %364 = sbr.rel (%p362) target = $region44
        $region43: #{mimick_cnn2_forward.1} parent=11 // pred_region
          _
        $region44: #{mimick_cnn2_forward.1} parent=11 // pred_fallthru
          _
        // Predicated region
        $region45: #{mimick_cnn2_forward.1} parent=11 // pred_check
          %p365 = pneg %p237
        $region46: #{mimick_cnn2_forward.1} parent=11 // pred_check_branch
          %367 = sbr.rel (%p365) target = $region48
        $region47: #{mimick_cnn2_forward.1} parent=11 // pred_region
          _
        $region48: #{mimick_cnn2_forward.1} parent=11 // pred_fallthru
          _
        // Predicated region
        $region49: #{mimick_cnn2_forward.1} parent=11 // pred_check
          %p368 = pneg %p258
        $region50: #{mimick_cnn2_forward.1} parent=11 // pred_check_branch
          %370 = sbr.rel (%p368) target = $region52
        $region51: #{mimick_cnn2_forward.1} parent=11 // pred_region
          _
        $region52: #{mimick_cnn2_forward.1} parent=11 // pred_fallthru
          _
        // Predicated region
        $region53: #{mimick_cnn2_forward.1} parent=11 // pred_check
          %p371 = pneg %p279
        $region54: #{mimick_cnn2_forward.1} parent=11 // pred_check_branch
          %373 = sbr.rel (%p371) target = $region56
        $region55: #{mimick_cnn2_forward.1} parent=11 // pred_region
          _
        $region56: #{mimick_cnn2_forward.1} parent=11 // pred_fallthru
          _
        // Predicated region
        $region57: #{mimick_cnn2_forward.1} parent=11 // pred_check
          %p374 = pneg %p300
        $region58: #{mimick_cnn2_forward.1} parent=11 // pred_check_branch
          %376 = sbr.rel (%p374) target = $region60
        $region59: #{mimick_cnn2_forward.1} parent=11 // pred_region
          _
        $region60: #{mimick_cnn2_forward.1} parent=11 // pred_fallthru
          _
      $region12: #{mimick_cnn2_forward.1} parent=5 // pred_fallthru
        _
      %p377 = scmp.lt.s32.totalorder %s22, 2
      // Predicated region
      $region61: #{mimick_cnn2_forward.1} parent=5 // pred_check
        %p378 = pneg %p377
      $region62: #{mimick_cnn2_forward.1} parent=5 // pred_check_branch
        %380 = sbr.rel (%p378) target = $region64
      $region63: #{mimick_cnn2_forward.1} parent=5 // pred_region
        // Predicated region
        $region65: #{mimick_cnn2_forward.1} parent=63 // pred_check
          %p381 = pneg %p42
        $region66: #{mimick_cnn2_forward.1} parent=63 // pred_check_branch
          %383 = sbr.rel (%p381) target = $region68
        $region67: #{mimick_cnn2_forward.1} parent=63 // pred_region
          %s384 = sand.u32 %s32, 1
          %s385 = sand.u32 %s32, 1
          %s386 = smul.addr %s385, 120
          %s387 = scalar_lea.vmem [#allocation4], %s386
          %s388 = smul.addr %s22, 8
          %s389 = scalar_lea.vmem %s0, %s388
          // Predicated region
          $region69: #{mimick_cnn2_forward.1} parent=67 // pred_check
            _
          $region70: #{mimick_cnn2_forward.1} parent=67 // pred_check_branch
            %391 = sbr.rel (0) target = $region72
          $region71: #{mimick_cnn2_forward.1} parent=67 // pred_region
            // Predicated region
            $region73: #{mimick_cnn2_forward.1} parent=71 // pred_check
              _
            $region74: #{mimick_cnn2_forward.1} parent=71 // pred_check_branch
              %393 = sbr.rel (0) target = $region76
            $region75: #{mimick_cnn2_forward.1} parent=71 // pred_region
              // Predicated region
              $region88: #{mimick_cnn2_forward.1} parent=75 // pred_check
                _
              $region89: #{mimick_cnn2_forward.1} parent=75 // pred_check_branch
                %437 = sbr.rel (0) target = $region91
              $region90: #{mimick_cnn2_forward.1} parent=75 // pred_region
                loop: start=0, step=1, limit=1
                $region92: #{mimick_cnn2_forward.1} parent=90 // loop_pre_header
                  _
                $region93: #{mimick_cnn2_forward.1} parent=90 // loop_header
                  %s439 = sphi 0, %s443
                  %p440 = scmp.ge.s32.totalorder %s439, 1
                  %s444 = sphi %s389, %s389
                  %s445 = sphi %s387, %s387
                $region94: #{mimick_cnn2_forward.1} parent=90 // loop_header_branch
                  %442 = sbr.rel (%p440) target = $region98
                $region95: #{mimick_cnn2_forward.1} parent=90 // loop_body
                  %v446 = vld [vmem:[%s444] sm:$0xff]
                  %447 = vst [vmem:[%s445] sm:$0xff] %v446
                  %v448 = vld [vmem:[%s444 + $0x10] sm:$0xff]
                  %449 = vst [vmem:[%s445 + $0x8] sm:$0xff] %v448
                  %v450 = vld [vmem:[%s444 + $0x20] sm:$0xff]
                  %451 = vst [vmem:[%s445 + $0x10] sm:$0xff] %v450
                  %v452 = vld [vmem:[%s444 + $0x30] sm:$0xff]
                  %453 = vst [vmem:[%s445 + $0x18] sm:$0xff] %v452
                  %v454 = vld [vmem:[%s444 + $0x40] sm:$0xff]
                  %455 = vst [vmem:[%s445 + $0x20] sm:$0xff] %v454
                  %v456 = vld [vmem:[%s444 + $0x50] sm:$0xff]
                  %457 = vst [vmem:[%s445 + $0x28] sm:$0xff] %v456
                  %v458 = vld [vmem:[%s444 + $0x60] sm:$0xff]
                  %459 = vst [vmem:[%s445 + $0x30] sm:$0xff] %v458
                  %v460 = vld [vmem:[%s444 + $0x70] sm:$0xff]
                  %461 = vst [vmem:[%s445 + $0x38] sm:$0xff] %v460
                  %v462 = vld [vmem:[%s444 + $0x80] sm:$0xff]
                  %463 = vst [vmem:[%s445 + $0x40] sm:$0xff] %v462
                  %v464 = vld [vmem:[%s444 + $0x90] sm:$0xff]
                  %465 = vst [vmem:[%s445 + $0x48] sm:$0xff] %v464
                  %v466 = vld [vmem:[%s444 + $0xa0] sm:$0xff]
                  %467 = vst [vmem:[%s445 + $0x50] sm:$0xff] %v466
                  %v468 = vld [vmem:[%s444 + $0xb0] sm:$0xff]
                  %469 = vst [vmem:[%s445 + $0x58] sm:$0xff] %v468
                  %v470 = vld [vmem:[%s444 + $0xc0] sm:$0xff]
                  %471 = vst [vmem:[%s445 + $0x60] sm:$0xff] %v470
                  %v472 = vld [vmem:[%s444 + $0xd0] sm:$0xff]
                  %473 = vst [vmem:[%s445 + $0x68] sm:$0xff] %v472
                  %v474 = vld [vmem:[%s444 + $0xe0] sm:$0xff]
                  %475 = vst [vmem:[%s445 + $0x70] sm:$0xff] %v474
                $region96: #{mimick_cnn2_forward.1} parent=90 // loop_footer
                  %s443 = sadd.s32 1, %s439
                $region97: #{mimick_cnn2_forward.1} parent=90 // loop_footer_branch
                  %438 = sbr.rel target = $region93
                $region98: #{mimick_cnn2_forward.1} parent=90 // loop_exit
                  _
              $region91: #{mimick_cnn2_forward.1} parent=75 // pred_fallthru
                _
              // Predicated region
              $region99: #{mimick_cnn2_forward.1} parent=75 // pred_check
                _
              $region100: #{mimick_cnn2_forward.1} parent=75 // pred_check_branch
                %477 = sbr.rel target = $region102
              $region101: #{mimick_cnn2_forward.1} parent=75 // pred_region
                _
              $region102: #{mimick_cnn2_forward.1} parent=75 // pred_fallthru
                _
            $region76: #{mimick_cnn2_forward.1} parent=71 // pred_fallthru
              _
            // Predicated region
            $region77: #{mimick_cnn2_forward.1} parent=71 // pred_check
              _
            $region78: #{mimick_cnn2_forward.1} parent=71 // pred_check_branch
              %395 = sbr.rel target = $region80
            $region79: #{mimick_cnn2_forward.1} parent=71 // pred_region
              %s397 = ssub.s32 256, 1
              loop: start=0, step=1, limit=1
              $region81: #{mimick_cnn2_forward.1} parent=79 // loop_pre_header
                _
              $region82: #{mimick_cnn2_forward.1} parent=79 // loop_header
                %s399 = sphi 0, %s403
                %p400 = scmp.ge.s32.totalorder %s399, 1
                %s404 = sphi %s389, %s389
                %s405 = sphi %s387, %s387
              $region83: #{mimick_cnn2_forward.1} parent=79 // loop_header_branch
                %402 = sbr.rel (%p400) target = $region87
              $region84: #{mimick_cnn2_forward.1} parent=79 // loop_body
                %v406 = vld [vmem:[%s404] sm:%s397]
                %407 = vst [vmem:[%s405] sm:%s397] %v406
                %v408 = vld [vmem:[%s404 + $0x10] sm:%s397]
                %409 = vst [vmem:[%s405 + $0x8] sm:%s397] %v408
                %v410 = vld [vmem:[%s404 + $0x20] sm:%s397]
                %411 = vst [vmem:[%s405 + $0x10] sm:%s397] %v410
                %v412 = vld [vmem:[%s404 + $0x30] sm:%s397]
                %413 = vst [vmem:[%s405 + $0x18] sm:%s397] %v412
                %v414 = vld [vmem:[%s404 + $0x40] sm:%s397]
                %415 = vst [vmem:[%s405 + $0x20] sm:%s397] %v414
                %v416 = vld [vmem:[%s404 + $0x50] sm:%s397]
                %417 = vst [vmem:[%s405 + $0x28] sm:%s397] %v416
                %v418 = vld [vmem:[%s404 + $0x60] sm:%s397]
                %419 = vst [vmem:[%s405 + $0x30] sm:%s397] %v418
                %v420 = vld [vmem:[%s404 + $0x70] sm:%s397]
                %421 = vst [vmem:[%s405 + $0x38] sm:%s397] %v420
                %v422 = vld [vmem:[%s404 + $0x80] sm:%s397]
                %423 = vst [vmem:[%s405 + $0x40] sm:%s397] %v422
                %v424 = vld [vmem:[%s404 + $0x90] sm:%s397]
                %425 = vst [vmem:[%s405 + $0x48] sm:%s397] %v424
                %v426 = vld [vmem:[%s404 + $0xa0] sm:%s397]
                %427 = vst [vmem:[%s405 + $0x50] sm:%s397] %v426
                %v428 = vld [vmem:[%s404 + $0xb0] sm:%s397]
                %429 = vst [vmem:[%s405 + $0x58] sm:%s397] %v428
                %v430 = vld [vmem:[%s404 + $0xc0] sm:%s397]
                %431 = vst [vmem:[%s405 + $0x60] sm:%s397] %v430
                %v432 = vld [vmem:[%s404 + $0xd0] sm:%s397]
                %433 = vst [vmem:[%s405 + $0x68] sm:%s397] %v432
                %v434 = vld [vmem:[%s404 + $0xe0] sm:%s397]
                %435 = vst [vmem:[%s405 + $0x70] sm:%s397] %v434
              $region85: #{mimick_cnn2_forward.1} parent=79 // loop_footer
                %s403 = sadd.s32 1, %s399
              $region86: #{mimick_cnn2_forward.1} parent=79 // loop_footer_branch
                %398 = sbr.rel target = $region82
              $region87: #{mimick_cnn2_forward.1} parent=79 // loop_exit
                _
            $region80: #{mimick_cnn2_forward.1} parent=71 // pred_fallthru
              _
          $region72: #{mimick_cnn2_forward.1} parent=67 // pred_fallthru
            _
          %478 = vnop
        $region68: #{mimick_cnn2_forward.1} parent=63 // pred_fallthru
          _
      $region64: #{mimick_cnn2_forward.1} parent=5 // pred_fallthru
        _
      %p479 = scmp.le.s32.totalorder 1, %s22
      %p480 = scmp.lt.s32.totalorder %s22, 3
      %p481 = pnand %p479, %p480
      %p482 = pneg %p481
      // Predicated region
      $region103: #{mimick_cnn2_forward.1} parent=5 // pred_check
        _
      $region104: #{mimick_cnn2_forward.1} parent=5 // pred_check_branch
        %484 = sbr.rel (%p481) target = $region106
      $region105: #{mimick_cnn2_forward.1} parent=5 // pred_region
        %s485 = ssub.s32 %s22, 1
        %s486 = sand.u32 %s35, 1
        %s487 = sand.u32 %s35, 1
        %s488 = smul.addr %s487, 120
        %s489 = scalar_lea.vmem [#allocation4], %s488
        // Predicated region
        $region107: #{mimick_cnn2_forward.1} parent=105 // pred_check
          %p490 = pneg %p48
        $region108: #{mimick_cnn2_forward.1} parent=105 // pred_check_branch
          %492 = sbr.rel (%p490) target = $region110
        $region109: #{mimick_cnn2_forward.1} parent=105 // pred_region
          _
        $region110: #{mimick_cnn2_forward.1} parent=105 // pred_fallthru
          _
        %s493 = sand.u32 %s35, 1
        %s494 = sand.u32 %s35, 1
        %s495 = smul.addr %s494, 120
        %s496 = scalar_lea.vmem [#allocation4], %s495
        %p497 = pneg %p48
        %p498 = pneg %p45
        %p499 = pneg %p69
        %p500 = pneg %p66
        %p501 = pneg %p90
        %p502 = pneg %p87
        %p503 = pneg %p111
        %p504 = pneg %p108
        %p505 = pneg %p132
        %p506 = pneg %p129
        %p507 = pneg %p153
        %p508 = pneg %p150
        %p509 = pneg %p174
        %p510 = pneg %p171
        %p511 = pneg %p195
        %p512 = pneg %p192
        %p513 = pneg %p216
        %p514 = pneg %p213
        %p515 = pneg %p237
        %p516 = pneg %p234
        %p517 = pneg %p258
        %p518 = pneg %p255
        %p519 = pneg %p279
        %p520 = pneg %p276
        %p521 = pneg %p300
        %p522 = pneg %p297
        %p523 = pneg %p326
        %p524 = pneg %p323
        %s525 = sand.u32 %s313, 1
        %s526 = scalar_lea.sflag [#allocation6], %s525
        %s527 = sand.u32 %s313, 1
        %s528 = smul.addr %s527, 8
        %s529 = scalar_lea.vmem [#allocation5], %s528
        %v530 = vld [vmem:[%s2] sm:$0x1]
        %v531 = vld [vmem:[%s4] sm:$0x1]
        %v532 = vld [vmem:[%s6] sm:$0x1]
        %v533 = vld [vmem:[%s489] sm:$0xff]
        %v534 = vld [vmem:[%s1] sm:$0xff]
        %v535 = vld [vmem:[%s1 + $0x8] sm:$0xff]
        %v536 = vld [vmem:[%s1 + $0x10] sm:$0xff]
        %v537 = vld [vmem:[%s1 + $0x18] sm:$0xff]
        %s538 = scalar_lea.vmem %s489, 8 [#allocation4]
        %v539 = vld [vmem:[%s538] sm:$0xff]
        %s540 = scalar_lea.vmem %s1, 32
        %v541 = vld [vmem:[%s540] sm:$0xff]
        %v542 = vld [vmem:[%s540 + $0x8] sm:$0xff]
        %v543 = vld [vmem:[%s540 + $0x10] sm:$0xff]
        %v544 = vld [vmem:[%s540 + $0x18] sm:$0xff]
        %vm545 = vcmask 261120
        %v547 = vsel %vm545, %v539, 0
        %549 = vmatpush.msra.mxu0 0.0
        %550 = vmatpush.msra.mxu0 0.0
        %551 = vmatpush.msra.mxu0 0.0
        %552 = vmatpush.msra.mxu0 0.0
        %553 = vmatpush.msra.mxu0 0.0
        %554 = vmatpush.msra.mxu0 0.0
        %555 = vmatpush.msra.mxu0 0.0
        %556 = vmatpush.msra.mxu0 0.0
        %557 = vmatpush.msra.mxu0 0.0
        %558 = vmatpush.msra.mxu0 0.0
        %559 = vmatpush.msra.mxu0 0.0
        %560 = vmatpush.msra.mxu0 0.0
        %561 = vmatpush.msra.mxu0 %v544
        %562 = vmatpush.msra.mxu0 %v543
        %563 = vmatpush.msra.mxu0 %v542
        %564 = vmatpush.msra.mxu0 %v541
        %565 = vmatmul.f32.gmra.mxu0 %v547
        %v566 = vpop.f32.mrf.mxu0
        %v567 = vadd.f32 0.0, %v566
        %568 = vdwg.mxu0
        %v570 = vsel %vm545, %v533, 0
        %572 = vmatpush.msra.mxu0 0.0
        %573 = vmatpush.msra.mxu0 0.0
        %574 = vmatpush.msra.mxu0 0.0
        %575 = vmatpush.msra.mxu0 0.0
        %576 = vmatpush.msra.mxu0 0.0
        %577 = vmatpush.msra.mxu0 0.0
        %578 = vmatpush.msra.mxu0 0.0
        %579 = vmatpush.msra.mxu0 0.0
        %580 = vmatpush.msra.mxu0 0.0
        %581 = vmatpush.msra.mxu0 0.0
        %582 = vmatpush.msra.mxu0 0.0
        %583 = vmatpush.msra.mxu0 0.0
        %584 = vmatpush.msra.mxu0 %v537
        %585 = vmatpush.msra.mxu0 %v536
        %586 = vmatpush.msra.mxu0 %v535
        %587 = vmatpush.msra.mxu0 %v534
        %588 = vmatmul.f32.gmra.mxu0 %v570
        %v589 = vpop.f32.mrf.mxu0
        %v590 = vadd.f32 %v567, %v589
        %591 = vdwg.mxu0
        %v593 = vperm.slane %v530, 0
        %v595 = vadd.f32 %v590, %v593
        %v596 = vmax.f32 %v595, 0.0
        %s597 = scalar_lea.vmem %s489, 16 [#allocation4]
        %v598 = vld [vmem:[%s597] sm:$0xff]
        %v600 = vsel %vm545, %v598, 0
        %602 = vmatpush.msra.mxu0 0.0
        %603 = vmatpush.msra.mxu0 0.0
        %604 = vmatpush.msra.mxu0 0.0
        %605 = vmatpush.msra.mxu0 0.0
        %606 = vmatpush.msra.mxu0 0.0
        %607 = vmatpush.msra.mxu0 0.0
        %608 = vmatpush.msra.mxu0 0.0
        %609 = vmatpush.msra.mxu0 0.0
        %610 = vmatpush.msra.mxu0 0.0
        %611 = vmatpush.msra.mxu0 0.0
        %612 = vmatpush.msra.mxu0 0.0
        %613 = vmatpush.msra.mxu0 0.0
        %614 = vmatpush.msra.mxu0 %v544
        %615 = vmatpush.msra.mxu0 %v543
        %616 = vmatpush.msra.mxu0 %v542
        %617 = vmatpush.msra.mxu0 %v541
        %618 = vmatmul.f32.gmra.mxu0 %v600
        %v619 = vpop.f32.mrf.mxu0
        %v620 = vadd.f32 0.0, %v619
        %621 = vdwg.mxu0
        %622 = vmatpush.msra.mxu0 0.0
        %623 = vmatpush.msra.mxu0 0.0
        %624 = vmatpush.msra.mxu0 0.0
        %625 = vmatpush.msra.mxu0 0.0
        %626 = vmatpush.msra.mxu0 0.0
        %627 = vmatpush.msra.mxu0 0.0
        %628 = vmatpush.msra.mxu0 0.0
        %629 = vmatpush.msra.mxu0 0.0
        %630 = vmatpush.msra.mxu0 0.0
        %631 = vmatpush.msra.mxu0 0.0
        %632 = vmatpush.msra.mxu0 0.0
        %633 = vmatpush.msra.mxu0 0.0
        %634 = vmatpush.msra.mxu0 %v537
        %635 = vmatpush.msra.mxu0 %v536
        %636 = vmatpush.msra.mxu0 %v535
        %637 = vmatpush.msra.mxu0 %v534
        %638 = vmatmul.f32.gmra.mxu0 %v547
        %v639 = vpop.f32.mrf.mxu0
        %v640 = vadd.f32 %v620, %v639
        %641 = vdwg.mxu0
        %v642 = vadd.f32 %v640, %v593
        %v643 = vmax.f32 %v642, 0.0
        %v644 = vmax.f32 %v596, %v643
        %vm645 = vcmask 130048
        %646 = vst.msk [vmem:[#allocation2] sm:$0xff] %vm645, %v644
        %v647 = vld [vmem:[%s597] sm:$0xff]
        %v648 = vld [vmem:[%s1] sm:$0xff]
        %v649 = vld [vmem:[%s1 + $0x8] sm:$0xff]
        %v650 = vld [vmem:[%s1 + $0x10] sm:$0xff]
        %v651 = vld [vmem:[%s1 + $0x18] sm:$0xff]
        %s652 = scalar_lea.vmem %s489, 24 [#allocation4]
        %v653 = vld [vmem:[%s652] sm:$0xff]
        %v654 = vld [vmem:[%s540] sm:$0xff]
        %v655 = vld [vmem:[%s540 + $0x8] sm:$0xff]
        %v656 = vld [vmem:[%s540 + $0x10] sm:$0xff]
        %v657 = vld [vmem:[%s540 + $0x18] sm:$0xff]
        %v659 = vsel %vm545, %v653, 0
        %661 = vmatpush.msra.mxu0 0.0
        %662 = vmatpush.msra.mxu0 0.0
        %663 = vmatpush.msra.mxu0 0.0
        %664 = vmatpush.msra.mxu0 0.0
        %665 = vmatpush.msra.mxu0 0.0
        %666 = vmatpush.msra.mxu0 0.0
        %667 = vmatpush.msra.mxu0 0.0
        %668 = vmatpush.msra.mxu0 0.0
        %669 = vmatpush.msra.mxu0 0.0
        %670 = vmatpush.msra.mxu0 0.0
        %671 = vmatpush.msra.mxu0 0.0
        %672 = vmatpush.msra.mxu0 0.0
        %673 = vmatpush.msra.mxu0 %v657
        %674 = vmatpush.msra.mxu0 %v656
        %675 = vmatpush.msra.mxu0 %v655
        %676 = vmatpush.msra.mxu0 %v654
        %677 = vmatmul.f32.gmra.mxu0 %v659
        %v678 = vpop.f32.mrf.mxu0
        %v679 = vadd.f32 0.0, %v678
        %680 = vdwg.mxu0
        %v682 = vsel %vm545, %v647, 0
        %684 = vmatpush.msra.mxu0 0.0
        %685 = vmatpush.msra.mxu0 0.0
        %686 = vmatpush.msra.mxu0 0.0
        %687 = vmatpush.msra.mxu0 0.0
        %688 = vmatpush.msra.mxu0 0.0
        %689 = vmatpush.msra.mxu0 0.0
        %690 = vmatpush.msra.mxu0 0.0
        %691 = vmatpush.msra.mxu0 0.0
        %692 = vmatpush.msra.mxu0 0.0
        %693 = vmatpush.msra.mxu0 0.0
        %694 = vmatpush.msra.mxu0 0.0
        %695 = vmatpush.msra.mxu0 0.0
        %696 = vmatpush.msra.mxu0 %v651
        %697 = vmatpush.msra.mxu0 %v650
        %698 = vmatpush.msra.mxu0 %v649
        %699 = vmatpush.msra.mxu0 %v648
        %700 = vmatmul.f32.gmra.mxu0 %v682
        %v701 = vpop.f32.mrf.mxu0
        %v702 = vadd.f32 %v679, %v701
        %703 = vdwg.mxu0
        %v704 = vadd.f32 %v702, %v593
        %v705 = vmax.f32 %v704, 0.0
        %s706 = scalar_lea.vmem %s489, 32 [#allocation4]
        %v707 = vld [vmem:[%s706] sm:$0xff]
        %v709 = vsel %vm545, %v707, 0
        %711 = vmatpush.msra.mxu0 0.0
        %712 = vmatpush.msra.mxu0 0.0
        %713 = vmatpush.msra.mxu0 0.0
        %714 = vmatpush.msra.mxu0 0.0
        %715 = vmatpush.msra.mxu0 0.0
        %716 = vmatpush.msra.mxu0 0.0
        %717 = vmatpush.msra.mxu0 0.0
        %718 = vmatpush.msra.mxu0 0.0
        %719 = vmatpush.msra.mxu0 0.0
        %720 = vmatpush.msra.mxu0 0.0
        %721 = vmatpush.msra.mxu0 0.0
        %722 = vmatpush.msra.mxu0 0.0
        %723 = vmatpush.msra.mxu0 %v657
        %724 = vmatpush.msra.mxu0 %v656
        %725 = vmatpush.msra.mxu0 %v655
        %726 = vmatpush.msra.mxu0 %v654
        %727 = vmatmul.f32.gmra.mxu0 %v709
        %v728 = vpop.f32.mrf.mxu0
        %v729 = vadd.f32 0.0, %v728
        %730 = vdwg.mxu0
        %731 = vmatpush.msra.mxu0 0.0
        %732 = vmatpush.msra.mxu0 0.0
        %733 = vmatpush.msra.mxu0 0.0
        %734 = vmatpush.msra.mxu0 0.0
        %735 = vmatpush.msra.mxu0 0.0
        %736 = vmatpush.msra.mxu0 0.0
        %737 = vmatpush.msra.mxu0 0.0
        %738 = vmatpush.msra.mxu0 0.0
        %739 = vmatpush.msra.mxu0 0.0
        %740 = vmatpush.msra.mxu0 0.0
        %741 = vmatpush.msra.mxu0 0.0
        %742 = vmatpush.msra.mxu0 0.0
        %743 = vmatpush.msra.mxu0 %v651
        %744 = vmatpush.msra.mxu0 %v650
        %745 = vmatpush.msra.mxu0 %v649
        %746 = vmatpush.msra.mxu0 %v648
        %747 = vmatmul.f32.gmra.mxu0 %v659
        %v748 = vpop.f32.mrf.mxu0
        %v749 = vadd.f32 %v729, %v748
        %750 = vdwg.mxu0
        %v751 = vadd.f32 %v749, %v593
        %v752 = vmax.f32 %v751, 0.0
        %v753 = vmax.f32 %v705, %v752
        %s754 = scalar_lea.vmem [#allocation2], 8
        %755 = vst.msk [vmem:[%s754] sm:$0xff] %vm645, %v753
        %v756 = vld [vmem:[%s706] sm:$0xff]
        %v757 = vld [vmem:[%s1] sm:$0xff]
        %v758 = vld [vmem:[%s1 + $0x8] sm:$0xff]
        %v759 = vld [vmem:[%s1 + $0x10] sm:$0xff]
        %v760 = vld [vmem:[%s1 + $0x18] sm:$0xff]
        %s761 = scalar_lea.vmem %s489, 40 [#allocation4]
        %v762 = vld [vmem:[%s761] sm:$0xff]
        %v763 = vld [vmem:[%s540] sm:$0xff]
        %v764 = vld [vmem:[%s540 + $0x8] sm:$0xff]
        %v765 = vld [vmem:[%s540 + $0x10] sm:$0xff]
        %v766 = vld [vmem:[%s540 + $0x18] sm:$0xff]
        %v768 = vsel %vm545, %v762, 0
        %770 = vmatpush.msra.mxu0 0.0
        %771 = vmatpush.msra.mxu0 0.0
        %772 = vmatpush.msra.mxu0 0.0
        %773 = vmatpush.msra.mxu0 0.0
        %774 = vmatpush.msra.mxu0 0.0
        %775 = vmatpush.msra.mxu0 0.0
        %776 = vmatpush.msra.mxu0 0.0
        %777 = vmatpush.msra.mxu0 0.0
        %778 = vmatpush.msra.mxu0 0.0
        %779 = vmatpush.msra.mxu0 0.0
        %780 = vmatpush.msra.mxu0 0.0
        %781 = vmatpush.msra.mxu0 0.0
        %782 = vmatpush.msra.mxu0 %v766
        %783 = vmatpush.msra.mxu0 %v765
        %784 = vmatpush.msra.mxu0 %v764
        %785 = vmatpush.msra.mxu0 %v763
        %786 = vmatmul.f32.gmra.mxu0 %v768
        %v787 = vpop.f32.mrf.mxu0
        %v788 = vadd.f32 0.0, %v787
        %789 = vdwg.mxu0
        %v791 = vsel %vm545, %v756, 0
        %793 = vmatpush.msra.mxu0 0.0
        %794 = vmatpush.msra.mxu0 0.0
        %795 = vmatpush.msra.mxu0 0.0
        %796 = vmatpush.msra.mxu0 0.0
        %797 = vmatpush.msra.mxu0 0.0
        %798 = vmatpush.msra.mxu0 0.0
        %799 = vmatpush.msra.mxu0 0.0
        %800 = vmatpush.msra.mxu0 0.0
        %801 = vmatpush.msra.mxu0 0.0
        %802 = vmatpush.msra.mxu0 0.0
        %803 = vmatpush.msra.mxu0 0.0
        %804 = vmatpush.msra.mxu0 0.0
        %805 = vmatpush.msra.mxu0 %v760
        %806 = vmatpush.msra.mxu0 %v759
        %807 = vmatpush.msra.mxu0 %v758
        %808 = vmatpush.msra.mxu0 %v757
        %809 = vmatmul.f32.gmra.mxu0 %v791
        %v810 = vpop.f32.mrf.mxu0
        %v811 = vadd.f32 %v788, %v810
        %812 = vdwg.mxu0
        %v813 = vadd.f32 %v811, %v593
        %v814 = vmax.f32 %v813, 0.0
        %s815 = scalar_lea.vmem %s489, 48 [#allocation4]
        %v816 = vld [vmem:[%s815] sm:$0xff]
        %v818 = vsel %vm545, %v816, 0
        %820 = vmatpush.msra.mxu0 0.0
        %821 = vmatpush.msra.mxu0 0.0
        %822 = vmatpush.msra.mxu0 0.0
        %823 = vmatpush.msra.mxu0 0.0
        %824 = vmatpush.msra.mxu0 0.0
        %825 = vmatpush.msra.mxu0 0.0
        %826 = vmatpush.msra.mxu0 0.0
        %827 = vmatpush.msra.mxu0 0.0
        %828 = vmatpush.msra.mxu0 0.0
        %829 = vmatpush.msra.mxu0 0.0
        %830 = vmatpush.msra.mxu0 0.0
        %831 = vmatpush.msra.mxu0 0.0
        %832 = vmatpush.msra.mxu0 %v766
        %833 = vmatpush.msra.mxu0 %v765
        %834 = vmatpush.msra.mxu0 %v764
        %835 = vmatpush.msra.mxu0 %v763
        %836 = vmatmul.f32.gmra.mxu0 %v818
        %v837 = vpop.f32.mrf.mxu0
        %v838 = vadd.f32 0.0, %v837
        %839 = vdwg.mxu0
        %840 = vmatpush.msra.mxu0 0.0
        %841 = vmatpush.msra.mxu0 0.0
        %842 = vmatpush.msra.mxu0 0.0
        %843 = vmatpush.msra.mxu0 0.0
        %844 = vmatpush.msra.mxu0 0.0
        %845 = vmatpush.msra.mxu0 0.0
        %846 = vmatpush.msra.mxu0 0.0
        %847 = vmatpush.msra.mxu0 0.0
        %848 = vmatpush.msra.mxu0 0.0
        %849 = vmatpush.msra.mxu0 0.0
        %850 = vmatpush.msra.mxu0 0.0
        %851 = vmatpush.msra.mxu0 0.0
        %852 = vmatpush.msra.mxu0 %v760
        %853 = vmatpush.msra.mxu0 %v759
        %854 = vmatpush.msra.mxu0 %v758
        %855 = vmatpush.msra.mxu0 %v757
        %856 = vmatmul.f32.gmra.mxu0 %v768
        %v857 = vpop.f32.mrf.mxu0
        %v858 = vadd.f32 %v838, %v857
        %859 = vdwg.mxu0
        %v860 = vadd.f32 %v858, %v593
        %v861 = vmax.f32 %v860, 0.0
        %v862 = vmax.f32 %v814, %v861
        %s863 = scalar_lea.vmem [#allocation2], 16
        %864 = vst.msk [vmem:[%s863] sm:$0xff] %vm645, %v862
        %v865 = vld [vmem:[%s815] sm:$0xff]
        %v866 = vld [vmem:[%s1] sm:$0xff]
        %v867 = vld [vmem:[%s1 + $0x8] sm:$0xff]
        %v868 = vld [vmem:[%s1 + $0x10] sm:$0xff]
        %v869 = vld [vmem:[%s1 + $0x18] sm:$0xff]
        %s870 = scalar_lea.vmem %s489, 56 [#allocation4]
        %v871 = vld [vmem:[%s870] sm:$0xff]
        %v872 = vld [vmem:[%s540] sm:$0xff]
        %v873 = vld [vmem:[%s540 + $0x8] sm:$0xff]
        %v874 = vld [vmem:[%s540 + $0x10] sm:$0xff]
        %v875 = vld [vmem:[%s540 + $0x18] sm:$0xff]
        %v877 = vsel %vm545, %v871, 0
        %879 = vmatpush.msra.mxu0 0.0
        %880 = vmatpush.msra.mxu0 0.0
        %881 = vmatpush.msra.mxu0 0.0
        %882 = vmatpush.msra.mxu0 0.0
        %883 = vmatpush.msra.mxu0 0.0
        %884 = vmatpush.msra.mxu0 0.0
        %885 = vmatpush.msra.mxu0 0.0
        %886 = vmatpush.msra.mxu0 0.0
        %887 = vmatpush.msra.mxu0 0.0
        %888 = vmatpush.msra.mxu0 0.0
        %889 = vmatpush.msra.mxu0 0.0
        %890 = vmatpush.msra.mxu0 0.0
        %891 = vmatpush.msra.mxu0 %v875
        %892 = vmatpush.msra.mxu0 %v874
        %893 = vmatpush.msra.mxu0 %v873
        %894 = vmatpush.msra.mxu0 %v872
        %895 = vmatmul.f32.gmra.mxu0 %v877
        %v896 = vpop.f32.mrf.mxu0
        %v897 = vadd.f32 0.0, %v896
        %898 = vdwg.mxu0
        %v900 = vsel %vm545, %v865, 0
        %902 = vmatpush.msra.mxu0 0.0
        %903 = vmatpush.msra.mxu0 0.0
        %904 = vmatpush.msra.mxu0 0.0
        %905 = vmatpush.msra.mxu0 0.0
        %906 = vmatpush.msra.mxu0 0.0
        %907 = vmatpush.msra.mxu0 0.0
        %908 = vmatpush.msra.mxu0 0.0
        %909 = vmatpush.msra.mxu0 0.0
        %910 = vmatpush.msra.mxu0 0.0
        %911 = vmatpush.msra.mxu0 0.0
        %912 = vmatpush.msra.mxu0 0.0
        %913 = vmatpush.msra.mxu0 0.0
        %914 = vmatpush.msra.mxu0 %v869
        %915 = vmatpush.msra.mxu0 %v868
        %916 = vmatpush.msra.mxu0 %v867
        %917 = vmatpush.msra.mxu0 %v866
        %918 = vmatmul.f32.gmra.mxu0 %v900
        %v919 = vpop.f32.mrf.mxu0
        %v920 = vadd.f32 %v897, %v919
        %921 = vdwg.mxu0
        %v922 = vadd.f32 %v920, %v593
        %v923 = vmax.f32 %v922, 0.0
        %s924 = scalar_lea.vmem %s489, 64 [#allocation4]
        %v925 = vld [vmem:[%s924] sm:$0xff]
        %v927 = vsel %vm545, %v925, 0
        %929 = vmatpush.msra.mxu0 0.0
        %930 = vmatpush.msra.mxu0 0.0
        %931 = vmatpush.msra.mxu0 0.0
        %932 = vmatpush.msra.mxu0 0.0
        %933 = vmatpush.msra.mxu0 0.0
        %934 = vmatpush.msra.mxu0 0.0
        %935 = vmatpush.msra.mxu0 0.0
        %936 = vmatpush.msra.mxu0 0.0
        %937 = vmatpush.msra.mxu0 0.0
        %938 = vmatpush.msra.mxu0 0.0
        %939 = vmatpush.msra.mxu0 0.0
        %940 = vmatpush.msra.mxu0 0.0
        %941 = vmatpush.msra.mxu0 %v875
        %942 = vmatpush.msra.mxu0 %v874
        %943 = vmatpush.msra.mxu0 %v873
        %944 = vmatpush.msra.mxu0 %v872
        %945 = vmatmul.f32.gmra.mxu0 %v927
        %v946 = vpop.f32.mrf.mxu0
        %v947 = vadd.f32 0.0, %v946
        %948 = vdwg.mxu0
        %949 = vmatpush.msra.mxu0 0.0
        %950 = vmatpush.msra.mxu0 0.0
        %951 = vmatpush.msra.mxu0 0.0
        %952 = vmatpush.msra.mxu0 0.0
        %953 = vmatpush.msra.mxu0 0.0
        %954 = vmatpush.msra.mxu0 0.0
        %955 = vmatpush.msra.mxu0 0.0
        %956 = vmatpush.msra.mxu0 0.0
        %957 = vmatpush.msra.mxu0 0.0
        %958 = vmatpush.msra.mxu0 0.0
        %959 = vmatpush.msra.mxu0 0.0
        %960 = vmatpush.msra.mxu0 0.0
        %961 = vmatpush.msra.mxu0 %v869
        %962 = vmatpush.msra.mxu0 %v868
        %963 = vmatpush.msra.mxu0 %v867
        %964 = vmatpush.msra.mxu0 %v866
        %965 = vmatmul.f32.gmra.mxu0 %v877
        %v966 = vpop.f32.mrf.mxu0
        %v967 = vadd.f32 %v947, %v966
        %968 = vdwg.mxu0
        %v969 = vadd.f32 %v967, %v593
        %v970 = vmax.f32 %v969, 0.0
        %v971 = vmax.f32 %v923, %v970
        %s972 = scalar_lea.vmem [#allocation2], 24
        %973 = vst.msk [vmem:[%s972] sm:$0xff] %vm645, %v971
        %v974 = vld [vmem:[%s924] sm:$0xff]
        %v975 = vld [vmem:[%s1] sm:$0xff]
        %v976 = vld [vmem:[%s1 + $0x8] sm:$0xff]
        %v977 = vld [vmem:[%s1 + $0x10] sm:$0xff]
        %v978 = vld [vmem:[%s1 + $0x18] sm:$0xff]
        %s979 = scalar_lea.vmem %s489, 72 [#allocation4]
        %v980 = vld [vmem:[%s979] sm:$0xff]
        %v981 = vld [vmem:[%s540] sm:$0xff]
        %v982 = vld [vmem:[%s540 + $0x8] sm:$0xff]
        %v983 = vld [vmem:[%s540 + $0x10] sm:$0xff]
        %v984 = vld [vmem:[%s540 + $0x18] sm:$0xff]
        %v986 = vsel %vm545, %v980, 0
        %988 = vmatpush.msra.mxu0 0.0
        %989 = vmatpush.msra.mxu0 0.0
        %990 = vmatpush.msra.mxu0 0.0
        %991 = vmatpush.msra.mxu0 0.0
        %992 = vmatpush.msra.mxu0 0.0
        %993 = vmatpush.msra.mxu0 0.0
        %994 = vmatpush.msra.mxu0 0.0
        %995 = vmatpush.msra.mxu0 0.0
        %996 = vmatpush.msra.mxu0 0.0
        %997 = vmatpush.msra.mxu0 0.0
        %998 = vmatpush.msra.mxu0 0.0
        %999 = vmatpush.msra.mxu0 0.0
        %1000 = vmatpush.msra.mxu0 %v984
        %1001 = vmatpush.msra.mxu0 %v983
        %1002 = vmatpush.msra.mxu0 %v982
        %1003 = vmatpush.msra.mxu0 %v981
        %1004 = vmatmul.f32.gmra.mxu0 %v986
        %v1005 = vpop.f32.mrf.mxu0
        %v1006 = vadd.f32 0.0, %v1005
        %1007 = vdwg.mxu0
        %v1009 = vsel %vm545, %v974, 0
        %1011 = vmatpush.msra.mxu0 0.0
        %1012 = vmatpush.msra.mxu0 0.0
        %1013 = vmatpush.msra.mxu0 0.0
        %1014 = vmatpush.msra.mxu0 0.0
        %1015 = vmatpush.msra.mxu0 0.0
        %1016 = vmatpush.msra.mxu0 0.0
        %1017 = vmatpush.msra.mxu0 0.0
        %1018 = vmatpush.msra.mxu0 0.0
        %1019 = vmatpush.msra.mxu0 0.0
        %1020 = vmatpush.msra.mxu0 0.0
        %1021 = vmatpush.msra.mxu0 0.0
        %1022 = vmatpush.msra.mxu0 0.0
        %1023 = vmatpush.msra.mxu0 %v978
        %1024 = vmatpush.msra.mxu0 %v977
        %1025 = vmatpush.msra.mxu0 %v976
        %1026 = vmatpush.msra.mxu0 %v975
        %1027 = vmatmul.f32.gmra.mxu0 %v1009
        %v1028 = vpop.f32.mrf.mxu0
        %v1029 = vadd.f32 %v1006, %v1028
        %1030 = vdwg.mxu0
        %v1031 = vadd.f32 %v1029, %v593
        %v1032 = vmax.f32 %v1031, 0.0
        %s1033 = scalar_lea.vmem %s489, 80 [#allocation4]
        %v1034 = vld [vmem:[%s1033] sm:$0xff]
        %v1036 = vsel %vm545, %v1034, 0
        %1038 = vmatpush.msra.mxu0 0.0
        %1039 = vmatpush.msra.mxu0 0.0
        %1040 = vmatpush.msra.mxu0 0.0
        %1041 = vmatpush.msra.mxu0 0.0
        %1042 = vmatpush.msra.mxu0 0.0
        %1043 = vmatpush.msra.mxu0 0.0
        %1044 = vmatpush.msra.mxu0 0.0
        %1045 = vmatpush.msra.mxu0 0.0
        %1046 = vmatpush.msra.mxu0 0.0
        %1047 = vmatpush.msra.mxu0 0.0
        %1048 = vmatpush.msra.mxu0 0.0
        %1049 = vmatpush.msra.mxu0 0.0
        %1050 = vmatpush.msra.mxu0 %v984
        %1051 = vmatpush.msra.mxu0 %v983
        %1052 = vmatpush.msra.mxu0 %v982
        %1053 = vmatpush.msra.mxu0 %v981
        %1054 = vmatmul.f32.gmra.mxu0 %v1036
        %v1055 = vpop.f32.mrf.mxu0
        %v1056 = vadd.f32 0.0, %v1055
        %1057 = vdwg.mxu0
        %1058 = vmatpush.msra.mxu0 0.0
        %1059 = vmatpush.msra.mxu0 0.0
        %1060 = vmatpush.msra.mxu0 0.0
        %1061 = vmatpush.msra.mxu0 0.0
        %1062 = vmatpush.msra.mxu0 0.0
        %1063 = vmatpush.msra.mxu0 0.0
        %1064 = vmatpush.msra.mxu0 0.0
        %1065 = vmatpush.msra.mxu0 0.0
        %1066 = vmatpush.msra.mxu0 0.0
        %1067 = vmatpush.msra.mxu0 0.0
        %1068 = vmatpush.msra.mxu0 0.0
        %1069 = vmatpush.msra.mxu0 0.0
        %1070 = vmatpush.msra.mxu0 %v978
        %1071 = vmatpush.msra.mxu0 %v977
        %1072 = vmatpush.msra.mxu0 %v976
        %1073 = vmatpush.msra.mxu0 %v975
        %1074 = vmatmul.f32.gmra.mxu0 %v986
        %v1075 = vpop.f32.mrf.mxu0
        %v1076 = vadd.f32 %v1056, %v1075
        %1077 = vdwg.mxu0
        %v1078 = vadd.f32 %v1076, %v593
        %v1079 = vmax.f32 %v1078, 0.0
        %v1080 = vmax.f32 %v1032, %v1079
        %s1081 = scalar_lea.vmem [#allocation2], 32
        %1082 = vst.msk [vmem:[%s1081] sm:$0xff] %vm645, %v1080
        %v1083 = vld [vmem:[%s1033] sm:$0xff]
        %v1084 = vld [vmem:[%s1] sm:$0xff]
        %v1085 = vld [vmem:[%s1 + $0x8] sm:$0xff]
        %v1086 = vld [vmem:[%s1 + $0x10] sm:$0xff]
        %v1087 = vld [vmem:[%s1 + $0x18] sm:$0xff]
        %s1088 = scalar_lea.vmem %s489, 88 [#allocation4]
        %v1089 = vld [vmem:[%s1088] sm:$0xff]
        %v1090 = vld [vmem:[%s540] sm:$0xff]
        %v1091 = vld [vmem:[%s540 + $0x8] sm:$0xff]
        %v1092 = vld [vmem:[%s540 + $0x10] sm:$0xff]
        %v1093 = vld [vmem:[%s540 + $0x18] sm:$0xff]
        %v1095 = vsel %vm545, %v1089, 0
        %1097 = vmatpush.msra.mxu0 0.0
        %1098 = vmatpush.msra.mxu0 0.0
        %1099 = vmatpush.msra.mxu0 0.0
        %1100 = vmatpush.msra.mxu0 0.0
        %1101 = vmatpush.msra.mxu0 0.0
        %1102 = vmatpush.msra.mxu0 0.0
        %1103 = vmatpush.msra.mxu0 0.0
        %1104 = vmatpush.msra.mxu0 0.0
        %1105 = vmatpush.msra.mxu0 0.0
        %1106 = vmatpush.msra.mxu0 0.0
        %1107 = vmatpush.msra.mxu0 0.0
        %1108 = vmatpush.msra.mxu0 0.0
        %1109 = vmatpush.msra.mxu0 %v1093
        %1110 = vmatpush.msra.mxu0 %v1092
        %1111 = vmatpush.msra.mxu0 %v1091
        %1112 = vmatpush.msra.mxu0 %v1090
        %1113 = vmatmul.f32.gmra.mxu0 %v1095
        %v1114 = vpop.f32.mrf.mxu0
        %v1115 = vadd.f32 0.0, %v1114
        %1116 = vdwg.mxu0
        %v1118 = vsel %vm545, %v1083, 0
        %1120 = vmatpush.msra.mxu0 0.0
        %1121 = vmatpush.msra.mxu0 0.0
        %1122 = vmatpush.msra.mxu0 0.0
        %1123 = vmatpush.msra.mxu0 0.0
        %1124 = vmatpush.msra.mxu0 0.0
        %1125 = vmatpush.msra.mxu0 0.0
        %1126 = vmatpush.msra.mxu0 0.0
        %1127 = vmatpush.msra.mxu0 0.0
        %1128 = vmatpush.msra.mxu0 0.0
        %1129 = vmatpush.msra.mxu0 0.0
        %1130 = vmatpush.msra.mxu0 0.0
        %1131 = vmatpush.msra.mxu0 0.0
        %1132 = vmatpush.msra.mxu0 %v1087
        %1133 = vmatpush.msra.mxu0 %v1086
        %1134 = vmatpush.msra.mxu0 %v1085
        %1135 = vmatpush.msra.mxu0 %v1084
        %1136 = vmatmul.f32.gmra.mxu0 %v1118
        %v1137 = vpop.f32.mrf.mxu0
        %v1138 = vadd.f32 %v1115, %v1137
        %1139 = vdwg.mxu0
        %v1140 = vadd.f32 %v1138, %v593
        %v1141 = vmax.f32 %v1140, 0.0
        %s1142 = scalar_lea.vmem %s489, 96 [#allocation4]
        %v1143 = vld [vmem:[%s1142] sm:$0xff]
        %v1145 = vsel %vm545, %v1143, 0
        %1147 = vmatpush.msra.mxu0 0.0
        %1148 = vmatpush.msra.mxu0 0.0
        %1149 = vmatpush.msra.mxu0 0.0
        %1150 = vmatpush.msra.mxu0 0.0
        %1151 = vmatpush.msra.mxu0 0.0
        %1152 = vmatpush.msra.mxu0 0.0
        %1153 = vmatpush.msra.mxu0 0.0
        %1154 = vmatpush.msra.mxu0 0.0
        %1155 = vmatpush.msra.mxu0 0.0
        %1156 = vmatpush.msra.mxu0 0.0
        %1157 = vmatpush.msra.mxu0 0.0
        %1158 = vmatpush.msra.mxu0 0.0
        %1159 = vmatpush.msra.mxu0 %v1093
        %1160 = vmatpush.msra.mxu0 %v1092
        %1161 = vmatpush.msra.mxu0 %v1091
        %1162 = vmatpush.msra.mxu0 %v1090
        %1163 = vmatmul.f32.gmra.mxu0 %v1145
        %v1164 = vpop.f32.mrf.mxu0
        %v1165 = vadd.f32 0.0, %v1164
        %1166 = vdwg.mxu0
        %1167 = vmatpush.msra.mxu0 0.0
        %1168 = vmatpush.msra.mxu0 0.0
        %1169 = vmatpush.msra.mxu0 0.0
        %1170 = vmatpush.msra.mxu0 0.0
        %1171 = vmatpush.msra.mxu0 0.0
        %1172 = vmatpush.msra.mxu0 0.0
        %1173 = vmatpush.msra.mxu0 0.0
        %1174 = vmatpush.msra.mxu0 0.0
        %1175 = vmatpush.msra.mxu0 0.0
        %1176 = vmatpush.msra.mxu0 0.0
        %1177 = vmatpush.msra.mxu0 0.0
        %1178 = vmatpush.msra.mxu0 0.0
        %1179 = vmatpush.msra.mxu0 %v1087
        %1180 = vmatpush.msra.mxu0 %v1086
        %1181 = vmatpush.msra.mxu0 %v1085
        %1182 = vmatpush.msra.mxu0 %v1084
        %1183 = vmatmul.f32.gmra.mxu0 %v1095
        %v1184 = vpop.f32.mrf.mxu0
        %v1185 = vadd.f32 %v1165, %v1184
        %1186 = vdwg.mxu0
        %v1187 = vadd.f32 %v1185, %v593
        %v1188 = vmax.f32 %v1187, 0.0
        %v1189 = vmax.f32 %v1141, %v1188
        %s1190 = scalar_lea.vmem [#allocation2], 40
        %1191 = vst.msk [vmem:[%s1190] sm:$0xff] %vm645, %v1189
        %v1192 = vld [vmem:[%s1142] sm:$0xff]
        %v1193 = vld [vmem:[%s1] sm:$0xff]
        %v1194 = vld [vmem:[%s1 + $0x8] sm:$0xff]
        %v1195 = vld [vmem:[%s1 + $0x10] sm:$0xff]
        %v1196 = vld [vmem:[%s1 + $0x18] sm:$0xff]
        %s1197 = scalar_lea.vmem %s489, 104 [#allocation4]
        %v1198 = vld [vmem:[%s1197] sm:$0xff]
        %v1199 = vld [vmem:[%s540] sm:$0xff]
        %v1200 = vld [vmem:[%s540 + $0x8] sm:$0xff]
        %v1201 = vld [vmem:[%s540 + $0x10] sm:$0xff]
        %v1202 = vld [vmem:[%s540 + $0x18] sm:$0xff]
        %v1204 = vsel %vm545, %v1198, 0
        %1206 = vmatpush.msra.mxu0 0.0
        %1207 = vmatpush.msra.mxu0 0.0
        %1208 = vmatpush.msra.mxu0 0.0
        %1209 = vmatpush.msra.mxu0 0.0
        %1210 = vmatpush.msra.mxu0 0.0
        %1211 = vmatpush.msra.mxu0 0.0
        %1212 = vmatpush.msra.mxu0 0.0
        %1213 = vmatpush.msra.mxu0 0.0
        %1214 = vmatpush.msra.mxu0 0.0
        %1215 = vmatpush.msra.mxu0 0.0
        %1216 = vmatpush.msra.mxu0 0.0
        %1217 = vmatpush.msra.mxu0 0.0
        %1218 = vmatpush.msra.mxu0 %v1202
        %1219 = vmatpush.msra.mxu0 %v1201
        %1220 = vmatpush.msra.mxu0 %v1200
        %1221 = vmatpush.msra.mxu0 %v1199
        %1222 = vmatmul.f32.gmra.mxu0 %v1204
        %v1223 = vpop.f32.mrf.mxu0
        %v1224 = vadd.f32 0.0, %v1223
        %1225 = vdwg.mxu0
        %v1227 = vsel %vm545, %v1192, 0
        %1229 = vmatpush.msra.mxu0 0.0
        %1230 = vmatpush.msra.mxu0 0.0
        %1231 = vmatpush.msra.mxu0 0.0
        %1232 = vmatpush.msra.mxu0 0.0
        %1233 = vmatpush.msra.mxu0 0.0
        %1234 = vmatpush.msra.mxu0 0.0
        %1235 = vmatpush.msra.mxu0 0.0
        %1236 = vmatpush.msra.mxu0 0.0
        %1237 = vmatpush.msra.mxu0 0.0
        %1238 = vmatpush.msra.mxu0 0.0
        %1239 = vmatpush.msra.mxu0 0.0
        %1240 = vmatpush.msra.mxu0 0.0
        %1241 = vmatpush.msra.mxu0 %v1196
        %1242 = vmatpush.msra.mxu0 %v1195
        %1243 = vmatpush.msra.mxu0 %v1194
        %1244 = vmatpush.msra.mxu0 %v1193
        %1245 = vmatmul.f32.gmra.mxu0 %v1227
        %v1246 = vpop.f32.mrf.mxu0
        %v1247 = vadd.f32 %v1224, %v1246
        %1248 = vdwg.mxu0
        %v1249 = vadd.f32 %v1247, %v593
        %v1250 = vmax.f32 %v1249, 0.0
        %s1251 = scalar_lea.vmem %s489, 112 [#allocation4]
        %v1252 = vld [vmem:[%s1251] sm:$0xff]
        %v1254 = vsel %vm545, %v1252, 0
        %1256 = vmatpush.msra.mxu0 0.0
        %1257 = vmatpush.msra.mxu0 0.0
        %1258 = vmatpush.msra.mxu0 0.0
        %1259 = vmatpush.msra.mxu0 0.0
        %1260 = vmatpush.msra.mxu0 0.0
        %1261 = vmatpush.msra.mxu0 0.0
        %1262 = vmatpush.msra.mxu0 0.0
        %1263 = vmatpush.msra.mxu0 0.0
        %1264 = vmatpush.msra.mxu0 0.0
        %1265 = vmatpush.msra.mxu0 0.0
        %1266 = vmatpush.msra.mxu0 0.0
        %1267 = vmatpush.msra.mxu0 0.0
        %1268 = vmatpush.msra.mxu0 %v1202
        %1269 = vmatpush.msra.mxu0 %v1201
        %1270 = vmatpush.msra.mxu0 %v1200
        %1271 = vmatpush.msra.mxu0 %v1199
        %1272 = vmatmul.f32.gmra.mxu0 %v1254
        %v1273 = vpop.f32.mrf.mxu0
        %v1274 = vadd.f32 0.0, %v1273
        %1275 = vdwg.mxu0
        %1276 = vmatpush.msra.mxu0 0.0
        %1277 = vmatpush.msra.mxu0 0.0
        %1278 = vmatpush.msra.mxu0 0.0
        %1279 = vmatpush.msra.mxu0 0.0
        %1280 = vmatpush.msra.mxu0 0.0
        %1281 = vmatpush.msra.mxu0 0.0
        %1282 = vmatpush.msra.mxu0 0.0
        %1283 = vmatpush.msra.mxu0 0.0
        %1284 = vmatpush.msra.mxu0 0.0
        %1285 = vmatpush.msra.mxu0 0.0
        %1286 = vmatpush.msra.mxu0 0.0
        %1287 = vmatpush.msra.mxu0 0.0
        %1288 = vmatpush.msra.mxu0 %v1196
        %1289 = vmatpush.msra.mxu0 %v1195
        %1290 = vmatpush.msra.mxu0 %v1194
        %1291 = vmatpush.msra.mxu0 %v1193
        %1292 = vmatmul.f32.gmra.mxu0 %v1204
        %v1293 = vpop.f32.mrf.mxu0
        %v1294 = vadd.f32 %v1274, %v1293
        %1295 = vdwg.mxu0
        %v1296 = vadd.f32 %v1294, %v593
        %v1297 = vmax.f32 %v1296, 0.0
        %v1298 = vmax.f32 %v1250, %v1297
        %s1299 = scalar_lea.vmem [#allocation2], 48
        %1300 = vst.msk [vmem:[%s1299] sm:$0xff] %vm645, %v1298
        %v1301 = vld [vmem:[#allocation2] sm:$0xff]
        %v1302 = vld [vmem:[%s3] sm:$0xff]
        %v1303 = vld [vmem:[%s3 + $0x8] sm:$0xff]
        %v1304 = vld [vmem:[%s754] sm:$0xff]
        %s1305 = scalar_lea.vmem %s3, 16
        %v1306 = vld [vmem:[%s1305] sm:$0xff]
        %v1307 = vld [vmem:[%s1305 + $0x8] sm:$0xff]
        %v1309 = vsel %vm645, %v1304, 0
        %1311 = vmatpush.msra.mxu0 0.0
        %1312 = vmatpush.msra.mxu0 0.0
        %1313 = vmatpush.msra.mxu0 0.0
        %1314 = vmatpush.msra.mxu0 0.0
        %1315 = vmatpush.msra.mxu0 0.0
        %1316 = vmatpush.msra.mxu0 0.0
        %1317 = vmatpush.msra.mxu0 0.0
        %1318 = vmatpush.msra.mxu0 0.0
        %1319 = vmatpush.msra.mxu0 0.0
        %1320 = vmatpush.msra.mxu0 0.0
        %1321 = vmatpush.msra.mxu0 0.0
        %1322 = vmatpush.msra.mxu0 0.0
        %1323 = vmatpush.msra.mxu0 0.0
        %1324 = vmatpush.msra.mxu0 0.0
        %1325 = vmatpush.msra.mxu0 %v1307
        %1326 = vmatpush.msra.mxu0 %v1306
        %1327 = vmatmul.f32.gmra.mxu0 %v1309
        %v1328 = vpop.f32.mrf.mxu0
        %v1329 = vadd.f32 0.0, %v1328
        %1330 = vdwg.mxu0
        %v1332 = vsel %vm645, %v1301, 0
        %1334 = vmatpush.msra.mxu0 0.0
        %1335 = vmatpush.msra.mxu0 0.0
        %1336 = vmatpush.msra.mxu0 0.0
        %1337 = vmatpush.msra.mxu0 0.0
        %1338 = vmatpush.msra.mxu0 0.0
        %1339 = vmatpush.msra.mxu0 0.0
        %1340 = vmatpush.msra.mxu0 0.0
        %1341 = vmatpush.msra.mxu0 0.0
        %1342 = vmatpush.msra.mxu0 0.0
        %1343 = vmatpush.msra.mxu0 0.0
        %1344 = vmatpush.msra.mxu0 0.0
        %1345 = vmatpush.msra.mxu0 0.0
        %1346 = vmatpush.msra.mxu0 0.0
        %1347 = vmatpush.msra.mxu0 0.0
        %1348 = vmatpush.msra.mxu0 %v1303
        %1349 = vmatpush.msra.mxu0 %v1302
        %1350 = vmatmul.f32.gmra.mxu0 %v1332
        %v1351 = vpop.f32.mrf.mxu0
        %v1352 = vadd.f32 %v1329, %v1351
        %1353 = vdwg.mxu0
        %v1355 = vperm.slane %v531, 0
        %v1357 = vadd.f32 %v1352, %v1355
        %v1358 = vmax.f32 %v1357, 0.0
        %v1359 = vld [vmem:[%s863] sm:$0xff]
        %v1361 = vsel %vm645, %v1359, 0
        %1363 = vmatpush.msra.mxu0 0.0
        %1364 = vmatpush.msra.mxu0 0.0
        %1365 = vmatpush.msra.mxu0 0.0
        %1366 = vmatpush.msra.mxu0 0.0
        %1367 = vmatpush.msra.mxu0 0.0
        %1368 = vmatpush.msra.mxu0 0.0
        %1369 = vmatpush.msra.mxu0 0.0
        %1370 = vmatpush.msra.mxu0 0.0
        %1371 = vmatpush.msra.mxu0 0.0
        %1372 = vmatpush.msra.mxu0 0.0
        %1373 = vmatpush.msra.mxu0 0.0
        %1374 = vmatpush.msra.mxu0 0.0
        %1375 = vmatpush.msra.mxu0 0.0
        %1376 = vmatpush.msra.mxu0 0.0
        %1377 = vmatpush.msra.mxu0 %v1307
        %1378 = vmatpush.msra.mxu0 %v1306
        %1379 = vmatmul.f32.gmra.mxu0 %v1361
        %v1380 = vpop.f32.mrf.mxu0
        %v1381 = vadd.f32 0.0, %v1380
        %1382 = vdwg.mxu0
        %1383 = vmatpush.msra.mxu0 0.0
        %1384 = vmatpush.msra.mxu0 0.0
        %1385 = vmatpush.msra.mxu0 0.0
        %1386 = vmatpush.msra.mxu0 0.0
        %1387 = vmatpush.msra.mxu0 0.0
        %1388 = vmatpush.msra.mxu0 0.0
        %1389 = vmatpush.msra.mxu0 0.0
        %1390 = vmatpush.msra.mxu0 0.0
        %1391 = vmatpush.msra.mxu0 0.0
        %1392 = vmatpush.msra.mxu0 0.0
        %1393 = vmatpush.msra.mxu0 0.0
        %1394 = vmatpush.msra.mxu0 0.0
        %1395 = vmatpush.msra.mxu0 0.0
        %1396 = vmatpush.msra.mxu0 0.0
        %1397 = vmatpush.msra.mxu0 %v1303
        %1398 = vmatpush.msra.mxu0 %v1302
        %1399 = vmatmul.f32.gmra.mxu0 %v1309
        %v1400 = vpop.f32.mrf.mxu0
        %v1401 = vadd.f32 %v1381, %v1400
        %1402 = vdwg.mxu0
        %v1403 = vadd.f32 %v1401, %v1355
        %v1404 = vmax.f32 %v1403, 0.0
        %v1405 = vmax.f32 %v1358, %v1404
        %1406 = vst.msk [vmem:[#allocation3] sm:$0xff] %vm645, %v1405
        %v1407 = vld [vmem:[%s863] sm:$0xff]
        %v1408 = vld [vmem:[%s3] sm:$0xff]
        %v1409 = vld [vmem:[%s3 + $0x8] sm:$0xff]
        %v1410 = vld [vmem:[%s972] sm:$0xff]
        %v1411 = vld [vmem:[%s1305] sm:$0xff]
        %v1412 = vld [vmem:[%s1305 + $0x8] sm:$0xff]
        %v1414 = vsel %vm645, %v1410, 0
        %1416 = vmatpush.msra.mxu0 0.0
        %1417 = vmatpush.msra.mxu0 0.0
        %1418 = vmatpush.msra.mxu0 0.0
        %1419 = vmatpush.msra.mxu0 0.0
        %1420 = vmatpush.msra.mxu0 0.0
        %1421 = vmatpush.msra.mxu0 0.0
        %1422 = vmatpush.msra.mxu0 0.0
        %1423 = vmatpush.msra.mxu0 0.0
        %1424 = vmatpush.msra.mxu0 0.0
        %1425 = vmatpush.msra.mxu0 0.0
        %1426 = vmatpush.msra.mxu0 0.0
        %1427 = vmatpush.msra.mxu0 0.0
        %1428 = vmatpush.msra.mxu0 0.0
        %1429 = vmatpush.msra.mxu0 0.0
        %1430 = vmatpush.msra.mxu0 %v1412
        %1431 = vmatpush.msra.mxu0 %v1411
        %1432 = vmatmul.f32.gmra.mxu0 %v1414
        %v1433 = vpop.f32.mrf.mxu0
        %v1434 = vadd.f32 0.0, %v1433
        %1435 = vdwg.mxu0
        %v1437 = vsel %vm645, %v1407, 0
        %1439 = vmatpush.msra.mxu0 0.0
        %1440 = vmatpush.msra.mxu0 0.0
        %1441 = vmatpush.msra.mxu0 0.0
        %1442 = vmatpush.msra.mxu0 0.0
        %1443 = vmatpush.msra.mxu0 0.0
        %1444 = vmatpush.msra.mxu0 0.0
        %1445 = vmatpush.msra.mxu0 0.0
        %1446 = vmatpush.msra.mxu0 0.0
        %1447 = vmatpush.msra.mxu0 0.0
        %1448 = vmatpush.msra.mxu0 0.0
        %1449 = vmatpush.msra.mxu0 0.0
        %1450 = vmatpush.msra.mxu0 0.0
        %1451 = vmatpush.msra.mxu0 0.0
        %1452 = vmatpush.msra.mxu0 0.0
        %1453 = vmatpush.msra.mxu0 %v1409
        %1454 = vmatpush.msra.mxu0 %v1408
        %1455 = vmatmul.f32.gmra.mxu0 %v1437
        %v1456 = vpop.f32.mrf.mxu0
        %v1457 = vadd.f32 %v1434, %v1456
        %1458 = vdwg.mxu0
        %v1459 = vadd.f32 %v1457, %v1355
        %v1460 = vmax.f32 %v1459, 0.0
        %v1461 = vld [vmem:[%s1081] sm:$0xff]
        %v1463 = vsel %vm645, %v1461, 0
        %1465 = vmatpush.msra.mxu0 0.0
        %1466 = vmatpush.msra.mxu0 0.0
        %1467 = vmatpush.msra.mxu0 0.0
        %1468 = vmatpush.msra.mxu0 0.0
        %1469 = vmatpush.msra.mxu0 0.0
        %1470 = vmatpush.msra.mxu0 0.0
        %1471 = vmatpush.msra.mxu0 0.0
        %1472 = vmatpush.msra.mxu0 0.0
        %1473 = vmatpush.msra.mxu0 0.0
        %1474 = vmatpush.msra.mxu0 0.0
        %1475 = vmatpush.msra.mxu0 0.0
        %1476 = vmatpush.msra.mxu0 0.0
        %1477 = vmatpush.msra.mxu0 0.0
        %1478 = vmatpush.msra.mxu0 0.0
        %1479 = vmatpush.msra.mxu0 %v1412
        %1480 = vmatpush.msra.mxu0 %v1411
        %1481 = vmatmul.f32.gmra.mxu0 %v1463
        %v1482 = vpop.f32.mrf.mxu0
        %v1483 = vadd.f32 0.0, %v1482
        %1484 = vdwg.mxu0
        %1485 = vmatpush.msra.mxu0 0.0
        %1486 = vmatpush.msra.mxu0 0.0
        %1487 = vmatpush.msra.mxu0 0.0
        %1488 = vmatpush.msra.mxu0 0.0
        %1489 = vmatpush.msra.mxu0 0.0
        %1490 = vmatpush.msra.mxu0 0.0
        %1491 = vmatpush.msra.mxu0 0.0
        %1492 = vmatpush.msra.mxu0 0.0
        %1493 = vmatpush.msra.mxu0 0.0
        %1494 = vmatpush.msra.mxu0 0.0
        %1495 = vmatpush.msra.mxu0 0.0
        %1496 = vmatpush.msra.mxu0 0.0
        %1497 = vmatpush.msra.mxu0 0.0
        %1498 = vmatpush.msra.mxu0 0.0
        %1499 = vmatpush.msra.mxu0 %v1409
        %1500 = vmatpush.msra.mxu0 %v1408
        %1501 = vmatmul.f32.gmra.mxu0 %v1414
        %v1502 = vpop.f32.mrf.mxu0
        %v1503 = vadd.f32 %v1483, %v1502
        %1504 = vdwg.mxu0
        %v1505 = vadd.f32 %v1503, %v1355
        %v1506 = vmax.f32 %v1505, 0.0
        %v1507 = vmax.f32 %v1460, %v1506
        %s1508 = scalar_lea.vmem [#allocation3], 8
        %1509 = vst.msk [vmem:[%s1508] sm:$0xff] %vm645, %v1507
        %v1510 = vld [vmem:[%s1081] sm:$0xff]
        %v1511 = vld [vmem:[%s3] sm:$0xff]
        %v1512 = vld [vmem:[%s3 + $0x8] sm:$0xff]
        %v1513 = vld [vmem:[%s1190] sm:$0xff]
        %v1514 = vld [vmem:[%s1305] sm:$0xff]
        %v1515 = vld [vmem:[%s1305 + $0x8] sm:$0xff]
        %v1517 = vsel %vm645, %v1513, 0
        %1519 = vmatpush.msra.mxu0 0.0
        %1520 = vmatpush.msra.mxu0 0.0
        %1521 = vmatpush.msra.mxu0 0.0
        %1522 = vmatpush.msra.mxu0 0.0
        %1523 = vmatpush.msra.mxu0 0.0
        %1524 = vmatpush.msra.mxu0 0.0
        %1525 = vmatpush.msra.mxu0 0.0
        %1526 = vmatpush.msra.mxu0 0.0
        %1527 = vmatpush.msra.mxu0 0.0
        %1528 = vmatpush.msra.mxu0 0.0
        %1529 = vmatpush.msra.mxu0 0.0
        %1530 = vmatpush.msra.mxu0 0.0
        %1531 = vmatpush.msra.mxu0 0.0
        %1532 = vmatpush.msra.mxu0 0.0
        %1533 = vmatpush.msra.mxu0 %v1515
        %1534 = vmatpush.msra.mxu0 %v1514
        %1535 = vmatmul.f32.gmra.mxu0 %v1517
        %v1536 = vpop.f32.mrf.mxu0
        %v1537 = vadd.f32 0.0, %v1536
        %1538 = vdwg.mxu0
        %v1540 = vsel %vm645, %v1510, 0
        %1542 = vmatpush.msra.mxu0 0.0
        %1543 = vmatpush.msra.mxu0 0.0
        %1544 = vmatpush.msra.mxu0 0.0
        %1545 = vmatpush.msra.mxu0 0.0
        %1546 = vmatpush.msra.mxu0 0.0
        %1547 = vmatpush.msra.mxu0 0.0
        %1548 = vmatpush.msra.mxu0 0.0
        %1549 = vmatpush.msra.mxu0 0.0
        %1550 = vmatpush.msra.mxu0 0.0
        %1551 = vmatpush.msra.mxu0 0.0
        %1552 = vmatpush.msra.mxu0 0.0
        %1553 = vmatpush.msra.mxu0 0.0
        %1554 = vmatpush.msra.mxu0 0.0
        %1555 = vmatpush.msra.mxu0 0.0
        %1556 = vmatpush.msra.mxu0 %v1512
        %1557 = vmatpush.msra.mxu0 %v1511
        %1558 = vmatmul.f32.gmra.mxu0 %v1540
        %v1559 = vpop.f32.mrf.mxu0
        %v1560 = vadd.f32 %v1537, %v1559
        %1561 = vdwg.mxu0
        %v1562 = vadd.f32 %v1560, %v1355
        %v1563 = vmax.f32 %v1562, 0.0
        %v1564 = vld [vmem:[%s1299] sm:$0xff]
        %v1566 = vsel %vm645, %v1564, 0
        %1568 = vmatpush.msra.mxu0 0.0
        %1569 = vmatpush.msra.mxu0 0.0
        %1570 = vmatpush.msra.mxu0 0.0
        %1571 = vmatpush.msra.mxu0 0.0
        %1572 = vmatpush.msra.mxu0 0.0
        %1573 = vmatpush.msra.mxu0 0.0
        %1574 = vmatpush.msra.mxu0 0.0
        %1575 = vmatpush.msra.mxu0 0.0
        %1576 = vmatpush.msra.mxu0 0.0
        %1577 = vmatpush.msra.mxu0 0.0
        %1578 = vmatpush.msra.mxu0 0.0
        %1579 = vmatpush.msra.mxu0 0.0
        %1580 = vmatpush.msra.mxu0 0.0
        %1581 = vmatpush.msra.mxu0 0.0
        %1582 = vmatpush.msra.mxu0 %v1515
        %1583 = vmatpush.msra.mxu0 %v1514
        %1584 = vmatmul.f32.gmra.mxu0 %v1566
        %v1585 = vpop.f32.mrf.mxu0
        %v1586 = vadd.f32 0.0, %v1585
        %1587 = vdwg.mxu0
        %1588 = vmatpush.msra.mxu0 0.0
        %1589 = vmatpush.msra.mxu0 0.0
        %1590 = vmatpush.msra.mxu0 0.0
        %1591 = vmatpush.msra.mxu0 0.0
        %1592 = vmatpush.msra.mxu0 0.0
        %1593 = vmatpush.msra.mxu0 0.0
        %1594 = vmatpush.msra.mxu0 0.0
        %1595 = vmatpush.msra.mxu0 0.0
        %1596 = vmatpush.msra.mxu0 0.0
        %1597 = vmatpush.msra.mxu0 0.0
        %1598 = vmatpush.msra.mxu0 0.0
        %1599 = vmatpush.msra.mxu0 0.0
        %1600 = vmatpush.msra.mxu0 0.0
        %1601 = vmatpush.msra.mxu0 0.0
        %1602 = vmatpush.msra.mxu0 %v1512
        %1603 = vmatpush.msra.mxu0 %v1511
        %1604 = vmatmul.f32.gmra.mxu0 %v1517
        %v1605 = vpop.f32.mrf.mxu0
        %v1606 = vadd.f32 %v1586, %v1605
        %1607 = vdwg.mxu0
        %v1608 = vadd.f32 %v1606, %v1355
        %v1609 = vmax.f32 %v1608, 0.0
        %v1610 = vmax.f32 %v1563, %v1609
        %s1611 = scalar_lea.vmem [#allocation3], 16
        %1612 = vst.msk [vmem:[%s1611] sm:$0xff] %vm645, %v1610
        %v1613 = vld [vmem:[#allocation3] sm:$0xff]
        %v1614 = vld [vmem:[%s5] sm:$0xff]
        %v1615 = vld [vmem:[%s5 + $0x8] sm:$0xff]
        %v1616 = vld [vmem:[%s1508] sm:$0xff]
        %s1617 = scalar_lea.vmem %s5, 16
        %v1618 = vld [vmem:[%s1617] sm:$0xff]
        %v1619 = vld [vmem:[%s1617 + $0x8] sm:$0xff]
        %v1621 = vsel %vm645, %v1616, 0
        %1623 = vmatpush.msra.mxu0 0.0
        %1624 = vmatpush.msra.mxu0 0.0
        %1625 = vmatpush.msra.mxu0 0.0
        %1626 = vmatpush.msra.mxu0 0.0
        %1627 = vmatpush.msra.mxu0 0.0
        %1628 = vmatpush.msra.mxu0 0.0
        %1629 = vmatpush.msra.mxu0 0.0
        %1630 = vmatpush.msra.mxu0 0.0
        %1631 = vmatpush.msra.mxu0 0.0
        %1632 = vmatpush.msra.mxu0 0.0
        %1633 = vmatpush.msra.mxu0 0.0
        %1634 = vmatpush.msra.mxu0 0.0
        %1635 = vmatpush.msra.mxu0 0.0
        %1636 = vmatpush.msra.mxu0 0.0
        %1637 = vmatpush.msra.mxu0 %v1619
        %1638 = vmatpush.msra.mxu0 %v1618
        %1639 = vmatmul.f32.gmra.mxu0 %v1621
        %v1640 = vpop.f32.mrf.mxu0
        %v1641 = vadd.f32 0.0, %v1640
        %1642 = vdwg.mxu0
        %v1644 = vsel %vm645, %v1613, 0
        %1646 = vmatpush.msra.mxu0 0.0
        %1647 = vmatpush.msra.mxu0 0.0
        %1648 = vmatpush.msra.mxu0 0.0
        %1649 = vmatpush.msra.mxu0 0.0
        %1650 = vmatpush.msra.mxu0 0.0
        %1651 = vmatpush.msra.mxu0 0.0
        %1652 = vmatpush.msra.mxu0 0.0
        %1653 = vmatpush.msra.mxu0 0.0
        %1654 = vmatpush.msra.mxu0 0.0
        %1655 = vmatpush.msra.mxu0 0.0
        %1656 = vmatpush.msra.mxu0 0.0
        %1657 = vmatpush.msra.mxu0 0.0
        %1658 = vmatpush.msra.mxu0 0.0
        %1659 = vmatpush.msra.mxu0 0.0
        %1660 = vmatpush.msra.mxu0 %v1615
        %1661 = vmatpush.msra.mxu0 %v1614
        %1662 = vmatmul.f32.gmra.mxu0 %v1644
        %v1663 = vpop.f32.mrf.mxu0
        %v1664 = vadd.f32 %v1641, %v1663
        %1665 = vdwg.mxu0
        %v1667 = vperm.slane %v532, 0
        %v1669 = vadd.f32 %v1664, %v1667
        %v1670 = vmax.f32 %v1669, 0.0
        %v1671 = vld [vmem:[%s1611] sm:$0xff]
        %v1673 = vsel %vm645, %v1671, 0
        %1675 = vmatpush.msra.mxu0 0.0
        %1676 = vmatpush.msra.mxu0 0.0
        %1677 = vmatpush.msra.mxu0 0.0
        %1678 = vmatpush.msra.mxu0 0.0
        %1679 = vmatpush.msra.mxu0 0.0
        %1680 = vmatpush.msra.mxu0 0.0
        %1681 = vmatpush.msra.mxu0 0.0
        %1682 = vmatpush.msra.mxu0 0.0
        %1683 = vmatpush.msra.mxu0 0.0
        %1684 = vmatpush.msra.mxu0 0.0
        %1685 = vmatpush.msra.mxu0 0.0
        %1686 = vmatpush.msra.mxu0 0.0
        %1687 = vmatpush.msra.mxu0 0.0
        %1688 = vmatpush.msra.mxu0 0.0
        %1689 = vmatpush.msra.mxu0 %v1619
        %1690 = vmatpush.msra.mxu0 %v1618
        %1691 = vmatmul.f32.gmra.mxu0 %v1673
        %v1692 = vpop.f32.mrf.mxu0
        %v1693 = vadd.f32 0.0, %v1692
        %1694 = vdwg.mxu0
        %1695 = vmatpush.msra.mxu0 0.0
        %1696 = vmatpush.msra.mxu0 0.0
        %1697 = vmatpush.msra.mxu0 0.0
        %1698 = vmatpush.msra.mxu0 0.0
        %1699 = vmatpush.msra.mxu0 0.0
        %1700 = vmatpush.msra.mxu0 0.0
        %1701 = vmatpush.msra.mxu0 0.0
        %1702 = vmatpush.msra.mxu0 0.0
        %1703 = vmatpush.msra.mxu0 0.0
        %1704 = vmatpush.msra.mxu0 0.0
        %1705 = vmatpush.msra.mxu0 0.0
        %1706 = vmatpush.msra.mxu0 0.0
        %1707 = vmatpush.msra.mxu0 0.0
        %1708 = vmatpush.msra.mxu0 0.0
        %1709 = vmatpush.msra.mxu0 %v1615
        %1710 = vmatpush.msra.mxu0 %v1614
        %1711 = vmatmul.f32.gmra.mxu0 %v1621
        %v1712 = vpop.f32.mrf.mxu0
        %v1713 = vadd.f32 %v1693, %v1712
        %1714 = vdwg.mxu0
        %v1715 = vadd.f32 %v1713, %v1667
        %v1716 = vmax.f32 %v1715, 0.0
        %v1717 = vmax.f32 %v1670, %v1716
        %v1718 = vld [vmem:[%s7] sm:$0xff]
        %v1719 = vld [vmem:[%s7 + $0x8] sm:$0xff]
        %v1720 = vld [vmem:[%s7 + $0x10] sm:$0xff]
        %v1721 = vld [vmem:[%s7 + $0x18] sm:$0xff]
        %v1722 = vld [vmem:[%s8] sm:$0x1]
        %v1724 = vperm.slane %v1722, 0
        %v1727 = vsel %vm545, %v1717, 0
        %1729 = vmatpush.msra.mxu0 0.0
        %1730 = vmatpush.msra.mxu0 0.0
        %1731 = vmatpush.msra.mxu0 0.0
        %1732 = vmatpush.msra.mxu0 0.0
        %1733 = vmatpush.msra.mxu0 0.0
        %1734 = vmatpush.msra.mxu0 0.0
        %1735 = vmatpush.msra.mxu0 0.0
        %1736 = vmatpush.msra.mxu0 0.0
        %1737 = vmatpush.msra.mxu0 0.0
        %1738 = vmatpush.msra.mxu0 0.0
        %1739 = vmatpush.msra.mxu0 0.0
        %1740 = vmatpush.msra.mxu0 0.0
        %1741 = vmatpush.msra.mxu0 %v1721
        %1742 = vmatpush.msra.mxu0 %v1720
        %1743 = vmatpush.msra.mxu0 %v1719
        %1744 = vmatpush.msra.mxu0 %v1718
        %1745 = vmatmul.f32.gmra.mxu0 %v1727
        %v1746 = vpop.f32.mrf.mxu0
        %v1747 = vadd.f32 %v1724, %v1746
        %1748 = vdwg.mxu0
        %v1749 = vmax.f32 %v1747, -3.0
        %v1750 = vmin.f32 %v1749, 3.0
        %v1751 = vld [vmem:[%s9] sm:$0xff]
        %v1752 = vld [vmem:[%s9 + $0x8] sm:$0xff]
        %v1753 = vld [vmem:[%s9 + $0x10] sm:$0xff]
        %v1754 = vld [vmem:[%s9 + $0x18] sm:$0xff]
        %v1755 = vld [vmem:[%s10] sm:$0x1]
        %v1757 = vperm.slane %v1755, 0
        %v1760 = vsel %vm545, %v1750, 0
        %1762 = vmatpush.msra.mxu0 0.0
        %1763 = vmatpush.msra.mxu0 0.0
        %1764 = vmatpush.msra.mxu0 0.0
        %1765 = vmatpush.msra.mxu0 0.0
        %1766 = vmatpush.msra.mxu0 0.0
        %1767 = vmatpush.msra.mxu0 0.0
        %1768 = vmatpush.msra.mxu0 0.0
        %1769 = vmatpush.msra.mxu0 0.0
        %1770 = vmatpush.msra.mxu0 0.0
        %1771 = vmatpush.msra.mxu0 0.0
        %1772 = vmatpush.msra.mxu0 0.0
        %1773 = vmatpush.msra.mxu0 0.0
        %1774 = vmatpush.msra.mxu0 %v1754
        %1775 = vmatpush.msra.mxu0 %v1753
        %1776 = vmatpush.msra.mxu0 %v1752
        %1777 = vmatpush.msra.mxu0 %v1751
        %1778 = vmatmul.f32.gmra.mxu0 %v1760
        %v1779 = vpop.f32.mrf.mxu0
        %v1780 = vadd.f32 %v1757, %v1779
        %1781 = vdwg.mxu0
        %v1782 = vmax.f32 %v1780, 0.0
        %v1783 = vld [vmem:[%s11] sm:$0xff]
        %v1784 = vld [vmem:[%s11 + $0x8] sm:$0xff]
        %v1785 = vld [vmem:[%s11 + $0x10] sm:$0xff]
        %v1786 = vld [vmem:[%s11 + $0x18] sm:$0xff]
        %v1787 = vld [vmem:[%s12] sm:$0x1]
        %v1789 = vperm.slane %v1787, 0
        %1791 = vmatpush.msra.mxu0 0.0
        %1792 = vmatpush.msra.mxu0 0.0
        %1793 = vmatpush.msra.mxu0 0.0
        %1794 = vmatpush.msra.mxu0 0.0
        %1795 = vmatpush.msra.mxu0 0.0
        %1796 = vmatpush.msra.mxu0 0.0
        %1797 = vmatpush.msra.mxu0 0.0
        %1798 = vmatpush.msra.mxu0 0.0
        %1799 = vmatpush.msra.mxu0 0.0
        %1800 = vmatpush.msra.mxu0 0.0
        %1801 = vmatpush.msra.mxu0 0.0
        %1802 = vmatpush.msra.mxu0 0.0
        %1803 = vmatpush.msra.mxu0 %v1786
        %1804 = vmatpush.msra.mxu0 %v1785
        %1805 = vmatpush.msra.mxu0 %v1784
        %1806 = vmatpush.msra.mxu0 %v1783
        %1807 = vmatmul.f32.gmra.mxu0 %v1760
        %v1808 = vpop.f32.mrf.mxu0
        %v1809 = vadd.f32 %v1789, %v1808
        %1810 = vdwg.mxu0
        %v1811 = vmax.f32 %v1809, -3.0
        %v1812 = vmin.f32 %v1811, 3.0
        %v1813 = vmul.f32 %v1782, %v1812
        %v1814 = vsub.f32 1.0, %v1782
        %v1815 = vmul.f32 %v1814, %v1750
        %v1816 = vadd.f32 %v1813, %v1815
        %1817 = vst.msk [vmem:[%s529] sm:$0xff] %vm545, %v1816
        %s1818 = sand.u32 %s313, 1
        %s1819 = scalar_lea.sflag [#allocation6], %s1818
        %s1820 = sand.u32 %s313, 1
        %s1821 = smul.addr %s1820, 8
        %s1822 = scalar_lea.vmem [#allocation5], %s1821
        // Predicated region
        $region111: #{mimick_cnn2_forward.1} parent=105 // pred_check
          %p1823 = pneg %p323
        $region112: #{mimick_cnn2_forward.1} parent=105 // pred_check_branch
          %1825 = sbr.rel (%p1823) target = $region114
        $region113: #{mimick_cnn2_forward.1} parent=105 // pred_region
          %1827 = vsyncadd %s1819, 0
          %s1828 = smul.addr %s27, 8
          %s1829 = scalar_lea.hbm %s13, %s1828
          %s1831 = sshll.u32 %s1822, 4
          %s1832 = int_to_ptr.vmem [resolvable:$true] %s1831
          %s1833 = sshll.u32 %s1829, 4
          %s1834 = int_to_ptr.hbm [resolvable:$true] %s1833
          %1836 = dma.vmem_to_hbm [thread:$0]  %s1832, 128, %s1834, %s1819
        $region114: #{mimick_cnn2_forward.1} parent=105 // pred_fallthru
          _
      $region106: #{mimick_cnn2_forward.1} parent=5 // pred_fallthru
        _
      %p1837 = scmp.le.s32.totalorder 2, %s22
      // Predicated region
      $region115: #{mimick_cnn2_forward.1} parent=5 // pred_check
        %p1838 = pneg %p1837
      $region116: #{mimick_cnn2_forward.1} parent=5 // pred_check_branch
        %1840 = sbr.rel (%p1838) target = $region118
      $region117: #{mimick_cnn2_forward.1} parent=5 // pred_region
        %s1841 = ssub.s32 %s22, 2
        // Predicated region
        $region119: #{mimick_cnn2_forward.1} parent=117 // pred_check
          %p1842 = pneg %p329
        $region120: #{mimick_cnn2_forward.1} parent=117 // pred_check_branch
          %1844 = sbr.rel (%p1842) target = $region122
        $region121: #{mimick_cnn2_forward.1} parent=117 // pred_region
          %s1845 = sand.u32 %s314, 1
          %s1846 = scalar_lea.sflag [#allocation6], %s1845
          %s1847 = sand.u32 %s314, 1
          %s1848 = smul.addr %s1847, 8
          %s1849 = scalar_lea.vmem [#allocation5], %s1848
          %1851 = dma.done %s1846, 128
        $region122: #{mimick_cnn2_forward.1} parent=117 // pred_fallthru
          _
      $region118: #{mimick_cnn2_forward.1} parent=5 // pred_fallthru
        _
    $region6: #{mimick_cnn2_forward.1} parent=1 // loop_footer
      %s26 = sadd.s32 1, %s22
    $region7: #{mimick_cnn2_forward.1} parent=1 // loop_footer_branch
      %21 = sbr.rel target = $region3
    $region8: #{mimick_cnn2_forward.1} parent=1 // loop_exit
      _
    %1852 = vsyncpa [#allocation6], 1
    %s1853 = scalar_lea.sflag [#allocation6], 1
    %1854 = vsyncpa %s1853, 1

</llo_original>
